<compile_context>
chip_gen: v7x
topology: tpu7x:2x2x1
jax: 0.10.0
libtpu: 0.0.40
codegen_flags: <defaults>
</compile_context>

<pallas_src>
import jax
import jax.numpy as jnp
from jax.experimental import pallas as pl
from jax.experimental.pallas import tpu as pltpu

IGNORE_INDEX = -100.0
IN_CH = 3
HIDDEN = 64
NUM_LAYERS = 5
NUM_PRE_LAYERS = 3
D_MODEL = 512
BN_EPS = 1e-5


def _pointset_encoder_kernel(pts_ref,
                             w1_ref, b1_ref,
                             w2_ref, b2_ref,
                             w3_ref, b3_ref,
                             w4l_ref, w4h_ref, b4_ref,
                             w5_ref, b5_ref,
                             w6_ref, b6_ref,
                             w7_ref, b7_ref,
                             out_ref):
    bt, n_pts, c_in = pts_ref.shape          # one tile of bt polylines
    rows = bt * n_pts
    d_model = out_ref.shape[-1]

    # bf16 points, upcast to f32 (exact) for VPU math; flatten tile to rows.
    x = pts_ref[...].astype(jnp.float32).reshape(rows, c_in)

    # First (K=3) layer as 3 VPU FMAs + per-channel validity compare.
    # Mask is computed from the bf16-cast values, matching the PyTorch reference.
    ign = jnp.float32(IGNORE_INDEX)
    valid = None
    acc = b1_ref[...]                         # (1, H) f32; broadcasts to (rows, H)
    for c in range(c_in):                     # c_in == 3: fully unrolled at trace time
        xc = x[:, c:c + 1]                    # (rows, 1)
        vc = xc != ign
        valid = vc if valid is None else jnp.logical_and(valid, vc)
        acc = acc + xc * w1_ref[c:c + 1, :]   # VPU FMA; skips an MXU matmul with K=3
    h = jnp.maximum(acc, 0.0)                 # (rows, H) f32
    mask = valid.astype(jnp.float32)          # (rows, 1)
    hid = h.shape[-1]

    def lin_relu(a, w_ref, b_ref):
        # bf16 x bf16 MXU matmul with f32 accumulation; bias + ReLU in f32 on the VPU.
        y = jnp.dot(a.astype(jnp.bfloat16), w_ref[...],
                    preferred_element_type=jnp.float32)
        return jnp.maximum(y + b_ref[...], 0.0)

    # pre_mlps layers 2 & 3 (eval-mode BN folded into weights/bias).
    h = lin_relu(h, w2_ref, b2_ref)
    h = lin_relu(h, w3_ref, b3_ref)
    h = h * mask                              # scatter-to-zero of invalid points

    # Per-polyline max-pool over the point axis.
    pooled = jnp.max(h.reshape(bt, n_pts, hid), axis=1)               # (bt, H)

    # mlps layer 4 with split weight: cat([h, pooled]) @ W4 == h@W4[:H] + pooled@W4[H:]
    p4 = jnp.dot(pooled.astype(jnp.bfloat16), w4h_ref[...],
                 preferred_element_type=jnp.float32) + b4_ref[...]    # (bt, H)
    g = jnp.dot(h.astype(jnp.bfloat16), w4l_ref[...],
                preferred_element_type=jnp.float32)                   # (rows, H)
    g = jnp.maximum(g.reshape(bt, n_pts, hid) + p4[:, None, :], 0.0)
    g = g.reshape(rows, hid)

    # mlps layer 5
    g = lin_relu(g, w5_ref, b5_ref)
    g = g * mask
    pooled2 = jnp.max(g.reshape(bt, n_pts, hid), axis=1)              # (bt, H)

    # out_mlps: Linear+ReLU, then Linear (ret_before_act, with bias, no norm).
    o = jnp.maximum(jnp.dot(pooled2.astype(jnp.bfloat16), w6_ref[...],
                            preferred_element_type=jnp.float32) + b6_ref[...], 0.0)
    o = jnp.dot(o.astype(jnp.bfloat16), w7_ref[...],
                preferred_element_type=jnp.float32) + b7_ref[...]     # (bt, D)

    # valid_mask: zero output for polylines with no valid point.
    valid_poly = jnp.max(mask.reshape(bt, n_pts, 1), axis=1)          # (bt, 1)
    o = o * valid_poly

    out_ref[...] = o.reshape(bt, 1, d_model).astype(out_ref.dtype)


def pointset_encoder(pointset, params, *, b_tile=32):
    """pointset: (B, N, C) float array. Returns (B, 1, D_MODEL) bfloat16."""
    B, N, C = pointset.shape
    d_model = params[-1].shape[-1]

    # Batch tiling: b_tile polylines per grid step (>=256 MXU rows for N=8).
    if B <= b_tile:
        bt, b_pad, x = B, B, pointset
    else:
        bt = b_tile
        b_pad = ((B + bt - 1) // bt) * bt
        if b_pad != B:
            pad = jnp.full((b_pad - B, N, C), IGNORE_INDEX, pointset.dtype)
            x = jnp.concatenate([pointset, pad], axis=0)   # padded rows are fully invalid
        else:
            x = pointset

    pts_bf = x.astype(jnp.bfloat16)           # matches `pointset.bfloat16()` in the reference

    def const_spec(arr):
        # Constant index_map -> Pallas fetches the block once; no per-step re-DMA.
        zeros = (0,) * arr.ndim
        return pl.BlockSpec(arr.shape, lambda b, _z=zeros: _z)

    out = pl.pallas_call(
        _pointset_encoder_kernel,
        out_shape=jax.ShapeDtypeStruct((b_pad, 1, d_model), jnp.bfloat16),
        grid_spec=pltpu.PrefetchScalarGridSpec(
            num_scalar_prefetch=0,
            grid=(b_pad // bt,),
            in_specs=[pl.BlockSpec((bt, N, C), lambda b: (b, 0, 0))]
                     + [const_spec(p) for p in params],
            out_specs=pl.BlockSpec((bt, 1, d_model), lambda b: (b, 0, 0)),
        ),
        compiler_params=pltpu.CompilerParams(dimension_semantics=("parallel",)),
    )(pts_bf, *params)

    return out[:B]


def init_params(key):
    """Deterministic synthetic parameters (raw Linear + BN, folded for the kernel)."""
    ks = jax.random.split(key, 16)

    def linear_w(k, c_in, c_out):
        return jax.random.normal(k, (c_in, c_out), jnp.float32) * 0.1

    def bn_params(k, c):
        k1, k2, k3, k4 = jax.random.split(k, 4)
        gamma = 0.5 + jax.random.uniform(k1, (c,), jnp.float32)
        beta = jax.random.normal(k2, (c,), jnp.float32) * 0.1
        mean = jax.random.normal(k3, (c,), jnp.float32) * 0.1
        var = 0.5 + jax.random.uniform(k4, (c,), jnp.float32)
        return gamma, beta, mean, var

    def fold(w, bn):
        # eval-mode BN folded into the (bias-free) Linear: y = x @ (W*scale) + shift
        gamma, beta, mean, var = bn
        scale = gamma / jnp.sqrt(var + BN_EPS)
        return w * scale[None, :], (beta - mean * scale).reshape(1, -1)

    # pre_mlps: 3 -> 64 -> 64 -> 64   (Linear no-bias + BN + ReLU)
    w1, b1 = fold(linear_w(ks[0], IN_CH, HIDDEN), bn_params(ks[1], HIDDEN))
    w2, b2 = fold(linear_w(ks[2], HIDDEN, HIDDEN), bn_params(ks[3], HIDDEN))
    w3, b3 = fold(linear_w(ks[4], HIDDEN, HIDDEN), bn_params(ks[5], HIDDEN))
    # mlps: 128 -> 64 -> 64
    w4, b4 = fold(linear_w(ks[6], 2 * HIDDEN, HIDDEN), bn_params(ks[7], HIDDEN))
    w5, b5 = fold(linear_w(ks[8], HIDDEN, HIDDEN), bn_params(ks[9], HIDDEN))
    w4_lo, w4_hi = w4[:HIDDEN], w4[HIDDEN:]
    # out_mlps: 64 -> 64 (ReLU) -> 512  (with bias, no norm)
    w6 = linear_w(ks[10], HIDDEN, HIDDEN)
    b6 = (jax.random.normal(ks[11], (HIDDEN,), jnp.float32) * 0.1).reshape(1, -1)
    w7 = linear_w(ks[12], HIDDEN, D_MODEL)
    b7 = (jax.random.normal(ks[13], (D_MODEL,), jnp.float32) * 0.1).reshape(1, -1)

    bf = lambda a: a.astype(jnp.bfloat16)     # MXU operands in bf16
    return (w1, b1,                           # layer 1 stays f32 (VPU FMA path)
            bf(w2), b2, bf(w3), b3,
            bf(w4_lo), bf(w4_hi), b4,
            bf(w5), b5,
            bf(w6), b6, bf(w7), b7)


if __name__ == "__main__":
    key = jax.random.PRNGKey(0)
    kp, kx, km = jax.random.split(key, 3)

    # Small but tiling-exercising shapes: 64 polylines of 8 points -> 2 batch tiles of 32.
    B, N, C = 64, 8, IN_CH
    params = init_params(kp)

    x = jax.random.normal(kx, (B, N, C), jnp.float32)
    # Mark ~25% of points as ignored (all channels == IGNORE_INDEX).
    ignore = jax.random.bernoulli(km, 0.25, (B, N))
    x = jnp.where(ignore[:, :, None], jnp.float32(IGNORE_INDEX), x)

    out = pointset_encoder(x, params)
    jax.block_until_ready(out)

    assert out.shape == (B, 1, D_MODEL), out.shape
    assert out.dtype == jnp.bfloat16, out.dtype
    assert bool(jnp.isfinite(out.astype(jnp.float32)).all())
    print("KERNEL_OK")
</pallas_src>

<mosaic_0001>
module attributes {stable_mosaic.version = 11 : i64} {
  func.func @_pointset_encoder_kernel(%arg0: i32, %arg1: memref<32x8x3xbf16, #tpu.memory_space<vmem>>, %arg2: memref<3x64xf32, #tpu.memory_space<vmem>>, %arg3: memref<1x64xf32, #tpu.memory_space<vmem>>, %arg4: memref<64x64xbf16, #tpu.memory_space<vmem>>, %arg5: memref<1x64xf32, #tpu.memory_space<vmem>>, %arg6: memref<64x64xbf16, #tpu.memory_space<vmem>>, %arg7: memref<1x64xf32, #tpu.memory_space<vmem>>, %arg8: memref<64x64xbf16, #tpu.memory_space<vmem>>, %arg9: memref<64x64xbf16, #tpu.memory_space<vmem>>, %arg10: memref<1x64xf32, #tpu.memory_space<vmem>>, %arg11: memref<64x64xbf16, #tpu.memory_space<vmem>>, %arg12: memref<1x64xf32, #tpu.memory_space<vmem>>, %arg13: memref<64x64xbf16, #tpu.memory_space<vmem>>, %arg14: memref<1x64xf32, #tpu.memory_space<vmem>>, %arg15: memref<64x512xbf16, #tpu.memory_space<vmem>>, %arg16: memref<1x512xf32, #tpu.memory_space<vmem>>, %arg17: memref<32x1x512xbf16, #tpu.memory_space<vmem>>) attributes {dimension_semantics = [#tpu.dimension_semantics<parallel>], iteration_bounds = array<i64: 2>, scalar_prefetch = 0 : i64, scratch_operands = 0 : i64, tpu.core_type = #tpu.core_type<tc>, window_params = [{transform_indices = @transform_0, window_bounds = array<i64: 32, 8, 3>}, {pipeline_mode = #tpu.pipeline_mode<synchronous>, transform_indices = @transform_1, window_bounds = array<i64: 3, 64>}, {pipeline_mode = #tpu.pipeline_mode<synchronous>, transform_indices = @transform_2, window_bounds = array<i64: 1, 64>}, {pipeline_mode = #tpu.pipeline_mode<synchronous>, transform_indices = @transform_3, window_bounds = array<i64: 64, 64>}, {pipeline_mode = #tpu.pipeline_mode<synchronous>, transform_indices = @transform_4, window_bounds = array<i64: 1, 64>}, {pipeline_mode = #tpu.pipeline_mode<synchronous>, transform_indices = @transform_5, window_bounds = array<i64: 64, 64>}, {pipeline_mode = #tpu.pipeline_mode<synchronous>, transform_indices = @transform_6, window_bounds = array<i64: 1, 64>}, {pipeline_mode = #tpu.pipeline_mode<synchronous>, transform_indices = @transform_7, window_bounds = array<i64: 64, 64>}, {pipeline_mode = #tpu.pipeline_mode<synchronous>, transform_indices = @transform_8, window_bounds = array<i64: 64, 64>}, {pipeline_mode = #tpu.pipeline_mode<synchronous>, transform_indices = @transform_9, window_bounds = array<i64: 1, 64>}, {pipeline_mode = #tpu.pipeline_mode<synchronous>, transform_indices = @transform_10, window_bounds = array<i64: 64, 64>}, {pipeline_mode = #tpu.pipeline_mode<synchronous>, transform_indices = @transform_11, window_bounds = array<i64: 1, 64>}, {pipeline_mode = #tpu.pipeline_mode<synchronous>, transform_indices = @transform_12, window_bounds = array<i64: 64, 64>}, {pipeline_mode = #tpu.pipeline_mode<synchronous>, transform_indices = @transform_13, window_bounds = array<i64: 1, 64>}, {pipeline_mode = #tpu.pipeline_mode<synchronous>, transform_indices = @transform_14, window_bounds = array<i64: 64, 512>}, {pipeline_mode = #tpu.pipeline_mode<synchronous>, transform_indices = @transform_15, window_bounds = array<i64: 1, 512>}, {transform_indices = @transform_16, window_bounds = array<i64: 32, 1, 512>}]} {
    %c0 = arith.constant 0 : index
    %c0_0 = arith.constant 0 : index
    %c0_1 = arith.constant 0 : index
    %0 = vector.load %arg1[%c0, %c0_0, %c0_1] : memref<32x8x3xbf16, #tpu.memory_space<vmem>>, vector<32x8x3xbf16>
    %1 = arith.extf %0 : vector<32x8x3xbf16> to vector<32x8x3xf32>
    %2 = vector.shape_cast %1 : vector<32x8x3xf32> to vector<256x3xf32>
    %c0_2 = arith.constant 0 : index
    %c0_3 = arith.constant 0 : index
    %3 = vector.load %arg3[%c0_2, %c0_3] : memref<1x64xf32, #tpu.memory_space<vmem>>, vector<1x64xf32>
    %4 = vector.extract_strided_slice %2 {offsets = [0, 0], sizes = [256, 1], strides = [1, 1]} : vector<256x3xf32> to vector<256x1xf32>
    %cst = arith.constant -1.000000e+02 : f32
    %5 = vector.broadcast %cst : f32 to vector<256x1xf32>
    %6 = arith.cmpf one, %4, %5 : vector<256x1xf32>
    %c0_4 = arith.constant 0 : index
    %c0_5 = arith.constant 0 : index
    %7 = vector.load %arg2[%c0_4, %c0_5] : memref<3x64xf32, #tpu.memory_space<vmem>>, vector<1x64xf32>
    %8 = vector.broadcast %4 : vector<256x1xf32> to vector<256x64xf32>
    %9 = vector.broadcast %7 : vector<1x64xf32> to vector<256x64xf32>
    %10 = arith.mulf %8, %9 : vector<256x64xf32>
    %11 = vector.broadcast %3 : vector<1x64xf32> to vector<256x64xf32>
    %12 = arith.addf %11, %10 : vector<256x64xf32>
    %13 = vector.extract_strided_slice %2 {offsets = [0, 1], sizes = [256, 1], strides = [1, 1]} : vector<256x3xf32> to vector<256x1xf32>
    %cst_6 = arith.constant -1.000000e+02 : f32
    %14 = vector.broadcast %cst_6 : f32 to vector<256x1xf32>
    %15 = arith.cmpf one, %13, %14 : vector<256x1xf32>
    %16 = arith.andi %6, %15 : vector<256x1xi1>
    %c1 = arith.constant 1 : index
    %c0_7 = arith.constant 0 : index
    %17 = vector.load %arg2[%c1, %c0_7] : memref<3x64xf32, #tpu.memory_space<vmem>>, vector<1x64xf32>
    %18 = vector.broadcast %13 : vector<256x1xf32> to vector<256x64xf32>
    %19 = vector.broadcast %17 : vector<1x64xf32> to vector<256x64xf32>
    %20 = arith.mulf %18, %19 : vector<256x64xf32>
    %21 = arith.addf %12, %20 : vector<256x64xf32>
    %22 = vector.extract_strided_slice %2 {offsets = [0, 2], sizes = [256, 1], strides = [1, 1]} : vector<256x3xf32> to vector<256x1xf32>
    %cst_8 = arith.constant -1.000000e+02 : f32
    %23 = vector.broadcast %cst_8 : f32 to vector<256x1xf32>
    %24 = arith.cmpf one, %22, %23 : vector<256x1xf32>
    %25 = arith.andi %16, %24 : vector<256x1xi1>
    %c2 = arith.constant 2 : index
    %c0_9 = arith.constant 0 : index
    %26 = vector.load %arg2[%c2, %c0_9] : memref<3x64xf32, #tpu.memory_space<vmem>>, vector<1x64xf32>
    %27 = vector.broadcast %22 : vector<256x1xf32> to vector<256x64xf32>
    %28 = vector.broadcast %26 : vector<1x64xf32> to vector<256x64xf32>
    %29 = arith.mulf %27, %28 : vector<256x64xf32>
    %30 = arith.addf %21, %29 : vector<256x64xf32>
    %cst_10 = arith.constant 0.000000e+00 : f32
    %31 = vector.broadcast %cst_10 : f32 to vector<256x64xf32>
    %32 = arith.maximumf %30, %31 : vector<256x64xf32>
    %33 = arith.extui %25 : vector<256x1xi1> to vector<256x1xi32>
    %34 = arith.sitofp %33 : vector<256x1xi32> to vector<256x1xf32>
    %35 = arith.truncf %32 : vector<256x64xf32> to vector<256x64xbf16>
    %c0_11 = arith.constant 0 : index
    %c0_12 = arith.constant 0 : index
    %36 = vector.load %arg4[%c0_11, %c0_12] : memref<64x64xbf16, #tpu.memory_space<vmem>>, vector<64x64xbf16>
    %cst_13 = arith.constant dense<0.000000e+00> : vector<256x64xf32>
    %37 = tpu.matmul %35, %36, %cst_13 {dimension_numbers = #tpu.dot_dimension_numbers<[1], [0], [0], [1], [0, 0, 1, 1], [], []>} : vector<256x64xbf16>, vector<64x64xbf16>, vector<256x64xf32> -> vector<256x64xf32>
    %c0_14 = arith.constant 0 : index
    %c0_15 = arith.constant 0 : index
    %38 = vector.load %arg5[%c0_14, %c0_15] : memref<1x64xf32, #tpu.memory_space<vmem>>, vector<1x64xf32>
    %39 = vector.broadcast %38 : vector<1x64xf32> to vector<256x64xf32>
    %40 = arith.addf %37, %39 : vector<256x64xf32>
    %cst_16 = arith.constant 0.000000e+00 : f32
    %41 = vector.broadcast %cst_16 : f32 to vector<256x64xf32>
    %42 = arith.maximumf %40, %41 : vector<256x64xf32>
    %43 = arith.truncf %42 : vector<256x64xf32> to vector<256x64xbf16>
    %c0_17 = arith.constant 0 : index
    %c0_18 = arith.constant 0 : index
    %44 = vector.load %arg6[%c0_17, %c0_18] : memref<64x64xbf16, #tpu.memory_space<vmem>>, vector<64x64xbf16>
    %cst_19 = arith.constant dense<0.000000e+00> : vector<256x64xf32>
    %45 = tpu.matmul %43, %44, %cst_19 {dimension_numbers = #tpu.dot_dimension_numbers<[1], [0], [0], [1], [0, 0, 1, 1], [], []>} : vector<256x64xbf16>, vector<64x64xbf16>, vector<256x64xf32> -> vector<256x64xf32>
    %c0_20 = arith.constant 0 : index
    %c0_21 = arith.constant 0 : index
    %46 = vector.load %arg7[%c0_20, %c0_21] : memref<1x64xf32, #tpu.memory_space<vmem>>, vector<1x64xf32>
    %47 = vector.broadcast %46 : vector<1x64xf32> to vector<256x64xf32>
    %48 = arith.addf %45, %47 : vector<256x64xf32>
    %cst_22 = arith.constant 0.000000e+00 : f32
    %49 = vector.broadcast %cst_22 : f32 to vector<256x64xf32>
    %50 = arith.maximumf %48, %49 : vector<256x64xf32>
    %51 = vector.broadcast %34 : vector<256x1xf32> to vector<256x64xf32>
    %52 = arith.mulf %50, %51 : vector<256x64xf32>
    %53 = vector.shape_cast %52 : vector<256x64xf32> to vector<32x8x64xf32>
    %cst_23 = arith.constant dense<0xFF800000> : vector<32x64xf32>
    %54 = vector.multi_reduction <maximumf>, %53, %cst_23 [1] : vector<32x8x64xf32> to vector<32x64xf32>
    %55 = arith.truncf %54 : vector<32x64xf32> to vector<32x64xbf16>
    %c0_24 = arith.constant 0 : index
    %c0_25 = arith.constant 0 : index
    %56 = vector.load %arg9[%c0_24, %c0_25] : memref<64x64xbf16, #tpu.memory_space<vmem>>, vector<64x64xbf16>
    %cst_26 = arith.constant dense<0.000000e+00> : vector<32x64xf32>
    %57 = tpu.matmul %55, %56, %cst_26 {dimension_numbers = #tpu.dot_dimension_numbers<[1], [0], [0], [1], [0, 0, 1, 1], [], []>} : vector<32x64xbf16>, vector<64x64xbf16>, vector<32x64xf32> -> vector<32x64xf32>
    %c0_27 = arith.constant 0 : index
    %c0_28 = arith.constant 0 : index
    %58 = vector.load %arg10[%c0_27, %c0_28] : memref<1x64xf32, #tpu.memory_space<vmem>>, vector<1x64xf32>
    %59 = vector.broadcast %58 : vector<1x64xf32> to vector<32x64xf32>
    %60 = arith.addf %57, %59 : vector<32x64xf32>
    %61 = arith.truncf %52 : vector<256x64xf32> to vector<256x64xbf16>
    %c0_29 = arith.constant 0 : index
    %c0_30 = arith.constant 0 : index
    %62 = vector.load %arg8[%c0_29, %c0_30] : memref<64x64xbf16, #tpu.memory_space<vmem>>, vector<64x64xbf16>
    %cst_31 = arith.constant dense<0.000000e+00> : vector<256x64xf32>
    %63 = tpu.matmul %61, %62, %cst_31 {dimension_numbers = #tpu.dot_dimension_numbers<[1], [0], [0], [1], [0, 0, 1, 1], [], []>} : vector<256x64xbf16>, vector<64x64xbf16>, vector<256x64xf32> -> vector<256x64xf32>
    %64 = vector.shape_cast %63 : vector<256x64xf32> to vector<32x8x64xf32>
    %65 = vector.shape_cast %60 : vector<32x64xf32> to vector<32x1x64xf32>
    %66 = vector.broadcast %65 : vector<32x1x64xf32> to vector<32x8x64xf32>
    %67 = arith.addf %64, %66 : vector<32x8x64xf32>
    %cst_32 = arith.constant 0.000000e+00 : f32
    %68 = vector.broadcast %cst_32 : f32 to vector<32x8x64xf32>
    %69 = arith.maximumf %67, %68 : vector<32x8x64xf32>
    %70 = vector.shape_cast %69 : vector<32x8x64xf32> to vector<256x64xf32>
    %71 = arith.truncf %70 : vector<256x64xf32> to vector<256x64xbf16>
    %c0_33 = arith.constant 0 : index
    %c0_34 = arith.constant 0 : index
    %72 = vector.load %arg11[%c0_33, %c0_34] : memref<64x64xbf16, #tpu.memory_space<vmem>>, vector<64x64xbf16>
    %cst_35 = arith.constant dense<0.000000e+00> : vector<256x64xf32>
    %73 = tpu.matmul %71, %72, %cst_35 {dimension_numbers = #tpu.dot_dimension_numbers<[1], [0], [0], [1], [0, 0, 1, 1], [], []>} : vector<256x64xbf16>, vector<64x64xbf16>, vector<256x64xf32> -> vector<256x64xf32>
    %c0_36 = arith.constant 0 : index
    %c0_37 = arith.constant 0 : index
    %74 = vector.load %arg12[%c0_36, %c0_37] : memref<1x64xf32, #tpu.memory_space<vmem>>, vector<1x64xf32>
    %75 = vector.broadcast %74 : vector<1x64xf32> to vector<256x64xf32>
    %76 = arith.addf %73, %75 : vector<256x64xf32>
    %cst_38 = arith.constant 0.000000e+00 : f32
    %77 = vector.broadcast %cst_38 : f32 to vector<256x64xf32>
    %78 = arith.maximumf %76, %77 : vector<256x64xf32>
    %79 = vector.broadcast %34 : vector<256x1xf32> to vector<256x64xf32>
    %80 = arith.mulf %78, %79 : vector<256x64xf32>
    %81 = vector.shape_cast %80 : vector<256x64xf32> to vector<32x8x64xf32>
    %cst_39 = arith.constant dense<0xFF800000> : vector<32x64xf32>
    %82 = vector.multi_reduction <maximumf>, %81, %cst_39 [1] : vector<32x8x64xf32> to vector<32x64xf32>
    %83 = arith.truncf %82 : vector<32x64xf32> to vector<32x64xbf16>
    %c0_40 = arith.constant 0 : index
    %c0_41 = arith.constant 0 : index
    %84 = vector.load %arg13[%c0_40, %c0_41] : memref<64x64xbf16, #tpu.memory_space<vmem>>, vector<64x64xbf16>
    %cst_42 = arith.constant dense<0.000000e+00> : vector<32x64xf32>
    %85 = tpu.matmul %83, %84, %cst_42 {dimension_numbers = #tpu.dot_dimension_numbers<[1], [0], [0], [1], [0, 0, 1, 1], [], []>} : vector<32x64xbf16>, vector<64x64xbf16>, vector<32x64xf32> -> vector<32x64xf32>
    %c0_43 = arith.constant 0 : index
    %c0_44 = arith.constant 0 : index
    %86 = vector.load %arg14[%c0_43, %c0_44] : memref<1x64xf32, #tpu.memory_space<vmem>>, vector<1x64xf32>
    %87 = vector.broadcast %86 : vector<1x64xf32> to vector<32x64xf32>
    %88 = arith.addf %85, %87 : vector<32x64xf32>
    %cst_45 = arith.constant 0.000000e+00 : f32
    %89 = vector.broadcast %cst_45 : f32 to vector<32x64xf32>
    %90 = arith.maximumf %88, %89 : vector<32x64xf32>
    %91 = arith.truncf %90 : vector<32x64xf32> to vector<32x64xbf16>
    %c0_46 = arith.constant 0 : index
    %c0_47 = arith.constant 0 : index
    %92 = vector.load %arg15[%c0_46, %c0_47] : memref<64x512xbf16, #tpu.memory_space<vmem>>, vector<64x512xbf16>
    %cst_48 = arith.constant dense<0.000000e+00> : vector<32x512xf32>
    %93 = tpu.matmul %91, %92, %cst_48 {dimension_numbers = #tpu.dot_dimension_numbers<[1], [0], [0], [1], [0, 0, 1, 1], [], []>} : vector<32x64xbf16>, vector<64x512xbf16>, vector<32x512xf32> -> vector<32x512xf32>
    %c0_49 = arith.constant 0 : index
    %c0_50 = arith.constant 0 : index
    %94 = vector.load %arg16[%c0_49, %c0_50] : memref<1x512xf32, #tpu.memory_space<vmem>>, vector<1x512xf32>
    %95 = vector.broadcast %94 : vector<1x512xf32> to vector<32x512xf32>
    %96 = arith.addf %93, %95 : vector<32x512xf32>
    %97 = vector.shape_cast %34 : vector<256x1xf32> to vector<32x8x1xf32>
    %cst_51 = arith.constant dense<0xFF800000> : vector<32x1xf32>
    %98 = vector.multi_reduction <maximumf>, %97, %cst_51 [1] : vector<32x8x1xf32> to vector<32x1xf32>
    %99 = vector.broadcast %98 : vector<32x1xf32> to vector<32x512xf32>
    %100 = arith.mulf %96, %99 : vector<32x512xf32>
    %101 = vector.shape_cast %100 : vector<32x512xf32> to vector<32x1x512xf32>
    %102 = arith.truncf %101 : vector<32x1x512xf32> to vector<32x1x512xbf16>
    %c0_52 = arith.constant 0 : index
    %c0_53 = arith.constant 0 : index
    %c0_54 = arith.constant 0 : index
    %103 = vector.load %arg17[%c0_52, %c0_53, %c0_54] : memref<32x1x512xbf16, #tpu.memory_space<vmem>>, vector<32x1x512xbf16>
    tpu.vector_store %arg17[%c0_52, %c0_53, %c0_54], %102 {strides = array<i32>} : memref<32x1x512xbf16, #tpu.memory_space<vmem>>, vector<32x1x512xbf16>,
    return
  }
  func.func @transform_0(%arg0: i32) -> (i32, i32, i32) {
    %c0_i32 = arith.constant 0 : i32
    %c0_i32_0 = arith.constant 0 : i32
    %c0_i32_1 = arith.constant 0 : i32
    return %arg0, %c0_i32, %c0_i32_0 : i32, i32, i32
  }
  func.func @transform_1(%arg0: i32) -> (i32, i32) {
    %c0_i32 = arith.constant 0 : i32
    %c0_i32_0 = arith.constant 0 : i32
    %c0_i32_1 = arith.constant 0 : i32
    return %c0_i32, %c0_i32_0 : i32, i32
  }
  func.func @transform_2(%arg0: i32) -> (i32, i32) {
    %c0_i32 = arith.constant 0 : i32
    %c0_i32_0 = arith.constant 0 : i32
    %c0_i32_1 = arith.constant 0 : i32
    return %c0_i32, %c0_i32_0 : i32, i32
  }
  func.func @transform_3(%arg0: i32) -> (i32, i32) {
    %c0_i32 = arith.constant 0 : i32
    %c0_i32_0 = arith.constant 0 : i32
    %c0_i32_1 = arith.constant 0 : i32
    return %c0_i32, %c0_i32_0 : i32, i32
  }
  func.func @transform_4(%arg0: i32) -> (i32, i32) {
    %c0_i32 = arith.constant 0 : i32
    %c0_i32_0 = arith.constant 0 : i32
    %c0_i32_1 = arith.constant 0 : i32
    return %c0_i32, %c0_i32_0 : i32, i32
  }
  func.func @transform_5(%arg0: i32) -> (i32, i32) {
    %c0_i32 = arith.constant 0 : i32
    %c0_i32_0 = arith.constant 0 : i32
    %c0_i32_1 = arith.constant 0 : i32
    return %c0_i32, %c0_i32_0 : i32, i32
  }
  func.func @transform_6(%arg0: i32) -> (i32, i32) {
    %c0_i32 = arith.constant 0 : i32
    %c0_i32_0 = arith.constant 0 : i32
    %c0_i32_1 = arith.constant 0 : i32
    return %c0_i32, %c0_i32_0 : i32, i32
  }
  func.func @transform_7(%arg0: i32) -> (i32, i32) {
    %c0_i32 = arith.constant 0 : i32
    %c0_i32_0 = arith.constant 0 : i32
    %c0_i32_1 = arith.constant 0 : i32
    return %c0_i32, %c0_i32_0 : i32, i32
  }
  func.func @transform_8(%arg0: i32) -> (i32, i32) {
    %c0_i32 = arith.constant 0 : i32
    %c0_i32_0 = arith.constant 0 : i32
    %c0_i32_1 = arith.constant 0 : i32
    return %c0_i32, %c0_i32_0 : i32, i32
  }
  func.func @transform_9(%arg0: i32) -> (i32, i32) {
    %c0_i32 = arith.constant 0 : i32
    %c0_i32_0 = arith.constant 0 : i32
    %c0_i32_1 = arith.constant 0 : i32
    return %c0_i32, %c0_i32_0 : i32, i32
  }
  func.func @transform_10(%arg0: i32) -> (i32, i32) {
    %c0_i32 = arith.constant 0 : i32
    %c0_i32_0 = arith.constant 0 : i32
    %c0_i32_1 = arith.constant 0 : i32
    return %c0_i32, %c0_i32_0 : i32, i32
  }
  func.func @transform_11(%arg0: i32) -> (i32, i32) {
    %c0_i32 = arith.constant 0 : i32
    %c0_i32_0 = arith.constant 0 : i32
    %c0_i32_1 = arith.constant 0 : i32
    return %c0_i32, %c0_i32_0 : i32, i32
  }
  func.func @transform_12(%arg0: i32) -> (i32, i32) {
    %c0_i32 = arith.constant 0 : i32
    %c0_i32_0 = arith.constant 0 : i32
    %c0_i32_1 = arith.constant 0 : i32
    return %c0_i32, %c0_i32_0 : i32, i32
  }
  func.func @transform_13(%arg0: i32) -> (i32, i32) {
    %c0_i32 = arith.constant 0 : i32
    %c0_i32_0 = arith.constant 0 : i32
    %c0_i32_1 = arith.constant 0 : i32
    return %c0_i32, %c0_i32_0 : i32, i32
  }
  func.func @transform_14(%arg0: i32) -> (i32, i32) {
    %c0_i32 = arith.constant 0 : i32
    %c0_i32_0 = arith.constant 0 : i32
    %c0_i32_1 = arith.constant 0 : i32
    return %c0_i32, %c0_i32_0 : i32, i32
  }
  func.func @transform_15(%arg0: i32) -> (i32, i32) {
    %c0_i32 = arith.constant 0 : i32
    %c0_i32_0 = arith.constant 0 : i32
    %c0_i32_1 = arith.constant 0 : i32
    return %c0_i32, %c0_i32_0 : i32, i32
  }
  func.func @transform_16(%arg0: i32) -> (i32, i32, i32) {
    %c0_i32 = arith.constant 0 : i32
    %c0_i32_0 = arith.constant 0 : i32
    %c0_i32_1 = arith.constant 0 : i32
    return %arg0, %c0_i32, %c0_i32_0 : i32, i32, i32
  }
}

</mosaic_0001>

<llo_original>
// kernel: tpu_custom_call.1
$region0: #{tpu_custom_call.1}
  #allocation0 [shape = 'u32[]', space=smem, size = 0x4, offset = 0x4, fixed_abs, tag = 'smem constant byte address 0x4 - core index']
  #allocation1 [shape = 'u32[144,128]{1,0:T(1,128)}', space=vmem, size = 0x12000, scoped, tag = 'internal scratch']
  %s0 = inlined_call_operand.vmem [shape: bf16[64,8,3], index: 0, kind: input, shape index: {}]
  %s1 = inlined_call_operand.hbm [shape: f32[3,64], index: 1, kind: input, shape index: {}]
  %s2 = inlined_call_operand.vmem [shape: f32[1,64], index: 2, kind: input, shape index: {}]
  %s3 = inlined_call_operand.vmem [shape: bf16[64,64], index: 3, kind: input, shape index: {}]
  %s4 = inlined_call_operand.vmem [shape: f32[1,64], index: 4, kind: input, shape index: {}]
  %s5 = inlined_call_operand.vmem [shape: bf16[64,64], index: 5, kind: input, shape index: {}]
  %s6 = inlined_call_operand.hbm [shape: f32[1,64], index: 6, kind: input, shape index: {}]
  %s7 = inlined_call_operand.vmem [shape: bf16[64,64], index: 7, kind: input, shape index: {}]
  %s8 = inlined_call_operand.vmem [shape: bf16[64,64], index: 8, kind: input, shape index: {}]
  %s9 = inlined_call_operand.vmem [shape: f32[1,64], index: 9, kind: input, shape index: {}]
  %s10 = inlined_call_operand.vmem [shape: bf16[64,64], index: 10, kind: input, shape index: {}]
  %s11 = inlined_call_operand.vmem [shape: f32[1,64], index: 11, kind: input, shape index: {}]
  %s12 = inlined_call_operand.hbm [shape: bf16[64,64], index: 12, kind: input, shape index: {}]
  %s13 = inlined_call_operand.vmem [shape: f32[1,64], index: 13, kind: input, shape index: {}]
  %s14 = inlined_call_operand.vmem [shape: bf16[64,512], index: 14, kind: input, shape index: {}]
  %s15 = inlined_call_operand.vmem [shape: f32[1,512], index: 15, kind: input, shape index: {}]
  %s16 = inlined_call_operand.vmem [shape: bf16[64,1,512], index: 16, kind: output, shape index: {}]
  %s17 = sld [smem:[#allocation0]]
  $region109: #{tpu_custom_call.1} parent=0
    _
  %s19 = ssub.s32 1, %s17
  %s20 = scalar_select 0, %s19, %s17
  $region1: #{tpu_custom_call.1} parent=0
    #allocation2 [shape = 'u8[2048]{0}', space=vmem, size = 0x800, scoped, tag = 'input window, operand 1, single buffered']
    #allocation3 [shape = 's32[2]{0}', space=sflag, size = 0x8, scoped, tag = 'scoped memory for tpu_custom_call.1']
    #allocation4 [shape = 'u8[512]{0}', space=vmem, size = 0x400, scoped, tag = 'input window, operand 6, single buffered']
    #allocation5 [shape = 's32[1]{0}', space=sflag, size = 0x4, scoped, tag = 'scoped memory for tpu_custom_call.1']
    #allocation6 [shape = 'u8[16384]{0}', space=vmem, size = 0x4000, scoped, tag = 'input window, operand 12, single buffered']
    %21 = vsyncpa [#allocation3], 0
    %22 = vsyncpa [#allocation5], 0
    loop: start=0, step=1, limit=4
    $region2: #{tpu_custom_call.1} parent=1 // loop_pre_header
      _
    $region3: #{tpu_custom_call.1} parent=1 // loop_header
      %s24 = sphi 0, %s28
      %p25 = scmp.ge.s32.totalorder %s24, 4
      %s34 = sphi 0, %s36
      %s37 = sphi 0, %s34
      %s38 = sphi 0, %s37
      %s54 = sphi 0, %s38
      %s58 = sphi 0, %s58
      %s60 = sphi 0, %s58
      %s61 = sphi 0, %s60
      %s75 = sphi 0, %s61
      %s79 = sphi 0, %s79
      %s81 = sphi 0, %s79
      %s82 = sphi 0, %s81
      %s96 = sphi 0, %s82
      %s100 = sphi 0, %s100
      %s102 = sphi 0, %s100
      %s103 = sphi 0, %s102
      %s117 = sphi 0, %s103
      %s121 = sphi 0, %s121
      %s123 = sphi 0, %s121
      %s124 = sphi 0, %s123
      %s138 = sphi 0, %s124
      %s142 = sphi 0, %s142
      %s144 = sphi 0, %s142
      %s145 = sphi 0, %s144
      %s159 = sphi 0, %s145
      %s163 = sphi 0, %s163
      %s165 = sphi 0, %s163
      %s166 = sphi 0, %s165
      %s180 = sphi 0, %s166
      %s184 = sphi 0, %s184
      %s186 = sphi 0, %s184
      %s187 = sphi 0, %s186
      %s201 = sphi 0, %s187
      %s205 = sphi 0, %s205
      %s207 = sphi 0, %s205
      %s208 = sphi 0, %s207
      %s222 = sphi 0, %s208
      %s226 = sphi 0, %s226
      %s228 = sphi 0, %s226
      %s229 = sphi 0, %s228
      %s243 = sphi 0, %s229
      %s247 = sphi 0, %s247
      %s249 = sphi 0, %s247
      %s250 = sphi 0, %s249
      %s264 = sphi 0, %s250
      %s268 = sphi 0, %s268
      %s270 = sphi 0, %s268
      %s271 = sphi 0, %s270
      %s285 = sphi 0, %s271
      %s289 = sphi 0, %s289
      %s291 = sphi 0, %s289
      %s292 = sphi 0, %s291
      %s306 = sphi 0, %s292
      %s310 = sphi 0, %s310
      %s312 = sphi 0, %s310
      %s313 = sphi 0, %s312
      %s327 = sphi 0, %s313
      %s331 = sphi 0, %s331
      %s333 = sphi 0, %s331
      %s334 = sphi 0, %s333
      %s348 = sphi 0, %s334
      %s352 = sphi 0, %s352
      %s354 = sphi 0, %s352
      %s355 = sphi 0, %s354
      %s369 = sphi 0, %s355
      %s375 = sphi 0, %s377
      %s378 = sphi 0, %s375
      %s379 = sphi 0, %s378
      %s395 = sphi 0, %s379
    $region4: #{tpu_custom_call.1} parent=1 // loop_header_branch
      %27 = sbr.rel (%p25) target = $region8
    $region5: #{tpu_custom_call.1} parent=1 // loop_body
      %s29 = ssub.s32 %s24, 1
      %s30 = ssub.s32 %s24, 2
      %s31 = sadd.s32 %s24, 1
      %s32 = ssub.s32 %s24, %s31
      %p33 = scmp.eq.s32.totalorder %s32, 0
      %s35 = sadd.s32 %s34, 1
      %s36 = scalar_select %p33, %s34, %s35
      %p39 = pneg %p33
      %p40 = scmp.eq.s32.totalorder %s24, 1
      %p41 = por %p39, %p40
      %p42 = scmp.ne.s32.totalorder %s34, %s37
      %p43 = scmp.eq.s32.totalorder %s24, 0
      %p44 = por %p42, %p43
      %p45 = scmp.ne.s32.totalorder %s34, %s37
      %p46 = scmp.eq.s32.totalorder %s29, 1
      %p47 = por %p45, %p46
      %p48 = scmp.ne.s32.totalorder %s37, %s38
      %p49 = scmp.eq.s32.totalorder %s29, 0
      %p50 = por %p48, %p49
      %p51 = scmp.ne.s32.totalorder %s37, %s38
      %p52 = scmp.eq.s32.totalorder %s30, 1
      %p53 = por %p51, %p52
      %p55 = scmp.ne.s32.totalorder %s38, %s54
      %p56 = scmp.eq.s32.totalorder %s30, 0
      %p57 = por %p55, %p56
      %s59 = sadd.s32 %s58, 1
      %p62 = scmp.eq.s32.totalorder %s24, 1
      %p63 = scmp.ne.s32.totalorder %s58, %s60
      %p64 = scmp.eq.s32.totalorder %s24, 0
      %p65 = por %p63, %p64
      %p66 = scmp.ne.s32.totalorder %s58, %s60
      %p67 = scmp.eq.s32.totalorder %s29, 1
      %p68 = por %p66, %p67
      %p69 = scmp.ne.s32.totalorder %s60, %s61
      %p70 = scmp.eq.s32.totalorder %s29, 0
      %p71 = por %p69, %p70
      %p72 = scmp.ne.s32.totalorder %s60, %s61
      %p73 = scmp.eq.s32.totalorder %s30, 1
      %p74 = por %p72, %p73
      %p76 = scmp.ne.s32.totalorder %s61, %s75
      %p77 = scmp.eq.s32.totalorder %s30, 0
      %p78 = por %p76, %p77
      %s80 = sadd.s32 %s79, 1
      %p83 = scmp.eq.s32.totalorder %s24, 1
      %p84 = scmp.ne.s32.totalorder %s79, %s81
      %p85 = scmp.eq.s32.totalorder %s24, 0
      %p86 = por %p84, %p85
      %p87 = scmp.ne.s32.totalorder %s79, %s81
      %p88 = scmp.eq.s32.totalorder %s29, 1
      %p89 = por %p87, %p88
      %p90 = scmp.ne.s32.totalorder %s81, %s82
      %p91 = scmp.eq.s32.totalorder %s29, 0
      %p92 = por %p90, %p91
      %p93 = scmp.ne.s32.totalorder %s81, %s82
      %p94 = scmp.eq.s32.totalorder %s30, 1
      %p95 = por %p93, %p94
      %p97 = scmp.ne.s32.totalorder %s82, %s96
      %p98 = scmp.eq.s32.totalorder %s30, 0
      %p99 = por %p97, %p98
      %s101 = sadd.s32 %s100, 1
      %p104 = scmp.eq.s32.totalorder %s24, 1
      %p105 = scmp.ne.s32.totalorder %s100, %s102
      %p106 = scmp.eq.s32.totalorder %s24, 0
      %p107 = por %p105, %p106
      %p108 = scmp.ne.s32.totalorder %s100, %s102
      %p109 = scmp.eq.s32.totalorder %s29, 1
      %p110 = por %p108, %p109
      %p111 = scmp.ne.s32.totalorder %s102, %s103
      %p112 = scmp.eq.s32.totalorder %s29, 0
      %p113 = por %p111, %p112
      %p114 = scmp.ne.s32.totalorder %s102, %s103
      %p115 = scmp.eq.s32.totalorder %s30, 1
      %p116 = por %p114, %p115
      %p118 = scmp.ne.s32.totalorder %s103, %s117
      %p119 = scmp.eq.s32.totalorder %s30, 0
      %p120 = por %p118, %p119
      %s122 = sadd.s32 %s121, 1
      %p125 = scmp.eq.s32.totalorder %s24, 1
      %p126 = scmp.ne.s32.totalorder %s121, %s123
      %p127 = scmp.eq.s32.totalorder %s24, 0
      %p128 = por %p126, %p127
      %p129 = scmp.ne.s32.totalorder %s121, %s123
      %p130 = scmp.eq.s32.totalorder %s29, 1
      %p131 = por %p129, %p130
      %p132 = scmp.ne.s32.totalorder %s123, %s124
      %p133 = scmp.eq.s32.totalorder %s29, 0
      %p134 = por %p132, %p133
      %p135 = scmp.ne.s32.totalorder %s123, %s124
      %p136 = scmp.eq.s32.totalorder %s30, 1
      %p137 = por %p135, %p136
      %p139 = scmp.ne.s32.totalorder %s124, %s138
      %p140 = scmp.eq.s32.totalorder %s30, 0
      %p141 = por %p139, %p140
      %s143 = sadd.s32 %s142, 1
      %p146 = scmp.eq.s32.totalorder %s24, 1
      %p147 = scmp.ne.s32.totalorder %s142, %s144
      %p148 = scmp.eq.s32.totalorder %s24, 0
      %p149 = por %p147, %p148
      %p150 = scmp.ne.s32.totalorder %s142, %s144
      %p151 = scmp.eq.s32.totalorder %s29, 1
      %p152 = por %p150, %p151
      %p153 = scmp.ne.s32.totalorder %s144, %s145
      %p154 = scmp.eq.s32.totalorder %s29, 0
      %p155 = por %p153, %p154
      %p156 = scmp.ne.s32.totalorder %s144, %s145
      %p157 = scmp.eq.s32.totalorder %s30, 1
      %p158 = por %p156, %p157
      %p160 = scmp.ne.s32.totalorder %s145, %s159
      %p161 = scmp.eq.s32.totalorder %s30, 0
      %p162 = por %p160, %p161
      %s164 = sadd.s32 %s163, 1
      %p167 = scmp.eq.s32.totalorder %s24, 1
      %p168 = scmp.ne.s32.totalorder %s163, %s165
      %p169 = scmp.eq.s32.totalorder %s24, 0
      %p170 = por %p168, %p169
      %p171 = scmp.ne.s32.totalorder %s163, %s165
      %p172 = scmp.eq.s32.totalorder %s29, 1
      %p173 = por %p171, %p172
      %p174 = scmp.ne.s32.totalorder %s165, %s166
      %p175 = scmp.eq.s32.totalorder %s29, 0
      %p176 = por %p174, %p175
      %p177 = scmp.ne.s32.totalorder %s165, %s166
      %p178 = scmp.eq.s32.totalorder %s30, 1
      %p179 = por %p177, %p178
      %p181 = scmp.ne.s32.totalorder %s166, %s180
      %p182 = scmp.eq.s32.totalorder %s30, 0
      %p183 = por %p181, %p182
      %s185 = sadd.s32 %s184, 1
      %p188 = scmp.eq.s32.totalorder %s24, 1
      %p189 = scmp.ne.s32.totalorder %s184, %s186
      %p190 = scmp.eq.s32.totalorder %s24, 0
      %p191 = por %p189, %p190
      %p192 = scmp.ne.s32.totalorder %s184, %s186
      %p193 = scmp.eq.s32.totalorder %s29, 1
      %p194 = por %p192, %p193
      %p195 = scmp.ne.s32.totalorder %s186, %s187
      %p196 = scmp.eq.s32.totalorder %s29, 0
      %p197 = por %p195, %p196
      %p198 = scmp.ne.s32.totalorder %s186, %s187
      %p199 = scmp.eq.s32.totalorder %s30, 1
      %p200 = por %p198, %p199
      %p202 = scmp.ne.s32.totalorder %s187, %s201
      %p203 = scmp.eq.s32.totalorder %s30, 0
      %p204 = por %p202, %p203
      %s206 = sadd.s32 %s205, 1
      %p209 = scmp.eq.s32.totalorder %s24, 1
      %p210 = scmp.ne.s32.totalorder %s205, %s207
      %p211 = scmp.eq.s32.totalorder %s24, 0
      %p212 = por %p210, %p211
      %p213 = scmp.ne.s32.totalorder %s205, %s207
      %p214 = scmp.eq.s32.totalorder %s29, 1
      %p215 = por %p213, %p214
      %p216 = scmp.ne.s32.totalorder %s207, %s208
      %p217 = scmp.eq.s32.totalorder %s29, 0
      %p218 = por %p216, %p217
      %p219 = scmp.ne.s32.totalorder %s207, %s208
      %p220 = scmp.eq.s32.totalorder %s30, 1
      %p221 = por %p219, %p220
      %p223 = scmp.ne.s32.totalorder %s208, %s222
      %p224 = scmp.eq.s32.totalorder %s30, 0
      %p225 = por %p223, %p224
      %s227 = sadd.s32 %s226, 1
      %p230 = scmp.eq.s32.totalorder %s24, 1
      %p231 = scmp.ne.s32.totalorder %s226, %s228
      %p232 = scmp.eq.s32.totalorder %s24, 0
      %p233 = por %p231, %p232
      %p234 = scmp.ne.s32.totalorder %s226, %s228
      %p235 = scmp.eq.s32.totalorder %s29, 1
      %p236 = por %p234, %p235
      %p237 = scmp.ne.s32.totalorder %s228, %s229
      %p238 = scmp.eq.s32.totalorder %s29, 0
      %p239 = por %p237, %p238
      %p240 = scmp.ne.s32.totalorder %s228, %s229
      %p241 = scmp.eq.s32.totalorder %s30, 1
      %p242 = por %p240, %p241
      %p244 = scmp.ne.s32.totalorder %s229, %s243
      %p245 = scmp.eq.s32.totalorder %s30, 0
      %p246 = por %p244, %p245
      %s248 = sadd.s32 %s247, 1
      %p251 = scmp.eq.s32.totalorder %s24, 1
      %p252 = scmp.ne.s32.totalorder %s247, %s249
      %p253 = scmp.eq.s32.totalorder %s24, 0
      %p254 = por %p252, %p253
      %p255 = scmp.ne.s32.totalorder %s247, %s249
      %p256 = scmp.eq.s32.totalorder %s29, 1
      %p257 = por %p255, %p256
      %p258 = scmp.ne.s32.totalorder %s249, %s250
      %p259 = scmp.eq.s32.totalorder %s29, 0
      %p260 = por %p258, %p259
      %p261 = scmp.ne.s32.totalorder %s249, %s250
      %p262 = scmp.eq.s32.totalorder %s30, 1
      %p263 = por %p261, %p262
      %p265 = scmp.ne.s32.totalorder %s250, %s264
      %p266 = scmp.eq.s32.totalorder %s30, 0
      %p267 = por %p265, %p266
      %s269 = sadd.s32 %s268, 1
      %p272 = scmp.eq.s32.totalorder %s24, 1
      %p273 = scmp.ne.s32.totalorder %s268, %s270
      %p274 = scmp.eq.s32.totalorder %s24, 0
      %p275 = por %p273, %p274
      %p276 = scmp.ne.s32.totalorder %s268, %s270
      %p277 = scmp.eq.s32.totalorder %s29, 1
      %p278 = por %p276, %p277
      %p279 = scmp.ne.s32.totalorder %s270, %s271
      %p280 = scmp.eq.s32.totalorder %s29, 0
      %p281 = por %p279, %p280
      %p282 = scmp.ne.s32.totalorder %s270, %s271
      %p283 = scmp.eq.s32.totalorder %s30, 1
      %p284 = por %p282, %p283
      %p286 = scmp.ne.s32.totalorder %s271, %s285
      %p287 = scmp.eq.s32.totalorder %s30, 0
      %p288 = por %p286, %p287
      %s290 = sadd.s32 %s289, 1
      %p293 = scmp.eq.s32.totalorder %s24, 1
      %p294 = scmp.ne.s32.totalorder %s289, %s291
      %p295 = scmp.eq.s32.totalorder %s24, 0
      %p296 = por %p294, %p295
      %p297 = scmp.ne.s32.totalorder %s289, %s291
      %p298 = scmp.eq.s32.totalorder %s29, 1
      %p299 = por %p297, %p298
      %p300 = scmp.ne.s32.totalorder %s291, %s292
      %p301 = scmp.eq.s32.totalorder %s29, 0
      %p302 = por %p300, %p301
      %p303 = scmp.ne.s32.totalorder %s291, %s292
      %p304 = scmp.eq.s32.totalorder %s30, 1
      %p305 = por %p303, %p304
      %p307 = scmp.ne.s32.totalorder %s292, %s306
      %p308 = scmp.eq.s32.totalorder %s30, 0
      %p309 = por %p307, %p308
      %s311 = sadd.s32 %s310, 1
      %p314 = scmp.eq.s32.totalorder %s24, 1
      %p315 = scmp.ne.s32.totalorder %s310, %s312
      %p316 = scmp.eq.s32.totalorder %s24, 0
      %p317 = por %p315, %p316
      %p318 = scmp.ne.s32.totalorder %s310, %s312
      %p319 = scmp.eq.s32.totalorder %s29, 1
      %p320 = por %p318, %p319
      %p321 = scmp.ne.s32.totalorder %s312, %s313
      %p322 = scmp.eq.s32.totalorder %s29, 0
      %p323 = por %p321, %p322
      %p324 = scmp.ne.s32.totalorder %s312, %s313
      %p325 = scmp.eq.s32.totalorder %s30, 1
      %p326 = por %p324, %p325
      %p328 = scmp.ne.s32.totalorder %s313, %s327
      %p329 = scmp.eq.s32.totalorder %s30, 0
      %p330 = por %p328, %p329
      %s332 = sadd.s32 %s331, 1
      %p335 = scmp.eq.s32.totalorder %s24, 1
      %p336 = scmp.ne.s32.totalorder %s331, %s333
      %p337 = scmp.eq.s32.totalorder %s24, 0
      %p338 = por %p336, %p337
      %p339 = scmp.ne.s32.totalorder %s331, %s333
      %p340 = scmp.eq.s32.totalorder %s29, 1
      %p341 = por %p339, %p340
      %p342 = scmp.ne.s32.totalorder %s333, %s334
      %p343 = scmp.eq.s32.totalorder %s29, 0
      %p344 = por %p342, %p343
      %p345 = scmp.ne.s32.totalorder %s333, %s334
      %p346 = scmp.eq.s32.totalorder %s30, 1
      %p347 = por %p345, %p346
      %p349 = scmp.ne.s32.totalorder %s334, %s348
      %p350 = scmp.eq.s32.totalorder %s30, 0
      %p351 = por %p349, %p350
      %s353 = sadd.s32 %s352, 1
      %p356 = scmp.eq.s32.totalorder %s24, 1
      %p357 = scmp.ne.s32.totalorder %s352, %s354
      %p358 = scmp.eq.s32.totalorder %s24, 0
      %p359 = por %p357, %p358
      %p360 = scmp.ne.s32.totalorder %s352, %s354
      %p361 = scmp.eq.s32.totalorder %s29, 1
      %p362 = por %p360, %p361
      %p363 = scmp.ne.s32.totalorder %s354, %s355
      %p364 = scmp.eq.s32.totalorder %s29, 0
      %p365 = por %p363, %p364
      %p366 = scmp.ne.s32.totalorder %s354, %s355
      %p367 = scmp.eq.s32.totalorder %s30, 1
      %p368 = por %p366, %p367
      %p370 = scmp.ne.s32.totalorder %s355, %s369
      %p371 = scmp.eq.s32.totalorder %s30, 0
      %p372 = por %p370, %p371
      %s373 = ssub.s32 %s24, %s31
      %p374 = scmp.eq.s32.totalorder %s373, 0
      %s376 = sadd.s32 %s375, 1
      %s377 = scalar_select %p374, %s375, %s376
      %p380 = pneg %p374
      %p381 = scmp.eq.s32.totalorder %s24, 1
      %p382 = por %p380, %p381
      %p383 = scmp.ne.s32.totalorder %s375, %s378
      %p384 = scmp.eq.s32.totalorder %s24, 0
      %p385 = por %p383, %p384
      %p386 = scmp.ne.s32.totalorder %s375, %s378
      %p387 = scmp.eq.s32.totalorder %s29, 1
      %p388 = por %p386, %p387
      %p389 = scmp.ne.s32.totalorder %s378, %s379
      %p390 = scmp.eq.s32.totalorder %s29, 0
      %p391 = por %p389, %p390
      %p392 = scmp.ne.s32.totalorder %s378, %s379
      %p393 = scmp.eq.s32.totalorder %s30, 1
      %p394 = por %p392, %p393
      %p396 = scmp.ne.s32.totalorder %s379, %s395
      %p397 = scmp.eq.s32.totalorder %s30, 0
      %p398 = por %p396, %p397
      %p399 = scmp.le.s32.totalorder 1, %s24
      %p400 = scmp.lt.s32.totalorder %s24, 3
      %p401 = pnand %p399, %p400
      %p402 = pneg %p401
      // Predicated region
      $region9: #{tpu_custom_call.1} parent=5 // pred_check
        _
      $region10: #{tpu_custom_call.1} parent=5 // pred_check_branch
        %404 = sbr.rel (%p401) target = $region12
      $region11: #{tpu_custom_call.1} parent=5 // pred_region
        %s405 = ssub.s32 %s24, 1
        // Predicated region
        $region13: #{tpu_custom_call.1} parent=11 // pred_check
          %p406 = pneg %p71
        $region14: #{tpu_custom_call.1} parent=11 // pred_check_branch
          %408 = sbr.rel (%p406) target = $region16
        $region15: #{tpu_custom_call.1} parent=11 // pred_region
          %s410 = ssub.s32 64, 64
          %411 = vsyncadd [#allocation3], %s410
          %s413 = sshll.u32 [#allocation2], 4
          %s414 = int_to_ptr.vmem [resolvable:$true] %s413
          %416 = dma.hbm_to_vmem [thread:$0]  %s1, 64, %s414, [#allocation3]
        $region16: #{tpu_custom_call.1} parent=11 // pred_fallthru
          _
        // Predicated region
        $region17: #{tpu_custom_call.1} parent=11 // pred_check
          %p417 = pneg %p92
        $region18: #{tpu_custom_call.1} parent=11 // pred_check_branch
          %419 = sbr.rel (%p417) target = $region20
        $region19: #{tpu_custom_call.1} parent=11 // pred_region
          _
        $region20: #{tpu_custom_call.1} parent=11 // pred_fallthru
          _
        // Predicated region
        $region21: #{tpu_custom_call.1} parent=11 // pred_check
          %p420 = pneg %p113
        $region22: #{tpu_custom_call.1} parent=11 // pred_check_branch
          %422 = sbr.rel (%p420) target = $region24
        $region23: #{tpu_custom_call.1} parent=11 // pred_region
          _
        $region24: #{tpu_custom_call.1} parent=11 // pred_fallthru
          _
        // Predicated region
        $region25: #{tpu_custom_call.1} parent=11 // pred_check
          %p423 = pneg %p134
        $region26: #{tpu_custom_call.1} parent=11 // pred_check_branch
          %425 = sbr.rel (%p423) target = $region28
        $region27: #{tpu_custom_call.1} parent=11 // pred_region
          _
        $region28: #{tpu_custom_call.1} parent=11 // pred_fallthru
          _
        // Predicated region
        $region29: #{tpu_custom_call.1} parent=11 // pred_check
          %p426 = pneg %p155
        $region30: #{tpu_custom_call.1} parent=11 // pred_check_branch
          %428 = sbr.rel (%p426) target = $region32
        $region31: #{tpu_custom_call.1} parent=11 // pred_region
          _
        $region32: #{tpu_custom_call.1} parent=11 // pred_fallthru
          _
        // Predicated region
        $region33: #{tpu_custom_call.1} parent=11 // pred_check
          %p429 = pneg %p176
        $region34: #{tpu_custom_call.1} parent=11 // pred_check_branch
          %431 = sbr.rel (%p429) target = $region36
        $region35: #{tpu_custom_call.1} parent=11 // pred_region
          %s433 = ssub.s32 16, 16
          %434 = vsyncadd [#allocation5], %s433
          %s436 = sshll.u32 [#allocation4], 4
          %s437 = int_to_ptr.vmem [resolvable:$true] %s436
          %439 = dma.hbm_to_vmem [thread:$0]  %s6, 16, %s437, [#allocation5]
        $region36: #{tpu_custom_call.1} parent=11 // pred_fallthru
          _
        // Predicated region
        $region37: #{tpu_custom_call.1} parent=11 // pred_check
          %p440 = pneg %p197
        $region38: #{tpu_custom_call.1} parent=11 // pred_check_branch
          %442 = sbr.rel (%p440) target = $region40
        $region39: #{tpu_custom_call.1} parent=11 // pred_region
          _
        $region40: #{tpu_custom_call.1} parent=11 // pred_fallthru
          _
        // Predicated region
        $region41: #{tpu_custom_call.1} parent=11 // pred_check
          %p443 = pneg %p218
        $region42: #{tpu_custom_call.1} parent=11 // pred_check_branch
          %445 = sbr.rel (%p443) target = $region44
        $region43: #{tpu_custom_call.1} parent=11 // pred_region
          _
        $region44: #{tpu_custom_call.1} parent=11 // pred_fallthru
          _
        // Predicated region
        $region45: #{tpu_custom_call.1} parent=11 // pred_check
          %p446 = pneg %p239
        $region46: #{tpu_custom_call.1} parent=11 // pred_check_branch
          %448 = sbr.rel (%p446) target = $region48
        $region47: #{tpu_custom_call.1} parent=11 // pred_region
          _
        $region48: #{tpu_custom_call.1} parent=11 // pred_fallthru
          _
        // Predicated region
        $region49: #{tpu_custom_call.1} parent=11 // pred_check
          %p449 = pneg %p260
        $region50: #{tpu_custom_call.1} parent=11 // pred_check_branch
          %451 = sbr.rel (%p449) target = $region52
        $region51: #{tpu_custom_call.1} parent=11 // pred_region
          _
        $region52: #{tpu_custom_call.1} parent=11 // pred_fallthru
          _
        // Predicated region
        $region53: #{tpu_custom_call.1} parent=11 // pred_check
          %p452 = pneg %p281
        $region54: #{tpu_custom_call.1} parent=11 // pred_check_branch
          %454 = sbr.rel (%p452) target = $region56
        $region55: #{tpu_custom_call.1} parent=11 // pred_region
          _
        $region56: #{tpu_custom_call.1} parent=11 // pred_fallthru
          _
        // Predicated region
        $region57: #{tpu_custom_call.1} parent=11 // pred_check
          %p455 = pneg %p302
        $region58: #{tpu_custom_call.1} parent=11 // pred_check_branch
          %457 = sbr.rel (%p455) target = $region60
        $region59: #{tpu_custom_call.1} parent=11 // pred_region
          %s459 = ssub.s32 512, 512
          %460 = vsyncadd [#allocation5], %s459
          %s461 = sshll.u32 [#allocation6], 4
          %s462 = int_to_ptr.vmem [resolvable:$true] %s461
          %467 = dma.hbm_to_vmem [thread:$0]  %s12, 512, %s462, [#allocation5], 64, 64, 4
        $region60: #{tpu_custom_call.1} parent=11 // pred_fallthru
          _
        // Predicated region
        $region61: #{tpu_custom_call.1} parent=11 // pred_check
          %p468 = pneg %p323
        $region62: #{tpu_custom_call.1} parent=11 // pred_check_branch
          %470 = sbr.rel (%p468) target = $region64
        $region63: #{tpu_custom_call.1} parent=11 // pred_region
          _
        $region64: #{tpu_custom_call.1} parent=11 // pred_fallthru
          _
        // Predicated region
        $region65: #{tpu_custom_call.1} parent=11 // pred_check
          %p471 = pneg %p344
        $region66: #{tpu_custom_call.1} parent=11 // pred_check_branch
          %473 = sbr.rel (%p471) target = $region68
        $region67: #{tpu_custom_call.1} parent=11 // pred_region
          _
        $region68: #{tpu_custom_call.1} parent=11 // pred_fallthru
          _
        // Predicated region
        $region69: #{tpu_custom_call.1} parent=11 // pred_check
          %p474 = pneg %p365
        $region70: #{tpu_custom_call.1} parent=11 // pred_check_branch
          %476 = sbr.rel (%p474) target = $region72
        $region71: #{tpu_custom_call.1} parent=11 // pred_region
          _
        $region72: #{tpu_custom_call.1} parent=11 // pred_fallthru
          _
      $region12: #{tpu_custom_call.1} parent=5 // pred_fallthru
        _
      %p477 = scmp.lt.s32.totalorder %s24, 2
      // Predicated region
      $region73: #{tpu_custom_call.1} parent=5 // pred_check
        %p478 = pneg %p477
      $region74: #{tpu_custom_call.1} parent=5 // pred_check_branch
        %480 = sbr.rel (%p478) target = $region76
      $region75: #{tpu_custom_call.1} parent=5 // pred_region
        // Predicated region
        $region77: #{tpu_custom_call.1} parent=75 // pred_check
          %p481 = pneg %p44
        $region78: #{tpu_custom_call.1} parent=75 // pred_check_branch
          %483 = sbr.rel (%p481) target = $region80
        $region79: #{tpu_custom_call.1} parent=75 // pred_region
          %s484 = smul.u32 32, %s24
          %p485 = scmp.lt.s32.totalorder %s484, 63
          %s486 = scalar_select %p485, %s484, 63
          %s487 = smul.addr %s486, 4
          %s488 = scalar_lea.vmem %s0, %s487
          %s489 = smul.u32 32, %s24
        $region80: #{tpu_custom_call.1} parent=75 // pred_fallthru
          _
      $region76: #{tpu_custom_call.1} parent=5 // pred_fallthru
        _
      %p490 = scmp.le.s32.totalorder 1, %s24
      %p491 = scmp.lt.s32.totalorder %s24, 3
      %p492 = pnand %p490, %p491
      %p493 = pneg %p492
      // Predicated region
      $region81: #{tpu_custom_call.1} parent=5 // pred_check
        _
      $region82: #{tpu_custom_call.1} parent=5 // pred_check_branch
        %495 = sbr.rel (%p492) target = $region84
      $region83: #{tpu_custom_call.1} parent=5 // pred_region
        %s496 = ssub.s32 %s24, 1
        // Predicated region
        $region85: #{tpu_custom_call.1} parent=83 // pred_check
          %p497 = pneg %p71
        $region86: #{tpu_custom_call.1} parent=83 // pred_check_branch
          %499 = sbr.rel (%p497) target = $region88
        $region87: #{tpu_custom_call.1} parent=83 // pred_region
          %500 = dma.done [#allocation3], 64
        $region88: #{tpu_custom_call.1} parent=83 // pred_fallthru
          _
        // Predicated region
        $region89: #{tpu_custom_call.1} parent=83 // pred_check
          %p501 = pneg %p176
        $region90: #{tpu_custom_call.1} parent=83 // pred_check_branch
          %503 = sbr.rel (%p501) target = $region92
        $region91: #{tpu_custom_call.1} parent=83 // pred_region
          %504 = dma.done [#allocation5], 16
        $region92: #{tpu_custom_call.1} parent=83 // pred_fallthru
          _
        // Predicated region
        $region93: #{tpu_custom_call.1} parent=83 // pred_check
          %p505 = pneg %p302
        $region94: #{tpu_custom_call.1} parent=83 // pred_check_branch
          %507 = sbr.rel (%p505) target = $region96
        $region95: #{tpu_custom_call.1} parent=83 // pred_region
          %508 = dma.done [#allocation5], 512
        $region96: #{tpu_custom_call.1} parent=83 // pred_fallthru
          _
        %s509 = smul.u32 32, %s29
        %p510 = scmp.lt.s32.totalorder %s509, 63
        %s511 = scalar_select %p510, %s509, 63
        %s512 = smul.addr %s511, 4
        %s513 = scalar_lea.vmem %s0, %s512
        %p514 = pneg %p50
        %p515 = pneg %p47
        %p516 = pneg %p71
        %p517 = pneg %p68
        %p518 = pneg %p92
        %p519 = pneg %p89
        %p520 = pneg %p113
        %p521 = pneg %p110
        %p522 = pneg %p134
        %p523 = pneg %p131
        %p524 = pneg %p155
        %p525 = pneg %p152
        %p526 = pneg %p176
        %p527 = pneg %p173
        %p528 = pneg %p197
        %p529 = pneg %p194
        %p530 = pneg %p218
        %p531 = pneg %p215
        %p532 = pneg %p239
        %p533 = pneg %p236
        %p534 = pneg %p260
        %p535 = pneg %p257
        %p536 = pneg %p281
        %p537 = pneg %p278
        %p538 = pneg %p302
        %p539 = pneg %p299
        %p540 = pneg %p323
        %p541 = pneg %p320
        %p542 = pneg %p344
        %p543 = pneg %p341
        %p544 = pneg %p365
        %p545 = pneg %p362
        %p546 = pneg %p391
        %p547 = pneg %p388
        %s548 = smul.u32 32, %s29
        %p549 = scmp.lt.s32.totalorder %s548, 63
        %s550 = scalar_select %p549, %s548, 63
        %s551 = smul.addr %s550, 4
        %s552 = scalar_lea.vmem %s16, %s551
        %s553 = smul.u32 32, %s29
        %p554 = scmp.lt.s32.totalorder %s553, 63
        %s555 = scalar_select %p554, %s553, 63
        %s556 = smul.addr %s555, 4
        %s557 = scalar_lea.vmem %s0, %s556
        %s558 = smul.u32 32, %s29
        %s559 = smul.u32 32, %s29
        %p560 = scmp.lt.s32.totalorder %s559, 63
        %s561 = scalar_select %p560, %s559, 63
        %s562 = smul.addr %s561, 4
        %s563 = scalar_lea.vmem %s16, %s562
        %s564 = smul.u32 32, %s29
        %v566 = vld [vmem:[%s557] sm:$0xf]
        %v567 = vld [vmem:[%s557 + $0x4] sm:$0xf]
        %v568 = vld [vmem:[%s557 + $0x8] sm:$0xf]
        %v569 = vld [vmem:[%s557 + $0xc] sm:$0xf]
        %v570 = vld [vmem:[%s557 + $0x10] sm:$0xf]
        %v571 = vld [vmem:[%s557 + $0x14] sm:$0xf]
        %v572 = vld [vmem:[%s557 + $0x18] sm:$0xf]
        %v573 = vld [vmem:[%s557 + $0x1c] sm:$0xf]
        %v574 = vld [vmem:[%s557 + $0x20] sm:$0xf]
        %v575 = vld [vmem:[%s557 + $0x24] sm:$0xf]
        %v576 = vld [vmem:[%s557 + $0x28] sm:$0xf]
        %v577 = vld [vmem:[%s557 + $0x2c] sm:$0xf]
        %v578 = vld [vmem:[%s557 + $0x30] sm:$0xf]
        %v579 = vld [vmem:[%s557 + $0x34] sm:$0xf]
        %v580 = vld [vmem:[%s557 + $0x38] sm:$0xf]
        %v581 = vld [vmem:[%s557 + $0x3c] sm:$0xf]
        %v582 = vld [vmem:[%s557 + $0x40] sm:$0xf]
        %v583 = vld [vmem:[%s557 + $0x44] sm:$0xf]
        %v584 = vld [vmem:[%s557 + $0x48] sm:$0xf]
        %v585 = vld [vmem:[%s557 + $0x4c] sm:$0xf]
        %v586 = vld [vmem:[%s557 + $0x50] sm:$0xf]
        %v587 = vld [vmem:[%s557 + $0x54] sm:$0xf]
        %v588 = vld [vmem:[%s557 + $0x58] sm:$0xf]
        %v589 = vld [vmem:[%s557 + $0x5c] sm:$0xf]
        %v590 = vld [vmem:[%s557 + $0x60] sm:$0xf]
        %v591 = vld [vmem:[%s557 + $0x64] sm:$0xf]
        %v592 = vld [vmem:[%s557 + $0x68] sm:$0xf]
        %v593 = vld [vmem:[%s557 + $0x6c] sm:$0xf]
        %v594 = vld [vmem:[%s557 + $0x70] sm:$0xf]
        %v595 = vld [vmem:[%s557 + $0x74] sm:$0xf]
        %v596 = vld [vmem:[%s557 + $0x78] sm:$0xf]
        %v597 = vld [vmem:[%s557 + $0x7c] sm:$0xf]
        %v598 = vunpack.c.l.bf16 %v566
        %v599 = vunpack.c.l.bf16 %v567
        %v600 = vunpack.c.l.bf16 %v568
        %v601 = vunpack.c.l.bf16 %v569
        %v602 = vunpack.c.l.bf16 %v570
        %v603 = vunpack.c.l.bf16 %v571
        %v604 = vunpack.c.l.bf16 %v572
        %v605 = vunpack.c.l.bf16 %v573
        %v606 = vunpack.c.l.bf16 %v574
        %v607 = vunpack.c.l.bf16 %v575
        %v608 = vunpack.c.l.bf16 %v576
        %v609 = vunpack.c.l.bf16 %v577
        %v610 = vunpack.c.l.bf16 %v578
        %v611 = vunpack.c.l.bf16 %v579
        %v612 = vunpack.c.l.bf16 %v580
        %v613 = vunpack.c.l.bf16 %v581
        %v614 = vunpack.c.l.bf16 %v582
        %v615 = vunpack.c.l.bf16 %v583
        %v616 = vunpack.c.l.bf16 %v584
        %v617 = vunpack.c.l.bf16 %v585
        %v618 = vunpack.c.l.bf16 %v586
        %v619 = vunpack.c.l.bf16 %v587
        %v620 = vunpack.c.l.bf16 %v588
        %v621 = vunpack.c.l.bf16 %v589
        %v622 = vunpack.c.l.bf16 %v590
        %v623 = vunpack.c.l.bf16 %v591
        %v624 = vunpack.c.l.bf16 %v592
        %v625 = vunpack.c.l.bf16 %v593
        %v626 = vunpack.c.l.bf16 %v594
        %v627 = vunpack.c.l.bf16 %v595
        %v628 = vunpack.c.l.bf16 %v596
        %v629 = vunpack.c.l.bf16 %v597
        %v630 = vld [vmem:[%s2] sm:$0x1]
        %vm631 = vcmp.ne.f32.partialorder %v598, -100.0
        %vm632 = vcmp.ne.f32.partialorder %v599, -100.0
        %vm633 = vcmp.ne.f32.partialorder %v600, -100.0
        %vm634 = vcmp.ne.f32.partialorder %v601, -100.0
        %vm635 = vcmp.ne.f32.partialorder %v602, -100.0
        %vm636 = vcmp.ne.f32.partialorder %v603, -100.0
        %vm637 = vcmp.ne.f32.partialorder %v604, -100.0
        %vm638 = vcmp.ne.f32.partialorder %v605, -100.0
        %vm639 = vcmp.ne.f32.partialorder %v606, -100.0
        %vm640 = vcmp.ne.f32.partialorder %v607, -100.0
        %vm641 = vcmp.ne.f32.partialorder %v608, -100.0
        %vm642 = vcmp.ne.f32.partialorder %v609, -100.0
        %vm643 = vcmp.ne.f32.partialorder %v610, -100.0
        %vm644 = vcmp.ne.f32.partialorder %v611, -100.0
        %vm645 = vcmp.ne.f32.partialorder %v612, -100.0
        %vm646 = vcmp.ne.f32.partialorder %v613, -100.0
        %vm647 = vcmp.ne.f32.partialorder %v614, -100.0
        %vm648 = vcmp.ne.f32.partialorder %v615, -100.0
        %vm649 = vcmp.ne.f32.partialorder %v616, -100.0
        %vm650 = vcmp.ne.f32.partialorder %v617, -100.0
        %vm651 = vcmp.ne.f32.partialorder %v618, -100.0
        %vm652 = vcmp.ne.f32.partialorder %v619, -100.0
        %vm653 = vcmp.ne.f32.partialorder %v620, -100.0
        %vm654 = vcmp.ne.f32.partialorder %v621, -100.0
        %vm655 = vcmp.ne.f32.partialorder %v622, -100.0
        %vm656 = vcmp.ne.f32.partialorder %v623, -100.0
        %vm657 = vcmp.ne.f32.partialorder %v624, -100.0
        %vm658 = vcmp.ne.f32.partialorder %v625, -100.0
        %vm659 = vcmp.ne.f32.partialorder %v626, -100.0
        %vm660 = vcmp.ne.f32.partialorder %v627, -100.0
        %vm661 = vcmp.ne.f32.partialorder %v628, -100.0
        %vm662 = vcmp.ne.f32.partialorder %v629, -100.0
        %v663 = vld [vmem:[#allocation2] sm:$0x1]
        %665 = vset.pattern.permute.xlu0 0
        %666 = vperm.xlu0 %665, %v598
        %v667 = vpop.permute.xlu0 %666
        %670 = vset.pattern.permute.xlu0 0
        %671 = vperm.xlu0 %670, %v599
        %v672 = vpop.permute.xlu0 %671
        %675 = vset.pattern.permute.xlu0 0
        %676 = vperm.xlu0 %675, %v600
        %v677 = vpop.permute.xlu0 %676
        %680 = vset.pattern.permute.xlu0 0
        %681 = vperm.xlu0 %680, %v601
        %v682 = vpop.permute.xlu0 %681
        %685 = vset.pattern.permute.xlu0 0
        %686 = vperm.xlu0 %685, %v602
        %v687 = vpop.permute.xlu0 %686
        %690 = vset.pattern.permute.xlu0 0
        %691 = vperm.xlu0 %690, %v603
        %v692 = vpop.permute.xlu0 %691
        %695 = vset.pattern.permute.xlu0 0
        %696 = vperm.xlu0 %695, %v604
        %v697 = vpop.permute.xlu0 %696
        %700 = vset.pattern.permute.xlu0 0
        %701 = vperm.xlu0 %700, %v605
        %v702 = vpop.permute.xlu0 %701
        %705 = vset.pattern.permute.xlu0 0
        %706 = vperm.xlu0 %705, %v606
        %v707 = vpop.permute.xlu0 %706
        %710 = vset.pattern.permute.xlu0 0
        %711 = vperm.xlu0 %710, %v607
        %v712 = vpop.permute.xlu0 %711
        %715 = vset.pattern.permute.xlu0 0
        %716 = vperm.xlu0 %715, %v608
        %v717 = vpop.permute.xlu0 %716
        %720 = vset.pattern.permute.xlu0 0
        %721 = vperm.xlu0 %720, %v609
        %v722 = vpop.permute.xlu0 %721
        %725 = vset.pattern.permute.xlu0 0
        %726 = vperm.xlu0 %725, %v610
        %v727 = vpop.permute.xlu0 %726
        %730 = vset.pattern.permute.xlu0 0
        %731 = vperm.xlu0 %730, %v611
        %v732 = vpop.permute.xlu0 %731
        %735 = vset.pattern.permute.xlu0 0
        %736 = vperm.xlu0 %735, %v612
        %v737 = vpop.permute.xlu0 %736
        %740 = vset.pattern.permute.xlu0 0
        %741 = vperm.xlu0 %740, %v613
        %v742 = vpop.permute.xlu0 %741
        %745 = vset.pattern.permute.xlu0 0
        %746 = vperm.xlu0 %745, %v614
        %v747 = vpop.permute.xlu0 %746
        %750 = vset.pattern.permute.xlu0 0
        %751 = vperm.xlu0 %750, %v615
        %v752 = vpop.permute.xlu0 %751
        %755 = vset.pattern.permute.xlu0 0
        %756 = vperm.xlu0 %755, %v616
        %v757 = vpop.permute.xlu0 %756
        %760 = vset.pattern.permute.xlu0 0
        %761 = vperm.xlu0 %760, %v617
        %v762 = vpop.permute.xlu0 %761
        %765 = vset.pattern.permute.xlu0 0
        %766 = vperm.xlu0 %765, %v618
        %v767 = vpop.permute.xlu0 %766
        %770 = vset.pattern.permute.xlu0 0
        %771 = vperm.xlu0 %770, %v619
        %v772 = vpop.permute.xlu0 %771
        %775 = vset.pattern.permute.xlu0 0
        %776 = vperm.xlu0 %775, %v620
        %v777 = vpop.permute.xlu0 %776
        %780 = vset.pattern.permute.xlu0 0
        %781 = vperm.xlu0 %780, %v621
        %v782 = vpop.permute.xlu0 %781
        %785 = vset.pattern.permute.xlu0 0
        %786 = vperm.xlu0 %785, %v622
        %v787 = vpop.permute.xlu0 %786
        %790 = vset.pattern.permute.xlu0 0
        %791 = vperm.xlu0 %790, %v623
        %v792 = vpop.permute.xlu0 %791
        %795 = vset.pattern.permute.xlu0 0
        %796 = vperm.xlu0 %795, %v624
        %v797 = vpop.permute.xlu0 %796
        %800 = vset.pattern.permute.xlu0 0
        %801 = vperm.xlu0 %800, %v625
        %v802 = vpop.permute.xlu0 %801
        %805 = vset.pattern.permute.xlu0 0
        %806 = vperm.xlu0 %805, %v626
        %v807 = vpop.permute.xlu0 %806
        %810 = vset.pattern.permute.xlu0 0
        %811 = vperm.xlu0 %810, %v627
        %v812 = vpop.permute.xlu0 %811
        %815 = vset.pattern.permute.xlu0 0
        %816 = vperm.xlu0 %815, %v628
        %v817 = vpop.permute.xlu0 %816
        %820 = vset.pattern.permute.xlu0 0
        %821 = vperm.xlu0 %820, %v629
        %v822 = vpop.permute.xlu0 %821
        %v824 = vlaneseq
        %v825 = vshrl.u32 %v824, 7
        %v826 = vsub.s32 0, %v825
        %v827 = vrot.slane %v663, %v826
        %v828 = vmul.f32 %v667, %v827
        %v829 = vmul.f32 %v672, %v827
        %v830 = vmul.f32 %v677, %v827
        %v831 = vmul.f32 %v682, %v827
        %v832 = vmul.f32 %v687, %v827
        %v833 = vmul.f32 %v692, %v827
        %v834 = vmul.f32 %v697, %v827
        %v835 = vmul.f32 %v702, %v827
        %v836 = vmul.f32 %v707, %v827
        %v837 = vmul.f32 %v712, %v827
        %v838 = vmul.f32 %v717, %v827
        %v839 = vmul.f32 %v722, %v827
        %v840 = vmul.f32 %v727, %v827
        %v841 = vmul.f32 %v732, %v827
        %v842 = vmul.f32 %v737, %v827
        %v843 = vmul.f32 %v742, %v827
        %v844 = vmul.f32 %v747, %v827
        %v845 = vmul.f32 %v752, %v827
        %v846 = vmul.f32 %v757, %v827
        %v847 = vmul.f32 %v762, %v827
        %v848 = vmul.f32 %v767, %v827
        %v849 = vmul.f32 %v772, %v827
        %v850 = vmul.f32 %v777, %v827
        %v851 = vmul.f32 %v782, %v827
        %v852 = vmul.f32 %v787, %v827
        %v853 = vmul.f32 %v792, %v827
        %v854 = vmul.f32 %v797, %v827
        %v855 = vmul.f32 %v802, %v827
        %v856 = vmul.f32 %v807, %v827
        %v857 = vmul.f32 %v812, %v827
        %v858 = vmul.f32 %v817, %v827
        %v859 = vmul.f32 %v822, %v827
        %v861 = vlaneseq
        %v862 = vshrl.u32 %v861, 7
        %v863 = vsub.s32 0, %v862
        %v864 = vrot.slane %v630, %v863
        %v866 = vadd.f32 %v864, %v828
        %v867 = vadd.f32 %v864, %v829
        %v868 = vadd.f32 %v864, %v830
        %v869 = vadd.f32 %v864, %v831
        %v870 = vadd.f32 %v864, %v832
        %v871 = vadd.f32 %v864, %v833
        %v872 = vadd.f32 %v864, %v834
        %v873 = vadd.f32 %v864, %v835
        %v874 = vadd.f32 %v864, %v836
        %v875 = vadd.f32 %v864, %v837
        %v876 = vadd.f32 %v864, %v838
        %v877 = vadd.f32 %v864, %v839
        %v878 = vadd.f32 %v864, %v840
        %v879 = vadd.f32 %v864, %v841
        %v880 = vadd.f32 %v864, %v842
        %v881 = vadd.f32 %v864, %v843
        %v882 = vadd.f32 %v864, %v844
        %v883 = vadd.f32 %v864, %v845
        %v884 = vadd.f32 %v864, %v846
        %v885 = vadd.f32 %v864, %v847
        %v886 = vadd.f32 %v864, %v848
        %v887 = vadd.f32 %v864, %v849
        %v888 = vadd.f32 %v864, %v850
        %v889 = vadd.f32 %v864, %v851
        %v890 = vadd.f32 %v864, %v852
        %v891 = vadd.f32 %v864, %v853
        %v892 = vadd.f32 %v864, %v854
        %v893 = vadd.f32 %v864, %v855
        %v894 = vadd.f32 %v864, %v856
        %v895 = vadd.f32 %v864, %v857
        %v896 = vadd.f32 %v864, %v858
        %v897 = vadd.f32 %v864, %v859
        %v898 = vsel %vm631, 1, 0
        %v899 = vsel %vm632, 1, 0
        %v900 = vsel %vm633, 1, 0
        %v901 = vsel %vm634, 1, 0
        %v902 = vsel %vm635, 1, 0
        %v903 = vsel %vm636, 1, 0
        %v904 = vsel %vm637, 1, 0
        %v905 = vsel %vm638, 1, 0
        %v906 = vsel %vm639, 1, 0
        %v907 = vsel %vm640, 1, 0
        %v908 = vsel %vm641, 1, 0
        %v909 = vsel %vm642, 1, 0
        %v910 = vsel %vm643, 1, 0
        %v911 = vsel %vm644, 1, 0
        %v912 = vsel %vm645, 1, 0
        %v913 = vsel %vm646, 1, 0
        %v914 = vsel %vm647, 1, 0
        %v915 = vsel %vm648, 1, 0
        %v916 = vsel %vm649, 1, 0
        %v917 = vsel %vm650, 1, 0
        %v918 = vsel %vm651, 1, 0
        %v919 = vsel %vm652, 1, 0
        %v920 = vsel %vm653, 1, 0
        %v921 = vsel %vm654, 1, 0
        %v922 = vsel %vm655, 1, 0
        %v923 = vsel %vm656, 1, 0
        %v924 = vsel %vm657, 1, 0
        %v925 = vsel %vm658, 1, 0
        %v926 = vsel %vm659, 1, 0
        %v927 = vsel %vm660, 1, 0
        %v928 = vsel %vm661, 1, 0
        %v929 = vsel %vm662, 1, 0
        %930 = vrot.lane.b32.xlu0 %v898, 127
        %v931 = vpop.permute.xlu0 %930
        %932 = vrot.lane.b32.xlu0 %v899, 127
        %v933 = vpop.permute.xlu0 %932
        %934 = vrot.lane.b32.xlu0 %v900, 127
        %v935 = vpop.permute.xlu0 %934
        %936 = vrot.lane.b32.xlu0 %v901, 127
        %v937 = vpop.permute.xlu0 %936
        %938 = vrot.lane.b32.xlu0 %v902, 127
        %v939 = vpop.permute.xlu0 %938
        %940 = vrot.lane.b32.xlu0 %v903, 127
        %v941 = vpop.permute.xlu0 %940
        %942 = vrot.lane.b32.xlu0 %v904, 127
        %v943 = vpop.permute.xlu0 %942
        %944 = vrot.lane.b32.xlu0 %v905, 127
        %v945 = vpop.permute.xlu0 %944
        %946 = vrot.lane.b32.xlu0 %v906, 127
        %v947 = vpop.permute.xlu0 %946
        %948 = vrot.lane.b32.xlu0 %v907, 127
        %v949 = vpop.permute.xlu0 %948
        %950 = vrot.lane.b32.xlu0 %v908, 127
        %v951 = vpop.permute.xlu0 %950
        %952 = vrot.lane.b32.xlu0 %v909, 127
        %v953 = vpop.permute.xlu0 %952
        %954 = vrot.lane.b32.xlu0 %v910, 127
        %v955 = vpop.permute.xlu0 %954
        %956 = vrot.lane.b32.xlu0 %v911, 127
        %v957 = vpop.permute.xlu0 %956
        %958 = vrot.lane.b32.xlu0 %v912, 127
        %v959 = vpop.permute.xlu0 %958
        %960 = vrot.lane.b32.xlu0 %v913, 127
        %v961 = vpop.permute.xlu0 %960
        %962 = vrot.lane.b32.xlu0 %v914, 127
        %v963 = vpop.permute.xlu0 %962
        %964 = vrot.lane.b32.xlu0 %v915, 127
        %v965 = vpop.permute.xlu0 %964
        %966 = vrot.lane.b32.xlu0 %v916, 127
        %v967 = vpop.permute.xlu0 %966
        %968 = vrot.lane.b32.xlu0 %v917, 127
        %v969 = vpop.permute.xlu0 %968
        %970 = vrot.lane.b32.xlu0 %v918, 127
        %v971 = vpop.permute.xlu0 %970
        %972 = vrot.lane.b32.xlu0 %v919, 127
        %v973 = vpop.permute.xlu0 %972
        %974 = vrot.lane.b32.xlu0 %v920, 127
        %v975 = vpop.permute.xlu0 %974
        %976 = vrot.lane.b32.xlu0 %v921, 127
        %v977 = vpop.permute.xlu0 %976
        %978 = vrot.lane.b32.xlu0 %v922, 127
        %v979 = vpop.permute.xlu0 %978
        %980 = vrot.lane.b32.xlu0 %v923, 127
        %v981 = vpop.permute.xlu0 %980
        %982 = vrot.lane.b32.xlu0 %v924, 127
        %v983 = vpop.permute.xlu0 %982
        %984 = vrot.lane.b32.xlu0 %v925, 127
        %v985 = vpop.permute.xlu0 %984
        %986 = vrot.lane.b32.xlu0 %v926, 127
        %v987 = vpop.permute.xlu0 %986
        %988 = vrot.lane.b32.xlu0 %v927, 127
        %v989 = vpop.permute.xlu0 %988
        %990 = vrot.lane.b32.xlu0 %v928, 127
        %v991 = vpop.permute.xlu0 %990
        %992 = vrot.lane.b32.xlu0 %v929, 127
        %v993 = vpop.permute.xlu0 %992
        %vm994 = vcmp.ne.s32.totalorder %v931, 0
        %vm995 = vcmp.ne.s32.totalorder %v933, 0
        %vm996 = vcmp.ne.s32.totalorder %v935, 0
        %vm997 = vcmp.ne.s32.totalorder %v937, 0
        %vm998 = vcmp.ne.s32.totalorder %v939, 0
        %vm999 = vcmp.ne.s32.totalorder %v941, 0
        %vm1000 = vcmp.ne.s32.totalorder %v943, 0
        %vm1001 = vcmp.ne.s32.totalorder %v945, 0
        %vm1002 = vcmp.ne.s32.totalorder %v947, 0
        %vm1003 = vcmp.ne.s32.totalorder %v949, 0
        %vm1004 = vcmp.ne.s32.totalorder %v951, 0
        %vm1005 = vcmp.ne.s32.totalorder %v953, 0
        %vm1006 = vcmp.ne.s32.totalorder %v955, 0
        %vm1007 = vcmp.ne.s32.totalorder %v957, 0
        %vm1008 = vcmp.ne.s32.totalorder %v959, 0
        %vm1009 = vcmp.ne.s32.totalorder %v961, 0
        %vm1010 = vcmp.ne.s32.totalorder %v963, 0
        %vm1011 = vcmp.ne.s32.totalorder %v965, 0
        %vm1012 = vcmp.ne.s32.totalorder %v967, 0
        %vm1013 = vcmp.ne.s32.totalorder %v969, 0
        %vm1014 = vcmp.ne.s32.totalorder %v971, 0
        %vm1015 = vcmp.ne.s32.totalorder %v973, 0
        %vm1016 = vcmp.ne.s32.totalorder %v975, 0
        %vm1017 = vcmp.ne.s32.totalorder %v977, 0
        %vm1018 = vcmp.ne.s32.totalorder %v979, 0
        %vm1019 = vcmp.ne.s32.totalorder %v981, 0
        %vm1020 = vcmp.ne.s32.totalorder %v983, 0
        %vm1021 = vcmp.ne.s32.totalorder %v985, 0
        %vm1022 = vcmp.ne.s32.totalorder %v987, 0
        %vm1023 = vcmp.ne.s32.totalorder %v989, 0
        %vm1024 = vcmp.ne.s32.totalorder %v991, 0
        %vm1025 = vcmp.ne.s32.totalorder %v993, 0
        %vm1026 = vmand %vm631, %vm994
        %vm1027 = vmand %vm632, %vm995
        %vm1028 = vmand %vm633, %vm996
        %vm1029 = vmand %vm634, %vm997
        %vm1030 = vmand %vm635, %vm998
        %vm1031 = vmand %vm636, %vm999
        %vm1032 = vmand %vm637, %vm1000
        %vm1033 = vmand %vm638, %vm1001
        %vm1034 = vmand %vm639, %vm1002
        %vm1035 = vmand %vm640, %vm1003
        %vm1036 = vmand %vm641, %vm1004
        %vm1037 = vmand %vm642, %vm1005
        %vm1038 = vmand %vm643, %vm1006
        %vm1039 = vmand %vm644, %vm1007
        %vm1040 = vmand %vm645, %vm1008
        %vm1041 = vmand %vm646, %vm1009
        %vm1042 = vmand %vm647, %vm1010
        %vm1043 = vmand %vm648, %vm1011
        %vm1044 = vmand %vm649, %vm1012
        %vm1045 = vmand %vm650, %vm1013
        %vm1046 = vmand %vm651, %vm1014
        %vm1047 = vmand %vm652, %vm1015
        %vm1048 = vmand %vm653, %vm1016
        %vm1049 = vmand %vm654, %vm1017
        %vm1050 = vmand %vm655, %vm1018
        %vm1051 = vmand %vm656, %vm1019
        %vm1052 = vmand %vm657, %vm1020
        %vm1053 = vmand %vm658, %vm1021
        %vm1054 = vmand %vm659, %vm1022
        %vm1055 = vmand %vm660, %vm1023
        %vm1056 = vmand %vm661, %vm1024
        %vm1057 = vmand %vm662, %vm1025
        %v1058 = vld [vmem:[#allocation2 + $0x1] sm:$0x1]
        %1059 = vset.pattern.permute.xlu0 1
        %1060 = vperm.xlu0 %1059, %v598
        %v1061 = vpop.permute.xlu0 %1060
        %1063 = vset.pattern.permute.xlu0 1
        %1064 = vperm.xlu0 %1063, %v599
        %v1065 = vpop.permute.xlu0 %1064
        %1067 = vset.pattern.permute.xlu0 1
        %1068 = vperm.xlu0 %1067, %v600
        %v1069 = vpop.permute.xlu0 %1068
        %1071 = vset.pattern.permute.xlu0 1
        %1072 = vperm.xlu0 %1071, %v601
        %v1073 = vpop.permute.xlu0 %1072
        %1075 = vset.pattern.permute.xlu0 1
        %1076 = vperm.xlu0 %1075, %v602
        %v1077 = vpop.permute.xlu0 %1076
        %1079 = vset.pattern.permute.xlu0 1
        %1080 = vperm.xlu0 %1079, %v603
        %v1081 = vpop.permute.xlu0 %1080
        %1083 = vset.pattern.permute.xlu0 1
        %1084 = vperm.xlu0 %1083, %v604
        %v1085 = vpop.permute.xlu0 %1084
        %1087 = vset.pattern.permute.xlu0 1
        %1088 = vperm.xlu0 %1087, %v605
        %v1089 = vpop.permute.xlu0 %1088
        %1091 = vset.pattern.permute.xlu0 1
        %1092 = vperm.xlu0 %1091, %v606
        %v1093 = vpop.permute.xlu0 %1092
        %1095 = vset.pattern.permute.xlu0 1
        %1096 = vperm.xlu0 %1095, %v607
        %v1097 = vpop.permute.xlu0 %1096
        %1099 = vset.pattern.permute.xlu0 1
        %1100 = vperm.xlu0 %1099, %v608
        %v1101 = vpop.permute.xlu0 %1100
        %1103 = vset.pattern.permute.xlu0 1
        %1104 = vperm.xlu0 %1103, %v609
        %v1105 = vpop.permute.xlu0 %1104
        %1107 = vset.pattern.permute.xlu0 1
        %1108 = vperm.xlu0 %1107, %v610
        %v1109 = vpop.permute.xlu0 %1108
        %1111 = vset.pattern.permute.xlu0 1
        %1112 = vperm.xlu0 %1111, %v611
        %v1113 = vpop.permute.xlu0 %1112
        %1115 = vset.pattern.permute.xlu0 1
        %1116 = vperm.xlu0 %1115, %v612
        %v1117 = vpop.permute.xlu0 %1116
        %1119 = vset.pattern.permute.xlu0 1
        %1120 = vperm.xlu0 %1119, %v613
        %v1121 = vpop.permute.xlu0 %1120
        %1123 = vset.pattern.permute.xlu0 1
        %1124 = vperm.xlu0 %1123, %v614
        %v1125 = vpop.permute.xlu0 %1124
        %1127 = vset.pattern.permute.xlu0 1
        %1128 = vperm.xlu0 %1127, %v615
        %v1129 = vpop.permute.xlu0 %1128
        %1131 = vset.pattern.permute.xlu0 1
        %1132 = vperm.xlu0 %1131, %v616
        %v1133 = vpop.permute.xlu0 %1132
        %1135 = vset.pattern.permute.xlu0 1
        %1136 = vperm.xlu0 %1135, %v617
        %v1137 = vpop.permute.xlu0 %1136
        %1139 = vset.pattern.permute.xlu0 1
        %1140 = vperm.xlu0 %1139, %v618
        %v1141 = vpop.permute.xlu0 %1140
        %1143 = vset.pattern.permute.xlu0 1
        %1144 = vperm.xlu0 %1143, %v619
        %v1145 = vpop.permute.xlu0 %1144
        %1147 = vset.pattern.permute.xlu0 1
        %1148 = vperm.xlu0 %1147, %v620
        %v1149 = vpop.permute.xlu0 %1148
        %1151 = vset.pattern.permute.xlu0 1
        %1152 = vperm.xlu0 %1151, %v621
        %v1153 = vpop.permute.xlu0 %1152
        %1155 = vset.pattern.permute.xlu0 1
        %1156 = vperm.xlu0 %1155, %v622
        %v1157 = vpop.permute.xlu0 %1156
        %1159 = vset.pattern.permute.xlu0 1
        %1160 = vperm.xlu0 %1159, %v623
        %v1161 = vpop.permute.xlu0 %1160
        %1163 = vset.pattern.permute.xlu0 1
        %1164 = vperm.xlu0 %1163, %v624
        %v1165 = vpop.permute.xlu0 %1164
        %1167 = vset.pattern.permute.xlu0 1
        %1168 = vperm.xlu0 %1167, %v625
        %v1169 = vpop.permute.xlu0 %1168
        %1171 = vset.pattern.permute.xlu0 1
        %1172 = vperm.xlu0 %1171, %v626
        %v1173 = vpop.permute.xlu0 %1172
        %1175 = vset.pattern.permute.xlu0 1
        %1176 = vperm.xlu0 %1175, %v627
        %v1177 = vpop.permute.xlu0 %1176
        %1179 = vset.pattern.permute.xlu0 1
        %1180 = vperm.xlu0 %1179, %v628
        %v1181 = vpop.permute.xlu0 %1180
        %1183 = vset.pattern.permute.xlu0 1
        %1184 = vperm.xlu0 %1183, %v629
        %v1185 = vpop.permute.xlu0 %1184
        %v1187 = vlaneseq
        %v1188 = vshrl.u32 %v1187, 7
        %v1189 = vsub.s32 0, %v1188
        %v1190 = vrot.slane %v1058, %v1189
        %v1191 = vmul.f32 %v1061, %v1190
        %v1192 = vmul.f32 %v1065, %v1190
        %v1193 = vmul.f32 %v1069, %v1190
        %v1194 = vmul.f32 %v1073, %v1190
        %v1195 = vmul.f32 %v1077, %v1190
        %v1196 = vmul.f32 %v1081, %v1190
        %v1197 = vmul.f32 %v1085, %v1190
        %v1198 = vmul.f32 %v1089, %v1190
        %v1199 = vmul.f32 %v1093, %v1190
        %v1200 = vmul.f32 %v1097, %v1190
        %v1201 = vmul.f32 %v1101, %v1190
        %v1202 = vmul.f32 %v1105, %v1190
        %v1203 = vmul.f32 %v1109, %v1190
        %v1204 = vmul.f32 %v1113, %v1190
        %v1205 = vmul.f32 %v1117, %v1190
        %v1206 = vmul.f32 %v1121, %v1190
        %v1207 = vmul.f32 %v1125, %v1190
        %v1208 = vmul.f32 %v1129, %v1190
        %v1209 = vmul.f32 %v1133, %v1190
        %v1210 = vmul.f32 %v1137, %v1190
        %v1211 = vmul.f32 %v1141, %v1190
        %v1212 = vmul.f32 %v1145, %v1190
        %v1213 = vmul.f32 %v1149, %v1190
        %v1214 = vmul.f32 %v1153, %v1190
        %v1215 = vmul.f32 %v1157, %v1190
        %v1216 = vmul.f32 %v1161, %v1190
        %v1217 = vmul.f32 %v1165, %v1190
        %v1218 = vmul.f32 %v1169, %v1190
        %v1219 = vmul.f32 %v1173, %v1190
        %v1220 = vmul.f32 %v1177, %v1190
        %v1221 = vmul.f32 %v1181, %v1190
        %v1222 = vmul.f32 %v1185, %v1190
        %v1223 = vadd.f32 %v866, %v1191
        %v1224 = vadd.f32 %v867, %v1192
        %v1225 = vadd.f32 %v868, %v1193
        %v1226 = vadd.f32 %v869, %v1194
        %v1227 = vadd.f32 %v870, %v1195
        %v1228 = vadd.f32 %v871, %v1196
        %v1229 = vadd.f32 %v872, %v1197
        %v1230 = vadd.f32 %v873, %v1198
        %v1231 = vadd.f32 %v874, %v1199
        %v1232 = vadd.f32 %v875, %v1200
        %v1233 = vadd.f32 %v876, %v1201
        %v1234 = vadd.f32 %v877, %v1202
        %v1235 = vadd.f32 %v878, %v1203
        %v1236 = vadd.f32 %v879, %v1204
        %v1237 = vadd.f32 %v880, %v1205
        %v1238 = vadd.f32 %v881, %v1206
        %v1239 = vadd.f32 %v882, %v1207
        %v1240 = vadd.f32 %v883, %v1208
        %v1241 = vadd.f32 %v884, %v1209
        %v1242 = vadd.f32 %v885, %v1210
        %v1243 = vadd.f32 %v886, %v1211
        %v1244 = vadd.f32 %v887, %v1212
        %v1245 = vadd.f32 %v888, %v1213
        %v1246 = vadd.f32 %v889, %v1214
        %v1247 = vadd.f32 %v890, %v1215
        %v1248 = vadd.f32 %v891, %v1216
        %v1249 = vadd.f32 %v892, %v1217
        %v1250 = vadd.f32 %v893, %v1218
        %v1251 = vadd.f32 %v894, %v1219
        %v1252 = vadd.f32 %v895, %v1220
        %v1253 = vadd.f32 %v896, %v1221
        %v1254 = vadd.f32 %v897, %v1222
        %1255 = vrot.lane.b32.xlu0 %v898, 126
        %v1256 = vpop.permute.xlu0 %1255
        %1257 = vrot.lane.b32.xlu0 %v899, 126
        %v1258 = vpop.permute.xlu0 %1257
        %1259 = vrot.lane.b32.xlu0 %v900, 126
        %v1260 = vpop.permute.xlu0 %1259
        %1261 = vrot.lane.b32.xlu0 %v901, 126
        %v1262 = vpop.permute.xlu0 %1261
        %1263 = vrot.lane.b32.xlu0 %v902, 126
        %v1264 = vpop.permute.xlu0 %1263
        %1265 = vrot.lane.b32.xlu0 %v903, 126
        %v1266 = vpop.permute.xlu0 %1265
        %1267 = vrot.lane.b32.xlu0 %v904, 126
        %v1268 = vpop.permute.xlu0 %1267
        %1269 = vrot.lane.b32.xlu0 %v905, 126
        %v1270 = vpop.permute.xlu0 %1269
        %1271 = vrot.lane.b32.xlu0 %v906, 126
        %v1272 = vpop.permute.xlu0 %1271
        %1273 = vrot.lane.b32.xlu0 %v907, 126
        %v1274 = vpop.permute.xlu0 %1273
        %1275 = vrot.lane.b32.xlu0 %v908, 126
        %v1276 = vpop.permute.xlu0 %1275
        %1277 = vrot.lane.b32.xlu0 %v909, 126
        %v1278 = vpop.permute.xlu0 %1277
        %1279 = vrot.lane.b32.xlu0 %v910, 126
        %v1280 = vpop.permute.xlu0 %1279
        %1281 = vrot.lane.b32.xlu0 %v911, 126
        %v1282 = vpop.permute.xlu0 %1281
        %1283 = vrot.lane.b32.xlu0 %v912, 126
        %v1284 = vpop.permute.xlu0 %1283
        %1285 = vrot.lane.b32.xlu0 %v913, 126
        %v1286 = vpop.permute.xlu0 %1285
        %1287 = vrot.lane.b32.xlu0 %v914, 126
        %v1288 = vpop.permute.xlu0 %1287
        %1289 = vrot.lane.b32.xlu0 %v915, 126
        %v1290 = vpop.permute.xlu0 %1289
        %1291 = vrot.lane.b32.xlu0 %v916, 126
        %v1292 = vpop.permute.xlu0 %1291
        %1293 = vrot.lane.b32.xlu0 %v917, 126
        %v1294 = vpop.permute.xlu0 %1293
        %1295 = vrot.lane.b32.xlu0 %v918, 126
        %v1296 = vpop.permute.xlu0 %1295
        %1297 = vrot.lane.b32.xlu0 %v919, 126
        %v1298 = vpop.permute.xlu0 %1297
        %1299 = vrot.lane.b32.xlu0 %v920, 126
        %v1300 = vpop.permute.xlu0 %1299
        %1301 = vrot.lane.b32.xlu0 %v921, 126
        %v1302 = vpop.permute.xlu0 %1301
        %1303 = vrot.lane.b32.xlu0 %v922, 126
        %v1304 = vpop.permute.xlu0 %1303
        %1305 = vrot.lane.b32.xlu0 %v923, 126
        %v1306 = vpop.permute.xlu0 %1305
        %1307 = vrot.lane.b32.xlu0 %v924, 126
        %v1308 = vpop.permute.xlu0 %1307
        %1309 = vrot.lane.b32.xlu0 %v925, 126
        %v1310 = vpop.permute.xlu0 %1309
        %1311 = vrot.lane.b32.xlu0 %v926, 126
        %v1312 = vpop.permute.xlu0 %1311
        %1313 = vrot.lane.b32.xlu0 %v927, 126
        %v1314 = vpop.permute.xlu0 %1313
        %1315 = vrot.lane.b32.xlu0 %v928, 126
        %v1316 = vpop.permute.xlu0 %1315
        %1317 = vrot.lane.b32.xlu0 %v929, 126
        %v1318 = vpop.permute.xlu0 %1317
        %vm1319 = vcmp.ne.s32.totalorder %v1256, 0
        %vm1320 = vcmp.ne.s32.totalorder %v1258, 0
        %vm1321 = vcmp.ne.s32.totalorder %v1260, 0
        %vm1322 = vcmp.ne.s32.totalorder %v1262, 0
        %vm1323 = vcmp.ne.s32.totalorder %v1264, 0
        %vm1324 = vcmp.ne.s32.totalorder %v1266, 0
        %vm1325 = vcmp.ne.s32.totalorder %v1268, 0
        %vm1326 = vcmp.ne.s32.totalorder %v1270, 0
        %vm1327 = vcmp.ne.s32.totalorder %v1272, 0
        %vm1328 = vcmp.ne.s32.totalorder %v1274, 0
        %vm1329 = vcmp.ne.s32.totalorder %v1276, 0
        %vm1330 = vcmp.ne.s32.totalorder %v1278, 0
        %vm1331 = vcmp.ne.s32.totalorder %v1280, 0
        %vm1332 = vcmp.ne.s32.totalorder %v1282, 0
        %vm1333 = vcmp.ne.s32.totalorder %v1284, 0
        %vm1334 = vcmp.ne.s32.totalorder %v1286, 0
        %vm1335 = vcmp.ne.s32.totalorder %v1288, 0
        %vm1336 = vcmp.ne.s32.totalorder %v1290, 0
        %vm1337 = vcmp.ne.s32.totalorder %v1292, 0
        %vm1338 = vcmp.ne.s32.totalorder %v1294, 0
        %vm1339 = vcmp.ne.s32.totalorder %v1296, 0
        %vm1340 = vcmp.ne.s32.totalorder %v1298, 0
        %vm1341 = vcmp.ne.s32.totalorder %v1300, 0
        %vm1342 = vcmp.ne.s32.totalorder %v1302, 0
        %vm1343 = vcmp.ne.s32.totalorder %v1304, 0
        %vm1344 = vcmp.ne.s32.totalorder %v1306, 0
        %vm1345 = vcmp.ne.s32.totalorder %v1308, 0
        %vm1346 = vcmp.ne.s32.totalorder %v1310, 0
        %vm1347 = vcmp.ne.s32.totalorder %v1312, 0
        %vm1348 = vcmp.ne.s32.totalorder %v1314, 0
        %vm1349 = vcmp.ne.s32.totalorder %v1316, 0
        %vm1350 = vcmp.ne.s32.totalorder %v1318, 0
        %vm1351 = vmand %vm1026, %vm1319
        %vm1352 = vmand %vm1027, %vm1320
        %vm1353 = vmand %vm1028, %vm1321
        %vm1354 = vmand %vm1029, %vm1322
        %vm1355 = vmand %vm1030, %vm1323
        %vm1356 = vmand %vm1031, %vm1324
        %vm1357 = vmand %vm1032, %vm1325
        %vm1358 = vmand %vm1033, %vm1326
        %vm1359 = vmand %vm1034, %vm1327
        %vm1360 = vmand %vm1035, %vm1328
        %vm1361 = vmand %vm1036, %vm1329
        %vm1362 = vmand %vm1037, %vm1330
        %vm1363 = vmand %vm1038, %vm1331
        %vm1364 = vmand %vm1039, %vm1332
        %vm1365 = vmand %vm1040, %vm1333
        %vm1366 = vmand %vm1041, %vm1334
        %vm1367 = vmand %vm1042, %vm1335
        %vm1368 = vmand %vm1043, %vm1336
        %vm1369 = vmand %vm1044, %vm1337
        %vm1370 = vmand %vm1045, %vm1338
        %vm1371 = vmand %vm1046, %vm1339
        %vm1372 = vmand %vm1047, %vm1340
        %vm1373 = vmand %vm1048, %vm1341
        %vm1374 = vmand %vm1049, %vm1342
        %vm1375 = vmand %vm1050, %vm1343
        %vm1376 = vmand %vm1051, %vm1344
        %vm1377 = vmand %vm1052, %vm1345
        %vm1378 = vmand %vm1053, %vm1346
        %vm1379 = vmand %vm1054, %vm1347
        %vm1380 = vmand %vm1055, %vm1348
        %vm1381 = vmand %vm1056, %vm1349
        %vm1382 = vmand %vm1057, %vm1350
        %v1383 = vld [vmem:[#allocation2 + $0x2] sm:$0x1]
        %1384 = vset.pattern.permute.xlu0 2
        %1385 = vperm.xlu0 %1384, %v598
        %v1386 = vpop.permute.xlu0 %1385
        %1388 = vset.pattern.permute.xlu0 2
        %1389 = vperm.xlu0 %1388, %v599
        %v1390 = vpop.permute.xlu0 %1389
        %1392 = vset.pattern.permute.xlu0 2
        %1393 = vperm.xlu0 %1392, %v600
        %v1394 = vpop.permute.xlu0 %1393
        %1396 = vset.pattern.permute.xlu0 2
        %1397 = vperm.xlu0 %1396, %v601
        %v1398 = vpop.permute.xlu0 %1397
        %1400 = vset.pattern.permute.xlu0 2
        %1401 = vperm.xlu0 %1400, %v602
        %v1402 = vpop.permute.xlu0 %1401
        %1404 = vset.pattern.permute.xlu0 2
        %1405 = vperm.xlu0 %1404, %v603
        %v1406 = vpop.permute.xlu0 %1405
        %1408 = vset.pattern.permute.xlu0 2
        %1409 = vperm.xlu0 %1408, %v604
        %v1410 = vpop.permute.xlu0 %1409
        %1412 = vset.pattern.permute.xlu0 2
        %1413 = vperm.xlu0 %1412, %v605
        %v1414 = vpop.permute.xlu0 %1413
        %1416 = vset.pattern.permute.xlu0 2
        %1417 = vperm.xlu0 %1416, %v606
        %v1418 = vpop.permute.xlu0 %1417
        %1420 = vset.pattern.permute.xlu0 2
        %1421 = vperm.xlu0 %1420, %v607
        %v1422 = vpop.permute.xlu0 %1421
        %1424 = vset.pattern.permute.xlu0 2
        %1425 = vperm.xlu0 %1424, %v608
        %v1426 = vpop.permute.xlu0 %1425
        %1428 = vset.pattern.permute.xlu0 2
        %1429 = vperm.xlu0 %1428, %v609
        %v1430 = vpop.permute.xlu0 %1429
        %1432 = vset.pattern.permute.xlu0 2
        %1433 = vperm.xlu0 %1432, %v610
        %v1434 = vpop.permute.xlu0 %1433
        %1436 = vset.pattern.permute.xlu0 2
        %1437 = vperm.xlu0 %1436, %v611
        %v1438 = vpop.permute.xlu0 %1437
        %1440 = vset.pattern.permute.xlu0 2
        %1441 = vperm.xlu0 %1440, %v612
        %v1442 = vpop.permute.xlu0 %1441
        %1444 = vset.pattern.permute.xlu0 2
        %1445 = vperm.xlu0 %1444, %v613
        %v1446 = vpop.permute.xlu0 %1445
        %1448 = vset.pattern.permute.xlu0 2
        %1449 = vperm.xlu0 %1448, %v614
        %v1450 = vpop.permute.xlu0 %1449
        %1452 = vset.pattern.permute.xlu0 2
        %1453 = vperm.xlu0 %1452, %v615
        %v1454 = vpop.permute.xlu0 %1453
        %1456 = vset.pattern.permute.xlu0 2
        %1457 = vperm.xlu0 %1456, %v616
        %v1458 = vpop.permute.xlu0 %1457
        %1460 = vset.pattern.permute.xlu0 2
        %1461 = vperm.xlu0 %1460, %v617
        %v1462 = vpop.permute.xlu0 %1461
        %1464 = vset.pattern.permute.xlu0 2
        %1465 = vperm.xlu0 %1464, %v618
        %v1466 = vpop.permute.xlu0 %1465
        %1468 = vset.pattern.permute.xlu0 2
        %1469 = vperm.xlu0 %1468, %v619
        %v1470 = vpop.permute.xlu0 %1469
        %1472 = vset.pattern.permute.xlu0 2
        %1473 = vperm.xlu0 %1472, %v620
        %v1474 = vpop.permute.xlu0 %1473
        %1476 = vset.pattern.permute.xlu0 2
        %1477 = vperm.xlu0 %1476, %v621
        %v1478 = vpop.permute.xlu0 %1477
        %1480 = vset.pattern.permute.xlu0 2
        %1481 = vperm.xlu0 %1480, %v622
        %v1482 = vpop.permute.xlu0 %1481
        %1484 = vset.pattern.permute.xlu0 2
        %1485 = vperm.xlu0 %1484, %v623
        %v1486 = vpop.permute.xlu0 %1485
        %1488 = vset.pattern.permute.xlu0 2
        %1489 = vperm.xlu0 %1488, %v624
        %v1490 = vpop.permute.xlu0 %1489
        %1492 = vset.pattern.permute.xlu0 2
        %1493 = vperm.xlu0 %1492, %v625
        %v1494 = vpop.permute.xlu0 %1493
        %1496 = vset.pattern.permute.xlu0 2
        %1497 = vperm.xlu0 %1496, %v626
        %v1498 = vpop.permute.xlu0 %1497
        %1500 = vset.pattern.permute.xlu0 2
        %1501 = vperm.xlu0 %1500, %v627
        %v1502 = vpop.permute.xlu0 %1501
        %1504 = vset.pattern.permute.xlu0 2
        %1505 = vperm.xlu0 %1504, %v628
        %v1506 = vpop.permute.xlu0 %1505
        %1508 = vset.pattern.permute.xlu0 2
        %1509 = vperm.xlu0 %1508, %v629
        %v1510 = vpop.permute.xlu0 %1509
        %v1512 = vlaneseq
        %v1513 = vshrl.u32 %v1512, 7
        %v1514 = vsub.s32 0, %v1513
        %v1515 = vrot.slane %v1383, %v1514
        %v1516 = vmul.f32 %v1386, %v1515
        %v1517 = vmul.f32 %v1390, %v1515
        %v1518 = vmul.f32 %v1394, %v1515
        %v1519 = vmul.f32 %v1398, %v1515
        %v1520 = vmul.f32 %v1402, %v1515
        %v1521 = vmul.f32 %v1406, %v1515
        %v1522 = vmul.f32 %v1410, %v1515
        %v1523 = vmul.f32 %v1414, %v1515
        %v1524 = vmul.f32 %v1418, %v1515
        %v1525 = vmul.f32 %v1422, %v1515
        %v1526 = vmul.f32 %v1426, %v1515
        %v1527 = vmul.f32 %v1430, %v1515
        %v1528 = vmul.f32 %v1434, %v1515
        %v1529 = vmul.f32 %v1438, %v1515
        %v1530 = vmul.f32 %v1442, %v1515
        %v1531 = vmul.f32 %v1446, %v1515
        %v1532 = vmul.f32 %v1450, %v1515
        %v1533 = vmul.f32 %v1454, %v1515
        %v1534 = vmul.f32 %v1458, %v1515
        %v1535 = vmul.f32 %v1462, %v1515
        %v1536 = vmul.f32 %v1466, %v1515
        %v1537 = vmul.f32 %v1470, %v1515
        %v1538 = vmul.f32 %v1474, %v1515
        %v1539 = vmul.f32 %v1478, %v1515
        %v1540 = vmul.f32 %v1482, %v1515
        %v1541 = vmul.f32 %v1486, %v1515
        %v1542 = vmul.f32 %v1490, %v1515
        %v1543 = vmul.f32 %v1494, %v1515
        %v1544 = vmul.f32 %v1498, %v1515
        %v1545 = vmul.f32 %v1502, %v1515
        %v1546 = vmul.f32 %v1506, %v1515
        %v1547 = vmul.f32 %v1510, %v1515
        %v1548 = vadd.f32 %v1223, %v1516
        %v1549 = vadd.f32 %v1224, %v1517
        %v1550 = vadd.f32 %v1225, %v1518
        %v1551 = vadd.f32 %v1226, %v1519
        %v1552 = vadd.f32 %v1227, %v1520
        %v1553 = vadd.f32 %v1228, %v1521
        %v1554 = vadd.f32 %v1229, %v1522
        %v1555 = vadd.f32 %v1230, %v1523
        %v1556 = vadd.f32 %v1231, %v1524
        %v1557 = vadd.f32 %v1232, %v1525
        %v1558 = vadd.f32 %v1233, %v1526
        %v1559 = vadd.f32 %v1234, %v1527
        %v1560 = vadd.f32 %v1235, %v1528
        %v1561 = vadd.f32 %v1236, %v1529
        %v1562 = vadd.f32 %v1237, %v1530
        %v1563 = vadd.f32 %v1238, %v1531
        %v1564 = vadd.f32 %v1239, %v1532
        %v1565 = vadd.f32 %v1240, %v1533
        %v1566 = vadd.f32 %v1241, %v1534
        %v1567 = vadd.f32 %v1242, %v1535
        %v1568 = vadd.f32 %v1243, %v1536
        %v1569 = vadd.f32 %v1244, %v1537
        %v1570 = vadd.f32 %v1245, %v1538
        %v1571 = vadd.f32 %v1246, %v1539
        %v1572 = vadd.f32 %v1247, %v1540
        %v1573 = vadd.f32 %v1248, %v1541
        %v1574 = vadd.f32 %v1249, %v1542
        %v1575 = vadd.f32 %v1250, %v1543
        %v1576 = vadd.f32 %v1251, %v1544
        %v1577 = vadd.f32 %v1252, %v1545
        %v1578 = vadd.f32 %v1253, %v1546
        %v1579 = vadd.f32 %v1254, %v1547
        %v1580 = vmax.f32 %v1548, 0.0
        %v1581 = vmax.f32 %v1549, 0.0
        %v1582 = vmax.f32 %v1550, 0.0
        %v1583 = vmax.f32 %v1551, 0.0
        %v1584 = vmax.f32 %v1552, 0.0
        %v1585 = vmax.f32 %v1553, 0.0
        %v1586 = vmax.f32 %v1554, 0.0
        %v1587 = vmax.f32 %v1555, 0.0
        %v1588 = vmax.f32 %v1556, 0.0
        %v1589 = vmax.f32 %v1557, 0.0
        %v1590 = vmax.f32 %v1558, 0.0
        %v1591 = vmax.f32 %v1559, 0.0
        %v1592 = vmax.f32 %v1560, 0.0
        %v1593 = vmax.f32 %v1561, 0.0
        %v1594 = vmax.f32 %v1562, 0.0
        %v1595 = vmax.f32 %v1563, 0.0
        %v1596 = vmax.f32 %v1564, 0.0
        %v1597 = vmax.f32 %v1565, 0.0
        %v1598 = vmax.f32 %v1566, 0.0
        %v1599 = vmax.f32 %v1567, 0.0
        %v1600 = vmax.f32 %v1568, 0.0
        %v1601 = vmax.f32 %v1569, 0.0
        %v1602 = vmax.f32 %v1570, 0.0
        %v1603 = vmax.f32 %v1571, 0.0
        %v1604 = vmax.f32 %v1572, 0.0
        %v1605 = vmax.f32 %v1573, 0.0
        %v1606 = vmax.f32 %v1574, 0.0
        %v1607 = vmax.f32 %v1575, 0.0
        %v1608 = vmax.f32 %v1576, 0.0
        %v1609 = vmax.f32 %v1577, 0.0
        %v1610 = vmax.f32 %v1578, 0.0
        %v1611 = vmax.f32 %v1579, 0.0
        %v1612 = vsel %vm1351, 1, 0
        %v1613 = vsel %vm1352, 1, 0
        %v1614 = vsel %vm1353, 1, 0
        %v1615 = vsel %vm1354, 1, 0
        %v1616 = vsel %vm1355, 1, 0
        %v1617 = vsel %vm1356, 1, 0
        %v1618 = vsel %vm1357, 1, 0
        %v1619 = vsel %vm1358, 1, 0
        %v1620 = vsel %vm1359, 1, 0
        %v1621 = vsel %vm1360, 1, 0
        %v1622 = vsel %vm1361, 1, 0
        %v1623 = vsel %vm1362, 1, 0
        %v1624 = vsel %vm1363, 1, 0
        %v1625 = vsel %vm1364, 1, 0
        %v1626 = vsel %vm1365, 1, 0
        %v1627 = vsel %vm1366, 1, 0
        %v1628 = vsel %vm1367, 1, 0
        %v1629 = vsel %vm1368, 1, 0
        %v1630 = vsel %vm1369, 1, 0
        %v1631 = vsel %vm1370, 1, 0
        %v1632 = vsel %vm1371, 1, 0
        %v1633 = vsel %vm1372, 1, 0
        %v1634 = vsel %vm1373, 1, 0
        %v1635 = vsel %vm1374, 1, 0
        %v1636 = vsel %vm1375, 1, 0
        %v1637 = vsel %vm1376, 1, 0
        %v1638 = vsel %vm1377, 1, 0
        %v1639 = vsel %vm1378, 1, 0
        %v1640 = vsel %vm1379, 1, 0
        %v1641 = vsel %vm1380, 1, 0
        %v1642 = vsel %vm1381, 1, 0
        %v1643 = vsel %vm1382, 1, 0
        %v1644 = vcvt.s32.f32 %v1612
        %v1645 = vcvt.s32.f32 %v1613
        %v1646 = vcvt.s32.f32 %v1614
        %v1647 = vcvt.s32.f32 %v1615
        %v1648 = vcvt.s32.f32 %v1616
        %v1649 = vcvt.s32.f32 %v1617
        %v1650 = vcvt.s32.f32 %v1618
        %v1651 = vcvt.s32.f32 %v1619
        %v1652 = vcvt.s32.f32 %v1620
        %v1653 = vcvt.s32.f32 %v1621
        %v1654 = vcvt.s32.f32 %v1622
        %v1655 = vcvt.s32.f32 %v1623
        %v1656 = vcvt.s32.f32 %v1624
        %v1657 = vcvt.s32.f32 %v1625
        %v1658 = vcvt.s32.f32 %v1626
        %v1659 = vcvt.s32.f32 %v1627
        %v1660 = vcvt.s32.f32 %v1628
        %v1661 = vcvt.s32.f32 %v1629
        %v1662 = vcvt.s32.f32 %v1630
        %v1663 = vcvt.s32.f32 %v1631
        %v1664 = vcvt.s32.f32 %v1632
        %v1665 = vcvt.s32.f32 %v1633
        %v1666 = vcvt.s32.f32 %v1634
        %v1667 = vcvt.s32.f32 %v1635
        %v1668 = vcvt.s32.f32 %v1636
        %v1669 = vcvt.s32.f32 %v1637
        %v1670 = vcvt.s32.f32 %v1638
        %v1671 = vcvt.s32.f32 %v1639
        %v1672 = vcvt.s32.f32 %v1640
        %v1673 = vcvt.s32.f32 %v1641
        %v1674 = vcvt.s32.f32 %v1642
        %v1675 = vcvt.s32.f32 %v1643
        %v1676 = vpack.c.bf16 %v1581, %v1580
        %v1677 = vpack.c.bf16 %v1583, %v1582
        %v1678 = vpack.c.bf16 %v1585, %v1584
        %v1679 = vpack.c.bf16 %v1587, %v1586
        %v1680 = vpack.c.bf16 %v1589, %v1588
        %v1681 = vpack.c.bf16 %v1591, %v1590
        %v1682 = vpack.c.bf16 %v1593, %v1592
        %v1683 = vpack.c.bf16 %v1595, %v1594
        %v1684 = vpack.c.bf16 %v1597, %v1596
        %v1685 = vpack.c.bf16 %v1599, %v1598
        %v1686 = vpack.c.bf16 %v1601, %v1600
        %v1687 = vpack.c.bf16 %v1603, %v1602
        %v1688 = vpack.c.bf16 %v1605, %v1604
        %v1689 = vpack.c.bf16 %v1607, %v1606
        %v1690 = vpack.c.bf16 %v1609, %v1608
        %v1691 = vpack.c.bf16 %v1611, %v1610
        %v1692 = vld [vmem:[%s3] sm:$0xf]
        %v1693 = vld [vmem:[%s3 + $0x4] sm:$0xf]
        %v1694 = vld [vmem:[%s3 + $0x8] sm:$0xf]
        %v1695 = vld [vmem:[%s3 + $0xc] sm:$0xf]
        %v1696 = vld [vmem:[%s3 + $0x10] sm:$0xf]
        %v1697 = vld [vmem:[%s3 + $0x14] sm:$0xf]
        %v1698 = vld [vmem:[%s3 + $0x18] sm:$0xf]
        %v1699 = vld [vmem:[%s3 + $0x1c] sm:$0xf]
        %v1700 = vld [vmem:[%s4] sm:$0x1]
        %v1702 = vlaneseq
        %v1703 = vshrl.u32 %v1702, 7
        %v1704 = vsub.s32 0, %v1703
        %v1705 = vrot.slane %v1700, %v1704
        %v1715 = vunpack.c.l.b16 %v1692
        %v1716 = vunpack.c.l.b16 %v1693
        %v1717 = vunpack.c.l.b16 %v1694
        %v1718 = vunpack.c.l.b16 %v1695
        %v1719 = vunpack.c.l.b16 %v1696
        %v1720 = vunpack.c.l.b16 %v1697
        %v1721 = vunpack.c.l.b16 %v1698
        %v1722 = vunpack.c.l.b16 %v1699
        %v1723 = vpack.c.b16 %v1716, %v1715
        %v1724 = vpack.c.b16 %v1718, %v1717
        %v1725 = vpack.c.b16 %v1720, %v1719
        %v1726 = vpack.c.b16 %v1722, %v1721
        %vm1731 = vcmask 523264
        %v1733 = vsel %vm1731, %v1676, 0
        %v1736 = vsel %vm1731, %v1677, 0
        %v1739 = vsel %vm1731, %v1678, 0
        %v1742 = vsel %vm1731, %v1679, 0
        %v1745 = vsel %vm1731, %v1680, 0
        %v1748 = vsel %vm1731, %v1681, 0
        %v1751 = vsel %vm1731, %v1682, 0
        %v1754 = vsel %vm1731, %v1683, 0
        %v1757 = vsel %vm1731, %v1684, 0
        %v1760 = vsel %vm1731, %v1685, 0
        %v1763 = vsel %vm1731, %v1686, 0
        %v1766 = vsel %vm1731, %v1687, 0
        %v1769 = vsel %vm1731, %v1688, 0
        %v1772 = vsel %vm1731, %v1689, 0
        %v1775 = vsel %vm1731, %v1690, 0
        %v1778 = vsel %vm1731, %v1691, 0
        %1780 = vmatprep.subr.bf16.mxu0 0
        %1781 = vmatpush1.bf16.msra.mxu0 %v1723
        %1782 = vmatprep.subr.bf16.mxu0 0
        %1783 = vmatpush1.bf16.msra.mxu0 %v1724
        %1784 = vmatprep.subr.bf16.mxu0 0
        %1785 = vmatpush1.bf16.msra.mxu0 %v1725
        %1786 = vmatprep.subr.bf16.mxu0 0
        %1787 = vmatpush1.bf16.msra.mxu0 %v1726
        %1788 = vmatprep.subr.bf16.mxu0 0
        %1789 = vmatpush1.bf16.msra.mxu0 0
        %1790 = vmatprep.subr.bf16.mxu0 0
        %1791 = vmatpush1.bf16.msra.mxu0 0
        %1792 = vmatprep.subr.bf16.mxu0 0
        %1793 = vmatpush1.bf16.msra.mxu0 0
        %1794 = vmatprep.subr.bf16.mxu0 0
        %1795 = vmatpush1.bf16.msra.mxu0 0
        %1796 = vmatprep.subr.bf16.mxu0 0
        %1797 = vmatpush1.bf16.msra.mxu0 0
        %1798 = vmatprep.subr.bf16.mxu0 0
        %1799 = vmatpush1.bf16.msra.mxu0 0
        %1800 = vmatprep.subr.bf16.mxu0 0
        %1801 = vmatpush1.bf16.msra.mxu0 0
        %1802 = vmatprep.subr.bf16.mxu0 0
        %1803 = vmatpush1.bf16.msra.mxu0 0
        %1804 = vmatprep.subr.bf16.mxu0 0
        %1805 = vmatpush1.bf16.msra.mxu0 0
        %1806 = vmatprep.subr.bf16.mxu0 0
        %1807 = vmatpush1.bf16.msra.mxu0 0
        %1808 = vmatprep.subr.bf16.mxu0 0
        %1809 = vmatpush1.bf16.msra.mxu0 0
        %1810 = vmatprep.subr.bf16.mxu0 0
        %1811 = vmatpush1.bf16.msra.mxu0 0
        %1812 = vmatprep.mubr.bf16.mxu0 0
        %1813 = vmatmul.mubr.bf16.gmra.mrb[0].mxu0 %v1733
        %v1814 = vpop.f32.mrb[0].mxu0
        %v1815 = vadd.f32 %v1705, %v1814
        %v1816 = vpop.f32.mrb[0].mxu0
        %v1817 = vpop.f32.mrb[0].mxu0
        %v1818 = vadd.f32 %v1705, %v1817
        %v1819 = vpop.f32.mrb[0].mxu0
        %1820 = vmatprep.mubr.bf16.mxu0 0
        %1821 = vmatmul.mubr.bf16.gmra.mrb[0].mxu0 %v1736
        %v1822 = vpop.f32.mrb[0].mxu0
        %v1823 = vadd.f32 %v1705, %v1822
        %v1824 = vpop.f32.mrb[0].mxu0
        %v1825 = vpop.f32.mrb[0].mxu0
        %v1826 = vadd.f32 %v1705, %v1825
        %v1827 = vpop.f32.mrb[0].mxu0
        %1828 = vmatprep.mubr.bf16.mxu0 0
        %1829 = vmatmul.mubr.bf16.gmra.mrb[0].mxu0 %v1739
        %v1830 = vpop.f32.mrb[0].mxu0
        %v1831 = vadd.f32 %v1705, %v1830
        %v1832 = vpop.f32.mrb[0].mxu0
        %v1833 = vpop.f32.mrb[0].mxu0
        %v1834 = vadd.f32 %v1705, %v1833
        %v1835 = vpop.f32.mrb[0].mxu0
        %1836 = vmatprep.mubr.bf16.mxu0 0
        %1837 = vmatmul.mubr.bf16.gmra.mrb[0].mxu0 %v1742
        %v1838 = vpop.f32.mrb[0].mxu0
        %v1839 = vadd.f32 %v1705, %v1838
        %v1840 = vpop.f32.mrb[0].mxu0
        %v1841 = vpop.f32.mrb[0].mxu0
        %v1842 = vadd.f32 %v1705, %v1841
        %v1843 = vpop.f32.mrb[0].mxu0
        %1844 = vmatprep.mubr.bf16.mxu0 0
        %1845 = vmatmul.mubr.bf16.gmra.mrb[0].mxu0 %v1745
        %v1846 = vpop.f32.mrb[0].mxu0
        %v1847 = vadd.f32 %v1705, %v1846
        %v1848 = vpop.f32.mrb[0].mxu0
        %v1849 = vpop.f32.mrb[0].mxu0
        %v1850 = vadd.f32 %v1705, %v1849
        %v1851 = vpop.f32.mrb[0].mxu0
        %1852 = vmatprep.mubr.bf16.mxu0 0
        %1853 = vmatmul.mubr.bf16.gmra.mrb[0].mxu0 %v1748
        %v1854 = vpop.f32.mrb[0].mxu0
        %v1855 = vadd.f32 %v1705, %v1854
        %v1856 = vpop.f32.mrb[0].mxu0
        %v1857 = vpop.f32.mrb[0].mxu0
        %v1858 = vadd.f32 %v1705, %v1857
        %v1859 = vpop.f32.mrb[0].mxu0
        %1860 = vmatprep.mubr.bf16.mxu0 0
        %1861 = vmatmul.mubr.bf16.gmra.mrb[0].mxu0 %v1751
        %v1862 = vpop.f32.mrb[0].mxu0
        %v1863 = vadd.f32 %v1705, %v1862
        %v1864 = vpop.f32.mrb[0].mxu0
        %v1865 = vpop.f32.mrb[0].mxu0
        %v1866 = vadd.f32 %v1705, %v1865
        %v1867 = vpop.f32.mrb[0].mxu0
        %1868 = vmatprep.mubr.bf16.mxu0 0
        %1869 = vmatmul.mubr.bf16.gmra.mrb[0].mxu0 %v1754
        %v1870 = vpop.f32.mrb[0].mxu0
        %v1871 = vadd.f32 %v1705, %v1870
        %v1872 = vpop.f32.mrb[0].mxu0
        %v1873 = vpop.f32.mrb[0].mxu0
        %v1874 = vadd.f32 %v1705, %v1873
        %v1875 = vpop.f32.mrb[0].mxu0
        %1876 = vmatprep.mubr.bf16.mxu0 0
        %1877 = vmatmul.mubr.bf16.gmra.mrb[0].mxu0 %v1757
        %v1878 = vpop.f32.mrb[0].mxu0
        %v1879 = vadd.f32 %v1705, %v1878
        %v1880 = vpop.f32.mrb[0].mxu0
        %v1881 = vpop.f32.mrb[0].mxu0
        %v1882 = vadd.f32 %v1705, %v1881
        %v1883 = vpop.f32.mrb[0].mxu0
        %1884 = vmatprep.mubr.bf16.mxu0 0
        %1885 = vmatmul.mubr.bf16.gmra.mrb[0].mxu0 %v1760
        %v1886 = vpop.f32.mrb[0].mxu0
        %v1887 = vadd.f32 %v1705, %v1886
        %v1888 = vpop.f32.mrb[0].mxu0
        %v1889 = vpop.f32.mrb[0].mxu0
        %v1890 = vadd.f32 %v1705, %v1889
        %v1891 = vpop.f32.mrb[0].mxu0
        %1892 = vmatprep.mubr.bf16.mxu0 0
        %1893 = vmatmul.mubr.bf16.gmra.mrb[0].mxu0 %v1763
        %v1894 = vpop.f32.mrb[0].mxu0
        %v1895 = vadd.f32 %v1705, %v1894
        %v1896 = vpop.f32.mrb[0].mxu0
        %v1897 = vpop.f32.mrb[0].mxu0
        %v1898 = vadd.f32 %v1705, %v1897
        %v1899 = vpop.f32.mrb[0].mxu0
        %1900 = vmatprep.mubr.bf16.mxu0 0
        %1901 = vmatmul.mubr.bf16.gmra.mrb[0].mxu0 %v1766
        %v1902 = vpop.f32.mrb[0].mxu0
        %v1903 = vadd.f32 %v1705, %v1902
        %v1904 = vpop.f32.mrb[0].mxu0
        %v1905 = vpop.f32.mrb[0].mxu0
        %v1906 = vadd.f32 %v1705, %v1905
        %v1907 = vpop.f32.mrb[0].mxu0
        %1908 = vmatprep.mubr.bf16.mxu0 0
        %1909 = vmatmul.mubr.bf16.gmra.mrb[0].mxu0 %v1769
        %v1910 = vpop.f32.mrb[0].mxu0
        %v1911 = vadd.f32 %v1705, %v1910
        %v1912 = vpop.f32.mrb[0].mxu0
        %v1913 = vpop.f32.mrb[0].mxu0
        %v1914 = vadd.f32 %v1705, %v1913
        %v1915 = vpop.f32.mrb[0].mxu0
        %1916 = vmatprep.mubr.bf16.mxu0 0
        %1917 = vmatmul.mubr.bf16.gmra.mrb[0].mxu0 %v1772
        %v1918 = vpop.f32.mrb[0].mxu0
        %v1919 = vadd.f32 %v1705, %v1918
        %v1920 = vpop.f32.mrb[0].mxu0
        %v1921 = vpop.f32.mrb[0].mxu0
        %v1922 = vadd.f32 %v1705, %v1921
        %v1923 = vpop.f32.mrb[0].mxu0
        %1924 = vmatprep.mubr.bf16.mxu0 0
        %1925 = vmatmul.mubr.bf16.gmra.mrb[0].mxu0 %v1775
        %v1926 = vpop.f32.mrb[0].mxu0
        %v1927 = vadd.f32 %v1705, %v1926
        %v1928 = vpop.f32.mrb[0].mxu0
        %v1929 = vpop.f32.mrb[0].mxu0
        %v1930 = vadd.f32 %v1705, %v1929
        %v1931 = vpop.f32.mrb[0].mxu0
        %1932 = vmatprep.mubr.bf16.mxu0 0
        %1933 = vmatmul.mubr.bf16.gmra.mrb[0].mxu0 %v1778
        %v1934 = vpop.f32.mrb[0].mxu0
        %v1935 = vadd.f32 %v1705, %v1934
        %v1936 = vpop.f32.mrb[0].mxu0
        %v1937 = vpop.f32.mrb[0].mxu0
        %v1938 = vadd.f32 %v1705, %v1937
        %v1939 = vpop.f32.mrb[0].mxu0
        %1940 = vdwg.mxu0
        %v1941 = vmax.f32 %v1815, 0.0
        %v1942 = vmax.f32 %v1818, 0.0
        %v1943 = vmax.f32 %v1823, 0.0
        %v1944 = vmax.f32 %v1826, 0.0
        %v1945 = vmax.f32 %v1831, 0.0
        %v1946 = vmax.f32 %v1834, 0.0
        %v1947 = vmax.f32 %v1839, 0.0
        %v1948 = vmax.f32 %v1842, 0.0
        %v1949 = vmax.f32 %v1847, 0.0
        %v1950 = vmax.f32 %v1850, 0.0
        %v1951 = vmax.f32 %v1855, 0.0
        %v1952 = vmax.f32 %v1858, 0.0
        %v1953 = vmax.f32 %v1863, 0.0
        %v1954 = vmax.f32 %v1866, 0.0
        %v1955 = vmax.f32 %v1871, 0.0
        %v1956 = vmax.f32 %v1874, 0.0
        %v1957 = vmax.f32 %v1879, 0.0
        %v1958 = vmax.f32 %v1882, 0.0
        %v1959 = vmax.f32 %v1887, 0.0
        %v1960 = vmax.f32 %v1890, 0.0
        %v1961 = vmax.f32 %v1895, 0.0
        %v1962 = vmax.f32 %v1898, 0.0
        %v1963 = vmax.f32 %v1903, 0.0
        %v1964 = vmax.f32 %v1906, 0.0
        %v1965 = vmax.f32 %v1911, 0.0
        %v1966 = vmax.f32 %v1914, 0.0
        %v1967 = vmax.f32 %v1919, 0.0
        %v1968 = vmax.f32 %v1922, 0.0
        %v1969 = vmax.f32 %v1927, 0.0
        %v1970 = vmax.f32 %v1930, 0.0
        %v1971 = vmax.f32 %v1935, 0.0
        %v1972 = vmax.f32 %v1938, 0.0
        %v1973 = vpack.c.bf16 %v1942, %v1941
        %v1974 = vpack.c.bf16 %v1944, %v1943
        %v1975 = vpack.c.bf16 %v1946, %v1945
        %v1976 = vpack.c.bf16 %v1948, %v1947
        %v1977 = vpack.c.bf16 %v1950, %v1949
        %v1978 = vpack.c.bf16 %v1952, %v1951
        %v1979 = vpack.c.bf16 %v1954, %v1953
        %v1980 = vpack.c.bf16 %v1956, %v1955
        %v1981 = vpack.c.bf16 %v1958, %v1957
        %v1982 = vpack.c.bf16 %v1960, %v1959
        %v1983 = vpack.c.bf16 %v1962, %v1961
        %v1984 = vpack.c.bf16 %v1964, %v1963
        %v1985 = vpack.c.bf16 %v1966, %v1965
        %v1986 = vpack.c.bf16 %v1968, %v1967
        %v1987 = vpack.c.bf16 %v1970, %v1969
        %v1988 = vpack.c.bf16 %v1972, %v1971
        %v1989 = vld [vmem:[%s5] sm:$0xf]
        %v1990 = vld [vmem:[%s5 + $0x4] sm:$0xf]
        %v1991 = vld [vmem:[%s5 + $0x8] sm:$0xf]
        %v1992 = vld [vmem:[%s5 + $0xc] sm:$0xf]
        %v1993 = vld [vmem:[%s5 + $0x10] sm:$0xf]
        %v1994 = vld [vmem:[%s5 + $0x14] sm:$0xf]
        %v1995 = vld [vmem:[%s5 + $0x18] sm:$0xf]
        %v1996 = vld [vmem:[%s5 + $0x1c] sm:$0xf]
        %v1997 = vld [vmem:[#allocation4] sm:$0x1]
        %v1999 = vlaneseq
        %v2000 = vshrl.u32 %v1999, 7
        %v2001 = vsub.s32 0, %v2000
        %v2002 = vrot.slane %v1997, %v2001
        %v2012 = vunpack.c.l.b16 %v1989
        %v2013 = vunpack.c.l.b16 %v1990
        %v2014 = vunpack.c.l.b16 %v1991
        %v2015 = vunpack.c.l.b16 %v1992
        %v2016 = vunpack.c.l.b16 %v1993
        %v2017 = vunpack.c.l.b16 %v1994
        %v2018 = vunpack.c.l.b16 %v1995
        %v2019 = vunpack.c.l.b16 %v1996
        %v2020 = vpack.c.b16 %v2013, %v2012
        %v2021 = vpack.c.b16 %v2015, %v2014
        %v2022 = vpack.c.b16 %v2017, %v2016
        %v2023 = vpack.c.b16 %v2019, %v2018
        %v2029 = vsel %vm1731, %v1973, 0
        %v2032 = vsel %vm1731, %v1974, 0
        %v2035 = vsel %vm1731, %v1975, 0
        %v2038 = vsel %vm1731, %v1976, 0
        %v2041 = vsel %vm1731, %v1977, 0
        %v2044 = vsel %vm1731, %v1978, 0
        %v2047 = vsel %vm1731, %v1979, 0
        %v2050 = vsel %vm1731, %v1980, 0
        %v2053 = vsel %vm1731, %v1981, 0
        %v2056 = vsel %vm1731, %v1982, 0
        %v2059 = vsel %vm1731, %v1983, 0
        %v2062 = vsel %vm1731, %v1984, 0
        %v2065 = vsel %vm1731, %v1985, 0
        %v2068 = vsel %vm1731, %v1986, 0
        %v2071 = vsel %vm1731, %v1987, 0
        %v2074 = vsel %vm1731, %v1988, 0
        %2076 = vmatprep.subr.bf16.mxu0 0
        %2077 = vmatpush1.bf16.msra.mxu0 %v2020
        %2078 = vmatprep.subr.bf16.mxu0 0
        %2079 = vmatpush1.bf16.msra.mxu0 %v2021
        %2080 = vmatprep.subr.bf16.mxu0 0
        %2081 = vmatpush1.bf16.msra.mxu0 %v2022
        %2082 = vmatprep.subr.bf16.mxu0 0
        %2083 = vmatpush1.bf16.msra.mxu0 %v2023
        %2084 = vmatprep.subr.bf16.mxu0 0
        %2085 = vmatpush1.bf16.msra.mxu0 0
        %2086 = vmatprep.subr.bf16.mxu0 0
        %2087 = vmatpush1.bf16.msra.mxu0 0
        %2088 = vmatprep.subr.bf16.mxu0 0
        %2089 = vmatpush1.bf16.msra.mxu0 0
        %2090 = vmatprep.subr.bf16.mxu0 0
        %2091 = vmatpush1.bf16.msra.mxu0 0
        %2092 = vmatprep.subr.bf16.mxu0 0
        %2093 = vmatpush1.bf16.msra.mxu0 0
        %2094 = vmatprep.subr.bf16.mxu0 0
        %2095 = vmatpush1.bf16.msra.mxu0 0
        %2096 = vmatprep.subr.bf16.mxu0 0
        %2097 = vmatpush1.bf16.msra.mxu0 0
        %2098 = vmatprep.subr.bf16.mxu0 0
        %2099 = vmatpush1.bf16.msra.mxu0 0
        %2100 = vmatprep.subr.bf16.mxu0 0
        %2101 = vmatpush1.bf16.msra.mxu0 0
        %2102 = vmatprep.subr.bf16.mxu0 0
        %2103 = vmatpush1.bf16.msra.mxu0 0
        %2104 = vmatprep.subr.bf16.mxu0 0
        %2105 = vmatpush1.bf16.msra.mxu0 0
        %2106 = vmatprep.subr.bf16.mxu0 0
        %2107 = vmatpush1.bf16.msra.mxu0 0
        %2108 = vmatprep.mubr.bf16.mxu0 0
        %2109 = vmatmul.mubr.bf16.gmra.mrb[0].mxu0 %v2029
        %v2110 = vpop.f32.mrb[0].mxu0
        %v2111 = vadd.f32 %v2002, %v2110
        %v2112 = vpop.f32.mrb[0].mxu0
        %v2113 = vpop.f32.mrb[0].mxu0
        %v2114 = vadd.f32 %v2002, %v2113
        %v2115 = vpop.f32.mrb[0].mxu0
        %2116 = vmatprep.mubr.bf16.mxu0 0
        %2117 = vmatmul.mubr.bf16.gmra.mrb[0].mxu0 %v2032
        %v2118 = vpop.f32.mrb[0].mxu0
        %v2119 = vadd.f32 %v2002, %v2118
        %v2120 = vpop.f32.mrb[0].mxu0
        %v2121 = vpop.f32.mrb[0].mxu0
        %v2122 = vadd.f32 %v2002, %v2121
        %v2123 = vpop.f32.mrb[0].mxu0
        %2124 = vmatprep.mubr.bf16.mxu0 0
        %2125 = vmatmul.mubr.bf16.gmra.mrb[0].mxu0 %v2035
        %v2126 = vpop.f32.mrb[0].mxu0
        %v2127 = vadd.f32 %v2002, %v2126
        %v2128 = vpop.f32.mrb[0].mxu0
        %v2129 = vpop.f32.mrb[0].mxu0
        %v2130 = vadd.f32 %v2002, %v2129
        %v2131 = vpop.f32.mrb[0].mxu0
        %2132 = vmatprep.mubr.bf16.mxu0 0
        %2133 = vmatmul.mubr.bf16.gmra.mrb[0].mxu0 %v2038
        %v2134 = vpop.f32.mrb[0].mxu0
        %v2135 = vadd.f32 %v2002, %v2134
        %v2136 = vpop.f32.mrb[0].mxu0
        %v2137 = vpop.f32.mrb[0].mxu0
        %v2138 = vadd.f32 %v2002, %v2137
        %v2139 = vpop.f32.mrb[0].mxu0
        %2140 = vmatprep.mubr.bf16.mxu0 0
        %2141 = vmatmul.mubr.bf16.gmra.mrb[0].mxu0 %v2041
        %v2142 = vpop.f32.mrb[0].mxu0
        %v2143 = vadd.f32 %v2002, %v2142
        %v2144 = vpop.f32.mrb[0].mxu0
        %v2145 = vpop.f32.mrb[0].mxu0
        %v2146 = vadd.f32 %v2002, %v2145
        %v2147 = vpop.f32.mrb[0].mxu0
        %2148 = vmatprep.mubr.bf16.mxu0 0
        %2149 = vmatmul.mubr.bf16.gmra.mrb[0].mxu0 %v2044
        %v2150 = vpop.f32.mrb[0].mxu0
        %v2151 = vadd.f32 %v2002, %v2150
        %v2152 = vpop.f32.mrb[0].mxu0
        %v2153 = vpop.f32.mrb[0].mxu0
        %v2154 = vadd.f32 %v2002, %v2153
        %v2155 = vpop.f32.mrb[0].mxu0
        %2156 = vmatprep.mubr.bf16.mxu0 0
        %2157 = vmatmul.mubr.bf16.gmra.mrb[0].mxu0 %v2047
        %v2158 = vpop.f32.mrb[0].mxu0
        %v2159 = vadd.f32 %v2002, %v2158
        %v2160 = vpop.f32.mrb[0].mxu0
        %v2161 = vpop.f32.mrb[0].mxu0
        %v2162 = vadd.f32 %v2002, %v2161
        %v2163 = vpop.f32.mrb[0].mxu0
        %2164 = vmatprep.mubr.bf16.mxu0 0
        %2165 = vmatmul.mubr.bf16.gmra.mrb[0].mxu0 %v2050
        %v2166 = vpop.f32.mrb[0].mxu0
        %v2167 = vadd.f32 %v2002, %v2166
        %v2168 = vpop.f32.mrb[0].mxu0
        %v2169 = vpop.f32.mrb[0].mxu0
        %v2170 = vadd.f32 %v2002, %v2169
        %v2171 = vpop.f32.mrb[0].mxu0
        %2172 = vmatprep.mubr.bf16.mxu0 0
        %2173 = vmatmul.mubr.bf16.gmra.mrb[0].mxu0 %v2053
        %v2174 = vpop.f32.mrb[0].mxu0
        %v2175 = vadd.f32 %v2002, %v2174
        %v2176 = vpop.f32.mrb[0].mxu0
        %v2177 = vpop.f32.mrb[0].mxu0
        %v2178 = vadd.f32 %v2002, %v2177
        %v2179 = vpop.f32.mrb[0].mxu0
        %2180 = vmatprep.mubr.bf16.mxu0 0
        %2181 = vmatmul.mubr.bf16.gmra.mrb[0].mxu0 %v2056
        %v2182 = vpop.f32.mrb[0].mxu0
        %v2183 = vadd.f32 %v2002, %v2182
        %v2184 = vpop.f32.mrb[0].mxu0
        %v2185 = vpop.f32.mrb[0].mxu0
        %v2186 = vadd.f32 %v2002, %v2185
        %v2187 = vpop.f32.mrb[0].mxu0
        %2188 = vmatprep.mubr.bf16.mxu0 0
        %2189 = vmatmul.mubr.bf16.gmra.mrb[0].mxu0 %v2059
        %v2190 = vpop.f32.mrb[0].mxu0
        %v2191 = vadd.f32 %v2002, %v2190
        %v2192 = vpop.f32.mrb[0].mxu0
        %v2193 = vpop.f32.mrb[0].mxu0
        %v2194 = vadd.f32 %v2002, %v2193
        %v2195 = vpop.f32.mrb[0].mxu0
        %2196 = vmatprep.mubr.bf16.mxu0 0
        %2197 = vmatmul.mubr.bf16.gmra.mrb[0].mxu0 %v2062
        %v2198 = vpop.f32.mrb[0].mxu0
        %v2199 = vadd.f32 %v2002, %v2198
        %v2200 = vpop.f32.mrb[0].mxu0
        %v2201 = vpop.f32.mrb[0].mxu0
        %v2202 = vadd.f32 %v2002, %v2201
        %v2203 = vpop.f32.mrb[0].mxu0
        %2204 = vmatprep.mubr.bf16.mxu0 0
        %2205 = vmatmul.mubr.bf16.gmra.mrb[0].mxu0 %v2065
        %v2206 = vpop.f32.mrb[0].mxu0
        %v2207 = vadd.f32 %v2002, %v2206
        %v2208 = vpop.f32.mrb[0].mxu0
        %v2209 = vpop.f32.mrb[0].mxu0
        %v2210 = vadd.f32 %v2002, %v2209
        %v2211 = vpop.f32.mrb[0].mxu0
        %2212 = vmatprep.mubr.bf16.mxu0 0
        %2213 = vmatmul.mubr.bf16.gmra.mrb[0].mxu0 %v2068
        %v2214 = vpop.f32.mrb[0].mxu0
        %v2215 = vadd.f32 %v2002, %v2214
        %v2216 = vpop.f32.mrb[0].mxu0
        %v2217 = vpop.f32.mrb[0].mxu0
        %v2218 = vadd.f32 %v2002, %v2217
        %v2219 = vpop.f32.mrb[0].mxu0
        %2220 = vmatprep.mubr.bf16.mxu0 0
        %2221 = vmatmul.mubr.bf16.gmra.mrb[0].mxu0 %v2071
        %v2222 = vpop.f32.mrb[0].mxu0
        %v2223 = vadd.f32 %v2002, %v2222
        %v2224 = vpop.f32.mrb[0].mxu0
        %v2225 = vpop.f32.mrb[0].mxu0
        %v2226 = vadd.f32 %v2002, %v2225
        %v2227 = vpop.f32.mrb[0].mxu0
        %2228 = vmatprep.mubr.bf16.mxu0 0
        %2229 = vmatmul.mubr.bf16.gmra.mrb[0].mxu0 %v2074
        %v2230 = vpop.f32.mrb[0].mxu0
        %v2231 = vadd.f32 %v2002, %v2230
        %v2232 = vpop.f32.mrb[0].mxu0
        %v2233 = vpop.f32.mrb[0].mxu0
        %v2234 = vadd.f32 %v2002, %v2233
        %v2235 = vpop.f32.mrb[0].mxu0
        %2236 = vdwg.mxu0
        %v2237 = vmax.f32 %v2111, 0.0
        %v2238 = vmax.f32 %v2114, 0.0
        %v2239 = vmax.f32 %v2119, 0.0
        %v2240 = vmax.f32 %v2122, 0.0
        %v2241 = vmax.f32 %v2127, 0.0
        %v2242 = vmax.f32 %v2130, 0.0
        %v2243 = vmax.f32 %v2135, 0.0
        %v2244 = vmax.f32 %v2138, 0.0
        %v2245 = vmax.f32 %v2143, 0.0
        %v2246 = vmax.f32 %v2146, 0.0
        %v2247 = vmax.f32 %v2151, 0.0
        %v2248 = vmax.f32 %v2154, 0.0
        %v2249 = vmax.f32 %v2159, 0.0
        %v2250 = vmax.f32 %v2162, 0.0
        %v2251 = vmax.f32 %v2167, 0.0
        %v2252 = vmax.f32 %v2170, 0.0
        %v2253 = vmax.f32 %v2175, 0.0
        %v2254 = vmax.f32 %v2178, 0.0
        %v2255 = vmax.f32 %v2183, 0.0
        %v2256 = vmax.f32 %v2186, 0.0
        %v2257 = vmax.f32 %v2191, 0.0
        %v2258 = vmax.f32 %v2194, 0.0
        %v2259 = vmax.f32 %v2199, 0.0
        %v2260 = vmax.f32 %v2202, 0.0
        %v2261 = vmax.f32 %v2207, 0.0
        %v2262 = vmax.f32 %v2210, 0.0
        %v2263 = vmax.f32 %v2215, 0.0
        %v2264 = vmax.f32 %v2218, 0.0
        %v2265 = vmax.f32 %v2223, 0.0
        %v2266 = vmax.f32 %v2226, 0.0
        %v2267 = vmax.f32 %v2231, 0.0
        %v2268 = vmax.f32 %v2234, 0.0
        %2270 = vset.pattern.permute.xlu0 0
        %2271 = vperm.xlu0 %2270, %v1644
        %v2272 = vpop.permute.xlu0 %2271
        %2275 = vset.pattern.permute.xlu0 0
        %2276 = vperm.xlu0 %2275, %v1645
        %v2277 = vpop.permute.xlu0 %2276
        %2280 = vset.pattern.permute.xlu0 0
        %2281 = vperm.xlu0 %2280, %v1646
        %v2282 = vpop.permute.xlu0 %2281
        %2285 = vset.pattern.permute.xlu0 0
        %2286 = vperm.xlu0 %2285, %v1647
        %v2287 = vpop.permute.xlu0 %2286
        %2290 = vset.pattern.permute.xlu0 0
        %2291 = vperm.xlu0 %2290, %v1648
        %v2292 = vpop.permute.xlu0 %2291
        %2295 = vset.pattern.permute.xlu0 0
        %2296 = vperm.xlu0 %2295, %v1649
        %v2297 = vpop.permute.xlu0 %2296
        %2300 = vset.pattern.permute.xlu0 0
        %2301 = vperm.xlu0 %2300, %v1650
        %v2302 = vpop.permute.xlu0 %2301
        %2305 = vset.pattern.permute.xlu0 0
        %2306 = vperm.xlu0 %2305, %v1651
        %v2307 = vpop.permute.xlu0 %2306
        %2310 = vset.pattern.permute.xlu0 0
        %2311 = vperm.xlu0 %2310, %v1652
        %v2312 = vpop.permute.xlu0 %2311
        %2315 = vset.pattern.permute.xlu0 0
        %2316 = vperm.xlu0 %2315, %v1653
        %v2317 = vpop.permute.xlu0 %2316
        %2320 = vset.pattern.permute.xlu0 0
        %2321 = vperm.xlu0 %2320, %v1654
        %v2322 = vpop.permute.xlu0 %2321
        %2325 = vset.pattern.permute.xlu0 0
        %2326 = vperm.xlu0 %2325, %v1655
        %v2327 = vpop.permute.xlu0 %2326
        %2330 = vset.pattern.permute.xlu0 0
        %2331 = vperm.xlu0 %2330, %v1656
        %v2332 = vpop.permute.xlu0 %2331
        %2335 = vset.pattern.permute.xlu0 0
        %2336 = vperm.xlu0 %2335, %v1657
        %v2337 = vpop.permute.xlu0 %2336
        %2340 = vset.pattern.permute.xlu0 0
        %2341 = vperm.xlu0 %2340, %v1658
        %v2342 = vpop.permute.xlu0 %2341
        %2345 = vset.pattern.permute.xlu0 0
        %2346 = vperm.xlu0 %2345, %v1659
        %v2347 = vpop.permute.xlu0 %2346
        %2350 = vset.pattern.permute.xlu0 0
        %2351 = vperm.xlu0 %2350, %v1660
        %v2352 = vpop.permute.xlu0 %2351
        %2355 = vset.pattern.permute.xlu0 0
        %2356 = vperm.xlu0 %2355, %v1661
        %v2357 = vpop.permute.xlu0 %2356
        %2360 = vset.pattern.permute.xlu0 0
        %2361 = vperm.xlu0 %2360, %v1662
        %v2362 = vpop.permute.xlu0 %2361
        %2365 = vset.pattern.permute.xlu0 0
        %2366 = vperm.xlu0 %2365, %v1663
        %v2367 = vpop.permute.xlu0 %2366
        %2370 = vset.pattern.permute.xlu0 0
        %2371 = vperm.xlu0 %2370, %v1664
        %v2372 = vpop.permute.xlu0 %2371
        %2375 = vset.pattern.permute.xlu0 0
        %2376 = vperm.xlu0 %2375, %v1665
        %v2377 = vpop.permute.xlu0 %2376
        %2380 = vset.pattern.permute.xlu0 0
        %2381 = vperm.xlu0 %2380, %v1666
        %v2382 = vpop.permute.xlu0 %2381
        %2385 = vset.pattern.permute.xlu0 0
        %2386 = vperm.xlu0 %2385, %v1667
        %v2387 = vpop.permute.xlu0 %2386
        %2390 = vset.pattern.permute.xlu0 0
        %2391 = vperm.xlu0 %2390, %v1668
        %v2392 = vpop.permute.xlu0 %2391
        %2395 = vset.pattern.permute.xlu0 0
        %2396 = vperm.xlu0 %2395, %v1669
        %v2397 = vpop.permute.xlu0 %2396
        %2400 = vset.pattern.permute.xlu0 0
        %2401 = vperm.xlu0 %2400, %v1670
        %v2402 = vpop.permute.xlu0 %2401
        %2405 = vset.pattern.permute.xlu0 0
        %2406 = vperm.xlu0 %2405, %v1671
        %v2407 = vpop.permute.xlu0 %2406
        %2410 = vset.pattern.permute.xlu0 0
        %2411 = vperm.xlu0 %2410, %v1672
        %v2412 = vpop.permute.xlu0 %2411
        %2415 = vset.pattern.permute.xlu0 0
        %2416 = vperm.xlu0 %2415, %v1673
        %v2417 = vpop.permute.xlu0 %2416
        %2420 = vset.pattern.permute.xlu0 0
        %2421 = vperm.xlu0 %2420, %v1674
        %v2422 = vpop.permute.xlu0 %2421
        %2425 = vset.pattern.permute.xlu0 0
        %2426 = vperm.xlu0 %2425, %v1675
        %v2427 = vpop.permute.xlu0 %2426
        %v2429 = vmul.f32 %v2237, %v2272
        %v2430 = vmul.f32 %v2238, %v2277
        %v2431 = vmul.f32 %v2239, %v2282
        %v2432 = vmul.f32 %v2240, %v2287
        %v2433 = vmul.f32 %v2241, %v2292
        %v2434 = vmul.f32 %v2242, %v2297
        %v2435 = vmul.f32 %v2243, %v2302
        %v2436 = vmul.f32 %v2244, %v2307
        %v2437 = vmul.f32 %v2245, %v2312
        %v2438 = vmul.f32 %v2246, %v2317
        %v2439 = vmul.f32 %v2247, %v2322
        %v2440 = vmul.f32 %v2248, %v2327
        %v2441 = vmul.f32 %v2249, %v2332
        %v2442 = vmul.f32 %v2250, %v2337
        %v2443 = vmul.f32 %v2251, %v2342
        %v2444 = vmul.f32 %v2252, %v2347
        %v2445 = vmul.f32 %v2253, %v2352
        %v2446 = vmul.f32 %v2254, %v2357
        %v2447 = vmul.f32 %v2255, %v2362
        %v2448 = vmul.f32 %v2256, %v2367
        %v2449 = vmul.f32 %v2257, %v2372
        %v2450 = vmul.f32 %v2258, %v2377
        %v2451 = vmul.f32 %v2259, %v2382
        %v2452 = vmul.f32 %v2260, %v2387
        %v2453 = vmul.f32 %v2261, %v2392
        %v2454 = vmul.f32 %v2262, %v2397
        %v2455 = vmul.f32 %v2263, %v2402
        %v2456 = vmul.f32 %v2264, %v2407
        %v2457 = vmul.f32 %v2265, %v2412
        %v2458 = vmul.f32 %v2266, %v2417
        %v2459 = vmul.f32 %v2267, %v2422
        %v2460 = vmul.f32 %v2268, %v2427
        %v2461 = vsel %vm1731, %v2429, -inf
        %v2462 = vrot.slane %v2461, 4
        %v2463 = vmax.f32 %v2461, %v2462
        %v2464 = vrot.slane %v2463, 2
        %v2465 = vmax.f32 %v2463, %v2464
        %v2466 = vrot.slane %v2465, 1
        %v2467 = vmax.f32 %v2465, %v2466
        %v2468 = vsel %vm1731, %v2430, -inf
        %v2469 = vrot.slane %v2468, 4
        %v2470 = vmax.f32 %v2468, %v2469
        %v2471 = vrot.slane %v2470, 2
        %v2472 = vmax.f32 %v2470, %v2471
        %v2473 = vrot.slane %v2472, 1
        %v2474 = vmax.f32 %v2472, %v2473
        %v2475 = vsel %vm1731, %v2431, -inf
        %v2476 = vrot.slane %v2475, 4
        %v2477 = vmax.f32 %v2475, %v2476
        %v2478 = vrot.slane %v2477, 2
        %v2479 = vmax.f32 %v2477, %v2478
        %v2480 = vrot.slane %v2479, 1
        %v2481 = vmax.f32 %v2479, %v2480
        %v2482 = vsel %vm1731, %v2432, -inf
        %v2483 = vrot.slane %v2482, 4
        %v2484 = vmax.f32 %v2482, %v2483
        %v2485 = vrot.slane %v2484, 2
        %v2486 = vmax.f32 %v2484, %v2485
        %v2487 = vrot.slane %v2486, 1
        %v2488 = vmax.f32 %v2486, %v2487
        %v2489 = vsel %vm1731, %v2433, -inf
        %v2490 = vrot.slane %v2489, 4
        %v2491 = vmax.f32 %v2489, %v2490
        %v2492 = vrot.slane %v2491, 2
        %v2493 = vmax.f32 %v2491, %v2492
        %v2494 = vrot.slane %v2493, 1
        %v2495 = vmax.f32 %v2493, %v2494
        %v2496 = vsel %vm1731, %v2434, -inf
        %v2497 = vrot.slane %v2496, 4
        %v2498 = vmax.f32 %v2496, %v2497
        %v2499 = vrot.slane %v2498, 2
        %v2500 = vmax.f32 %v2498, %v2499
        %v2501 = vrot.slane %v2500, 1
        %v2502 = vmax.f32 %v2500, %v2501
        %v2503 = vsel %vm1731, %v2435, -inf
        %v2504 = vrot.slane %v2503, 4
        %v2505 = vmax.f32 %v2503, %v2504
        %v2506 = vrot.slane %v2505, 2
        %v2507 = vmax.f32 %v2505, %v2506
        %v2508 = vrot.slane %v2507, 1
        %v2509 = vmax.f32 %v2507, %v2508
        %v2510 = vsel %vm1731, %v2436, -inf
        %v2511 = vrot.slane %v2510, 4
        %v2512 = vmax.f32 %v2510, %v2511
        %v2513 = vrot.slane %v2512, 2
        %v2514 = vmax.f32 %v2512, %v2513
        %v2515 = vrot.slane %v2514, 1
        %v2516 = vmax.f32 %v2514, %v2515
        %v2517 = vsel %vm1731, %v2437, -inf
        %v2518 = vrot.slane %v2517, 4
        %v2519 = vmax.f32 %v2517, %v2518
        %v2520 = vrot.slane %v2519, 2
        %v2521 = vmax.f32 %v2519, %v2520
        %v2522 = vrot.slane %v2521, 1
        %v2523 = vmax.f32 %v2521, %v2522
        %v2524 = vsel %vm1731, %v2438, -inf
        %v2525 = vrot.slane %v2524, 4
        %v2526 = vmax.f32 %v2524, %v2525
        %v2527 = vrot.slane %v2526, 2
        %v2528 = vmax.f32 %v2526, %v2527
        %v2529 = vrot.slane %v2528, 1
        %v2530 = vmax.f32 %v2528, %v2529
        %v2531 = vsel %vm1731, %v2439, -inf
        %v2532 = vrot.slane %v2531, 4
        %v2533 = vmax.f32 %v2531, %v2532
        %v2534 = vrot.slane %v2533, 2
        %v2535 = vmax.f32 %v2533, %v2534
        %v2536 = vrot.slane %v2535, 1
        %v2537 = vmax.f32 %v2535, %v2536
        %v2538 = vsel %vm1731, %v2440, -inf
        %v2539 = vrot.slane %v2538, 4
        %v2540 = vmax.f32 %v2538, %v2539
        %v2541 = vrot.slane %v2540, 2
        %v2542 = vmax.f32 %v2540, %v2541
        %v2543 = vrot.slane %v2542, 1
        %v2544 = vmax.f32 %v2542, %v2543
        %v2545 = vsel %vm1731, %v2441, -inf
        %v2546 = vrot.slane %v2545, 4
        %v2547 = vmax.f32 %v2545, %v2546
        %v2548 = vrot.slane %v2547, 2
        %v2549 = vmax.f32 %v2547, %v2548
        %v2550 = vrot.slane %v2549, 1
        %v2551 = vmax.f32 %v2549, %v2550
        %v2552 = vsel %vm1731, %v2442, -inf
        %v2553 = vrot.slane %v2552, 4
        %v2554 = vmax.f32 %v2552, %v2553
        %v2555 = vrot.slane %v2554, 2
        %v2556 = vmax.f32 %v2554, %v2555
        %v2557 = vrot.slane %v2556, 1
        %v2558 = vmax.f32 %v2556, %v2557
        %v2559 = vsel %vm1731, %v2443, -inf
        %v2560 = vrot.slane %v2559, 4
        %v2561 = vmax.f32 %v2559, %v2560
        %v2562 = vrot.slane %v2561, 2
        %v2563 = vmax.f32 %v2561, %v2562
        %v2564 = vrot.slane %v2563, 1
        %v2565 = vmax.f32 %v2563, %v2564
        %v2566 = vsel %vm1731, %v2444, -inf
        %v2567 = vrot.slane %v2566, 4
        %v2568 = vmax.f32 %v2566, %v2567
        %v2569 = vrot.slane %v2568, 2
        %v2570 = vmax.f32 %v2568, %v2569
        %v2571 = vrot.slane %v2570, 1
        %v2572 = vmax.f32 %v2570, %v2571
        %v2573 = vsel %vm1731, %v2445, -inf
        %v2574 = vrot.slane %v2573, 4
        %v2575 = vmax.f32 %v2573, %v2574
        %v2576 = vrot.slane %v2575, 2
        %v2577 = vmax.f32 %v2575, %v2576
        %v2578 = vrot.slane %v2577, 1
        %v2579 = vmax.f32 %v2577, %v2578
        %v2580 = vsel %vm1731, %v2446, -inf
        %v2581 = vrot.slane %v2580, 4
        %v2582 = vmax.f32 %v2580, %v2581
        %v2583 = vrot.slane %v2582, 2
        %v2584 = vmax.f32 %v2582, %v2583
        %v2585 = vrot.slane %v2584, 1
        %v2586 = vmax.f32 %v2584, %v2585
        %v2587 = vsel %vm1731, %v2447, -inf
        %v2588 = vrot.slane %v2587, 4
        %v2589 = vmax.f32 %v2587, %v2588
        %v2590 = vrot.slane %v2589, 2
        %v2591 = vmax.f32 %v2589, %v2590
        %v2592 = vrot.slane %v2591, 1
        %v2593 = vmax.f32 %v2591, %v2592
        %v2594 = vsel %vm1731, %v2448, -inf
        %v2595 = vrot.slane %v2594, 4
        %v2596 = vmax.f32 %v2594, %v2595
        %v2597 = vrot.slane %v2596, 2
        %v2598 = vmax.f32 %v2596, %v2597
        %v2599 = vrot.slane %v2598, 1
        %v2600 = vmax.f32 %v2598, %v2599
        %v2601 = vsel %vm1731, %v2449, -inf
        %v2602 = vrot.slane %v2601, 4
        %v2603 = vmax.f32 %v2601, %v2602
        %v2604 = vrot.slane %v2603, 2
        %v2605 = vmax.f32 %v2603, %v2604
        %v2606 = vrot.slane %v2605, 1
        %v2607 = vmax.f32 %v2605, %v2606
        %v2608 = vsel %vm1731, %v2450, -inf
        %v2609 = vrot.slane %v2608, 4
        %v2610 = vmax.f32 %v2608, %v2609
        %v2611 = vrot.slane %v2610, 2
        %v2612 = vmax.f32 %v2610, %v2611
        %v2613 = vrot.slane %v2612, 1
        %v2614 = vmax.f32 %v2612, %v2613
        %v2615 = vsel %vm1731, %v2451, -inf
        %v2616 = vrot.slane %v2615, 4
        %v2617 = vmax.f32 %v2615, %v2616
        %v2618 = vrot.slane %v2617, 2
        %v2619 = vmax.f32 %v2617, %v2618
        %v2620 = vrot.slane %v2619, 1
        %v2621 = vmax.f32 %v2619, %v2620
        %v2622 = vsel %vm1731, %v2452, -inf
        %v2623 = vrot.slane %v2622, 4
        %v2624 = vmax.f32 %v2622, %v2623
        %v2625 = vrot.slane %v2624, 2
        %v2626 = vmax.f32 %v2624, %v2625
        %v2627 = vrot.slane %v2626, 1
        %v2628 = vmax.f32 %v2626, %v2627
        %v2629 = vsel %vm1731, %v2453, -inf
        %v2630 = vrot.slane %v2629, 4
        %v2631 = vmax.f32 %v2629, %v2630
        %v2632 = vrot.slane %v2631, 2
        %v2633 = vmax.f32 %v2631, %v2632
        %v2634 = vrot.slane %v2633, 1
        %v2635 = vmax.f32 %v2633, %v2634
        %v2636 = vsel %vm1731, %v2454, -inf
        %v2637 = vrot.slane %v2636, 4
        %v2638 = vmax.f32 %v2636, %v2637
        %v2639 = vrot.slane %v2638, 2
        %v2640 = vmax.f32 %v2638, %v2639
        %v2641 = vrot.slane %v2640, 1
        %v2642 = vmax.f32 %v2640, %v2641
        %v2643 = vsel %vm1731, %v2455, -inf
        %v2644 = vrot.slane %v2643, 4
        %v2645 = vmax.f32 %v2643, %v2644
        %v2646 = vrot.slane %v2645, 2
        %v2647 = vmax.f32 %v2645, %v2646
        %v2648 = vrot.slane %v2647, 1
        %v2649 = vmax.f32 %v2647, %v2648
        %v2650 = vsel %vm1731, %v2456, -inf
        %v2651 = vrot.slane %v2650, 4
        %v2652 = vmax.f32 %v2650, %v2651
        %v2653 = vrot.slane %v2652, 2
        %v2654 = vmax.f32 %v2652, %v2653
        %v2655 = vrot.slane %v2654, 1
        %v2656 = vmax.f32 %v2654, %v2655
        %v2657 = vsel %vm1731, %v2457, -inf
        %v2658 = vrot.slane %v2657, 4
        %v2659 = vmax.f32 %v2657, %v2658
        %v2660 = vrot.slane %v2659, 2
        %v2661 = vmax.f32 %v2659, %v2660
        %v2662 = vrot.slane %v2661, 1
        %v2663 = vmax.f32 %v2661, %v2662
        %v2664 = vsel %vm1731, %v2458, -inf
        %v2665 = vrot.slane %v2664, 4
        %v2666 = vmax.f32 %v2664, %v2665
        %v2667 = vrot.slane %v2666, 2
        %v2668 = vmax.f32 %v2666, %v2667
        %v2669 = vrot.slane %v2668, 1
        %v2670 = vmax.f32 %v2668, %v2669
        %v2671 = vsel %vm1731, %v2459, -inf
        %v2672 = vrot.slane %v2671, 4
        %v2673 = vmax.f32 %v2671, %v2672
        %v2674 = vrot.slane %v2673, 2
        %v2675 = vmax.f32 %v2673, %v2674
        %v2676 = vrot.slane %v2675, 1
        %v2677 = vmax.f32 %v2675, %v2676
        %v2678 = vsel %vm1731, %v2460, -inf
        %v2679 = vrot.slane %v2678, 4
        %v2680 = vmax.f32 %v2678, %v2679
        %v2681 = vrot.slane %v2680, 2
        %v2682 = vmax.f32 %v2680, %v2681
        %v2683 = vrot.slane %v2682, 1
        %v2684 = vmax.f32 %v2682, %v2683
        %v2685 = vpack.c.bf16 %v2467, %v2467
        %v2686 = vpack.c.bf16 %v2474, %v2474
        %v2687 = vpack.c.bf16 %v2481, %v2481
        %v2688 = vpack.c.bf16 %v2488, %v2488
        %v2689 = vpack.c.bf16 %v2495, %v2495
        %v2690 = vpack.c.bf16 %v2502, %v2502
        %v2691 = vpack.c.bf16 %v2509, %v2509
        %v2692 = vpack.c.bf16 %v2516, %v2516
        %v2693 = vpack.c.bf16 %v2523, %v2523
        %v2694 = vpack.c.bf16 %v2530, %v2530
        %v2695 = vpack.c.bf16 %v2537, %v2537
        %v2696 = vpack.c.bf16 %v2544, %v2544
        %v2697 = vpack.c.bf16 %v2551, %v2551
        %v2698 = vpack.c.bf16 %v2558, %v2558
        %v2699 = vpack.c.bf16 %v2565, %v2565
        %v2700 = vpack.c.bf16 %v2572, %v2572
        %v2701 = vpack.c.bf16 %v2579, %v2579
        %v2702 = vpack.c.bf16 %v2586, %v2586
        %v2703 = vpack.c.bf16 %v2593, %v2593
        %v2704 = vpack.c.bf16 %v2600, %v2600
        %v2705 = vpack.c.bf16 %v2607, %v2607
        %v2706 = vpack.c.bf16 %v2614, %v2614
        %v2707 = vpack.c.bf16 %v2621, %v2621
        %v2708 = vpack.c.bf16 %v2628, %v2628
        %v2709 = vpack.c.bf16 %v2635, %v2635
        %v2710 = vpack.c.bf16 %v2642, %v2642
        %v2711 = vpack.c.bf16 %v2649, %v2649
        %v2712 = vpack.c.bf16 %v2656, %v2656
        %v2713 = vpack.c.bf16 %v2663, %v2663
        %v2714 = vpack.c.bf16 %v2670, %v2670
        %v2715 = vpack.c.bf16 %v2677, %v2677
        %v2716 = vpack.c.bf16 %v2684, %v2684
        %v2717 = vld [vmem:[%s8] sm:$0xf]
        %v2718 = vld [vmem:[%s8 + $0x4] sm:$0xf]
        %v2719 = vld [vmem:[%s8 + $0x8] sm:$0xf]
        %v2720 = vld [vmem:[%s8 + $0xc] sm:$0xf]
        %v2721 = vld [vmem:[%s8 + $0x10] sm:$0xf]
        %v2722 = vld [vmem:[%s8 + $0x14] sm:$0xf]
        %v2723 = vld [vmem:[%s8 + $0x18] sm:$0xf]
        %v2724 = vld [vmem:[%s8 + $0x1c] sm:$0xf]
        %v2725 = vld [vmem:[%s9] sm:$0x1]
        %v2727 = vlaneseq
        %v2728 = vshrl.u32 %v2727, 7
        %v2729 = vsub.s32 0, %v2728
        %v2730 = vrot.slane %v2725, %v2729
        %v2764 = vunpack.c.l.b16 %v2685
        %v2765 = vunpack.c.l.b16 %v2686
        %v2766 = vunpack.c.l.b16 %v2687
        %v2767 = vunpack.c.l.b16 %v2688
        %v2768 = vunpack.c.l.b16 %v2689
        %v2769 = vunpack.c.l.b16 %v2690
        %v2770 = vunpack.c.l.b16 %v2691
        %v2771 = vunpack.c.l.b16 %v2692
        %v2772 = vunpack.c.l.b16 %v2693
        %v2773 = vunpack.c.l.b16 %v2694
        %v2774 = vunpack.c.l.b16 %v2695
        %v2775 = vunpack.c.l.b16 %v2696
        %v2776 = vunpack.c.l.b16 %v2697
        %v2777 = vunpack.c.l.b16 %v2698
        %v2778 = vunpack.c.l.b16 %v2699
        %v2779 = vunpack.c.l.b16 %v2700
        %v2780 = vunpack.c.l.b16 %v2701
        %v2781 = vunpack.c.l.b16 %v2702
        %v2782 = vunpack.c.l.b16 %v2703
        %v2783 = vunpack.c.l.b16 %v2704
        %v2784 = vunpack.c.l.b16 %v2705
        %v2785 = vunpack.c.l.b16 %v2706
        %v2786 = vunpack.c.l.b16 %v2707
        %v2787 = vunpack.c.l.b16 %v2708
        %v2788 = vunpack.c.l.b16 %v2709
        %v2789 = vunpack.c.l.b16 %v2710
        %v2790 = vunpack.c.l.b16 %v2711
        %v2791 = vunpack.c.l.b16 %v2712
        %v2792 = vunpack.c.l.b16 %v2713
        %v2793 = vunpack.c.l.b16 %v2714
        %v2794 = vunpack.c.l.b16 %v2715
        %v2795 = vunpack.c.l.b16 %v2716
        %vm2796 = vcmask 1041409
        %v2797 = vsel %vm2796, %v2765, %v2764
        %vm2798 = vcmask 1042434
        %v2799 = vsel %vm2798, %v2766, %v2797
        %vm2800 = vcmask 1043459
        %v2801 = vsel %vm2800, %v2767, %v2799
        %vm2802 = vcmask 1044484
        %v2803 = vsel %vm2802, %v2768, %v2801
        %vm2804 = vcmask 1045509
        %v2805 = vsel %vm2804, %v2769, %v2803
        %vm2806 = vcmask 1046534
        %v2807 = vsel %vm2806, %v2770, %v2805
        %vm2808 = vcmask 1047559
        %v2809 = vsel %vm2808, %v2771, %v2807
        %v2810 = vsel %vm2796, %v2773, %v2772
        %v2811 = vsel %vm2798, %v2774, %v2810
        %v2812 = vsel %vm2800, %v2775, %v2811
        %v2813 = vsel %vm2802, %v2776, %v2812
        %v2814 = vsel %vm2804, %v2777, %v2813
        %v2815 = vsel %vm2806, %v2778, %v2814
        %v2816 = vsel %vm2808, %v2779, %v2815
        %v2817 = vsel %vm2796, %v2781, %v2780
        %v2818 = vsel %vm2798, %v2782, %v2817
        %v2819 = vsel %vm2800, %v2783, %v2818
        %v2820 = vsel %vm2802, %v2784, %v2819
        %v2821 = vsel %vm2804, %v2785, %v2820
        %v2822 = vsel %vm2806, %v2786, %v2821
        %v2823 = vsel %vm2808, %v2787, %v2822
        %v2824 = vsel %vm2796, %v2789, %v2788
        %v2825 = vsel %vm2798, %v2790, %v2824
        %v2826 = vsel %vm2800, %v2791, %v2825
        %v2827 = vsel %vm2802, %v2792, %v2826
        %v2828 = vsel %vm2804, %v2793, %v2827
        %v2829 = vsel %vm2806, %v2794, %v2828
        %v2830 = vsel %vm2808, %v2795, %v2829
        %v2831 = vpack.c.b16 %v2816, %v2809
        %v2832 = vpack.c.b16 %v2830, %v2823
        %v2841 = vunpack.c.l.b16 %v2717
        %v2842 = vunpack.c.l.b16 %v2718
        %v2843 = vunpack.c.l.b16 %v2719
        %v2844 = vunpack.c.l.b16 %v2720
        %v2845 = vunpack.c.l.b16 %v2721
        %v2846 = vunpack.c.l.b16 %v2722
        %v2847 = vunpack.c.l.b16 %v2723
        %v2848 = vunpack.c.l.b16 %v2724
        %v2849 = vpack.c.b16 %v2842, %v2841
        %v2850 = vpack.c.b16 %v2844, %v2843
        %v2851 = vpack.c.b16 %v2846, %v2845
        %v2852 = vpack.c.b16 %v2848, %v2847
        %v2858 = vsel %vm1731, %v2831, 0
        %v2861 = vsel %vm1731, %v2832, 0
        %2863 = vmatprep.subr.bf16.mxu0 0
        %2864 = vmatpush1.bf16.msra.mxu0 %v2849
        %2865 = vmatprep.subr.bf16.mxu0 0
        %2866 = vmatpush1.bf16.msra.mxu0 %v2850
        %2867 = vmatprep.subr.bf16.mxu0 0
        %2868 = vmatpush1.bf16.msra.mxu0 %v2851
        %2869 = vmatprep.subr.bf16.mxu0 0
        %2870 = vmatpush1.bf16.msra.mxu0 %v2852
        %2871 = vmatprep.subr.bf16.mxu0 0
        %2872 = vmatpush1.bf16.msra.mxu0 0
        %2873 = vmatprep.subr.bf16.mxu0 0
        %2874 = vmatpush1.bf16.msra.mxu0 0
        %2875 = vmatprep.subr.bf16.mxu0 0
        %2876 = vmatpush1.bf16.msra.mxu0 0
        %2877 = vmatprep.subr.bf16.mxu0 0
        %2878 = vmatpush1.bf16.msra.mxu0 0
        %2879 = vmatprep.subr.bf16.mxu0 0
        %2880 = vmatpush1.bf16.msra.mxu0 0
        %2881 = vmatprep.subr.bf16.mxu0 0
        %2882 = vmatpush1.bf16.msra.mxu0 0
        %2883 = vmatprep.subr.bf16.mxu0 0
        %2884 = vmatpush1.bf16.msra.mxu0 0
        %2885 = vmatprep.subr.bf16.mxu0 0
        %2886 = vmatpush1.bf16.msra.mxu0 0
        %2887 = vmatprep.subr.bf16.mxu0 0
        %2888 = vmatpush1.bf16.msra.mxu0 0
        %2889 = vmatprep.subr.bf16.mxu0 0
        %2890 = vmatpush1.bf16.msra.mxu0 0
        %2891 = vmatprep.subr.bf16.mxu0 0
        %2892 = vmatpush1.bf16.msra.mxu0 0
        %2893 = vmatprep.subr.bf16.mxu0 0
        %2894 = vmatpush1.bf16.msra.mxu0 0
        %2895 = vmatprep.mubr.bf16.mxu0 0
        %2896 = vmatmul.mubr.bf16.gmra.mrb[0].mxu0 %v2858
        %v2897 = vpop.f32.mrb[0].mxu0
        %v2898 = vadd.f32 %v2730, %v2897
        %v2899 = vpop.f32.mrb[0].mxu0
        %v2900 = vpop.f32.mrb[0].mxu0
        %v2901 = vadd.f32 %v2730, %v2900
        %v2902 = vpop.f32.mrb[0].mxu0
        %2903 = vmatprep.mubr.bf16.mxu0 0
        %2904 = vmatmul.mubr.bf16.gmra.mrb[0].mxu0 %v2861
        %v2905 = vpop.f32.mrb[0].mxu0
        %v2906 = vadd.f32 %v2730, %v2905
        %v2907 = vpop.f32.mrb[0].mxu0
        %v2908 = vpop.f32.mrb[0].mxu0
        %v2909 = vadd.f32 %v2730, %v2908
        %v2910 = vpop.f32.mrb[0].mxu0
        %2911 = vdwg.mxu0
        %v2912 = vpack.c.bf16 %v2430, %v2429
        %v2913 = vpack.c.bf16 %v2432, %v2431
        %v2914 = vpack.c.bf16 %v2434, %v2433
        %v2915 = vpack.c.bf16 %v2436, %v2435
        %v2916 = vpack.c.bf16 %v2438, %v2437
        %v2917 = vpack.c.bf16 %v2440, %v2439
        %v2918 = vpack.c.bf16 %v2442, %v2441
        %v2919 = vpack.c.bf16 %v2444, %v2443
        %v2920 = vpack.c.bf16 %v2446, %v2445
        %v2921 = vpack.c.bf16 %v2448, %v2447
        %v2922 = vpack.c.bf16 %v2450, %v2449
        %v2923 = vpack.c.bf16 %v2452, %v2451
        %v2924 = vpack.c.bf16 %v2454, %v2453
        %v2925 = vpack.c.bf16 %v2456, %v2455
        %v2926 = vpack.c.bf16 %v2458, %v2457
        %v2927 = vpack.c.bf16 %v2460, %v2459
        %v2928 = vld [vmem:[%s7] sm:$0xf]
        %v2929 = vld [vmem:[%s7 + $0x4] sm:$0xf]
        %v2930 = vld [vmem:[%s7 + $0x8] sm:$0xf]
        %v2931 = vld [vmem:[%s7 + $0xc] sm:$0xf]
        %v2932 = vld [vmem:[%s7 + $0x10] sm:$0xf]
        %v2933 = vld [vmem:[%s7 + $0x14] sm:$0xf]
        %v2934 = vld [vmem:[%s7 + $0x18] sm:$0xf]
        %v2935 = vld [vmem:[%s7 + $0x1c] sm:$0xf]
        %v2944 = vunpack.c.l.b16 %v2928
        %v2945 = vunpack.c.l.b16 %v2929
        %v2946 = vunpack.c.l.b16 %v2930
        %v2947 = vunpack.c.l.b16 %v2931
        %v2948 = vunpack.c.l.b16 %v2932
        %v2949 = vunpack.c.l.b16 %v2933
        %v2950 = vunpack.c.l.b16 %v2934
        %v2951 = vunpack.c.l.b16 %v2935
        %v2952 = vpack.c.b16 %v2945, %v2944
        %v2953 = vpack.c.b16 %v2947, %v2946
        %v2954 = vpack.c.b16 %v2949, %v2948
        %v2955 = vpack.c.b16 %v2951, %v2950
        %v2961 = vsel %vm1731, %v2912, 0
        %v2964 = vsel %vm1731, %v2913, 0
        %v2967 = vsel %vm1731, %v2914, 0
        %v2970 = vsel %vm1731, %v2915, 0
        %v2973 = vsel %vm1731, %v2916, 0
        %v2976 = vsel %vm1731, %v2917, 0
        %v2979 = vsel %vm1731, %v2918, 0
        %v2982 = vsel %vm1731, %v2919, 0
        %v2985 = vsel %vm1731, %v2920, 0
        %v2988 = vsel %vm1731, %v2921, 0
        %v2991 = vsel %vm1731, %v2922, 0
        %v2994 = vsel %vm1731, %v2923, 0
        %v2997 = vsel %vm1731, %v2924, 0
        %v3000 = vsel %vm1731, %v2925, 0
        %v3003 = vsel %vm1731, %v2926, 0
        %v3006 = vsel %vm1731, %v2927, 0
        %3008 = vmatprep.subr.bf16.mxu0 0
        %3009 = vmatpush1.bf16.msra.mxu0 %v2952
        %3010 = vmatprep.subr.bf16.mxu0 0
        %3011 = vmatpush1.bf16.msra.mxu0 %v2953
        %3012 = vmatprep.subr.bf16.mxu0 0
        %3013 = vmatpush1.bf16.msra.mxu0 %v2954
        %3014 = vmatprep.subr.bf16.mxu0 0
        %3015 = vmatpush1.bf16.msra.mxu0 %v2955
        %3016 = vmatprep.subr.bf16.mxu0 0
        %3017 = vmatpush1.bf16.msra.mxu0 0
        %3018 = vmatprep.subr.bf16.mxu0 0
        %3019 = vmatpush1.bf16.msra.mxu0 0
        %3020 = vmatprep.subr.bf16.mxu0 0
        %3021 = vmatpush1.bf16.msra.mxu0 0
        %3022 = vmatprep.subr.bf16.mxu0 0
        %3023 = vmatpush1.bf16.msra.mxu0 0
        %3024 = vmatprep.subr.bf16.mxu0 0
        %3025 = vmatpush1.bf16.msra.mxu0 0
        %3026 = vmatprep.subr.bf16.mxu0 0
        %3027 = vmatpush1.bf16.msra.mxu0 0
        %3028 = vmatprep.subr.bf16.mxu0 0
        %3029 = vmatpush1.bf16.msra.mxu0 0
        %3030 = vmatprep.subr.bf16.mxu0 0
        %3031 = vmatpush1.bf16.msra.mxu0 0
        %3032 = vmatprep.subr.bf16.mxu0 0
        %3033 = vmatpush1.bf16.msra.mxu0 0
        %3034 = vmatprep.subr.bf16.mxu0 0
        %3035 = vmatpush1.bf16.msra.mxu0 0
        %3036 = vmatprep.subr.bf16.mxu0 0
        %3037 = vmatpush1.bf16.msra.mxu0 0
        %3038 = vmatprep.subr.bf16.mxu0 0
        %3039 = vmatpush1.bf16.msra.mxu0 0
        %3040 = vmatprep.mubr.bf16.mxu0 0
        %3041 = vmatmul.mubr.bf16.gmra.mrb[0].mxu0 %v2961
        %v3042 = vpop.f32.mrb[0].mxu0
        %v3043 = vadd.f32 0.0, %v3042
        %v3044 = vpop.f32.mrb[0].mxu0
        %v3045 = vpop.f32.mrb[0].mxu0
        %v3046 = vadd.f32 0.0, %v3045
        %v3047 = vpop.f32.mrb[0].mxu0
        %3048 = vmatprep.mubr.bf16.mxu0 0
        %3049 = vmatmul.mubr.bf16.gmra.mrb[0].mxu0 %v2964
        %v3050 = vpop.f32.mrb[0].mxu0
        %v3051 = vadd.f32 0.0, %v3050
        %v3052 = vpop.f32.mrb[0].mxu0
        %v3053 = vpop.f32.mrb[0].mxu0
        %v3054 = vadd.f32 0.0, %v3053
        %v3055 = vpop.f32.mrb[0].mxu0
        %3056 = vmatprep.mubr.bf16.mxu0 0
        %3057 = vmatmul.mubr.bf16.gmra.mrb[0].mxu0 %v2967
        %v3058 = vpop.f32.mrb[0].mxu0
        %v3059 = vadd.f32 0.0, %v3058
        %v3060 = vpop.f32.mrb[0].mxu0
        %v3061 = vpop.f32.mrb[0].mxu0
        %v3062 = vadd.f32 0.0, %v3061
        %v3063 = vpop.f32.mrb[0].mxu0
        %3064 = vmatprep.mubr.bf16.mxu0 0
        %3065 = vmatmul.mubr.bf16.gmra.mrb[0].mxu0 %v2970
        %v3066 = vpop.f32.mrb[0].mxu0
        %v3067 = vadd.f32 0.0, %v3066
        %v3068 = vpop.f32.mrb[0].mxu0
        %v3069 = vpop.f32.mrb[0].mxu0
        %v3070 = vadd.f32 0.0, %v3069
        %v3071 = vpop.f32.mrb[0].mxu0
        %3072 = vmatprep.mubr.bf16.mxu0 0
        %3073 = vmatmul.mubr.bf16.gmra.mrb[0].mxu0 %v2973
        %v3074 = vpop.f32.mrb[0].mxu0
        %v3075 = vadd.f32 0.0, %v3074
        %v3076 = vpop.f32.mrb[0].mxu0
        %v3077 = vpop.f32.mrb[0].mxu0
        %v3078 = vadd.f32 0.0, %v3077
        %v3079 = vpop.f32.mrb[0].mxu0
        %3080 = vmatprep.mubr.bf16.mxu0 0
        %3081 = vmatmul.mubr.bf16.gmra.mrb[0].mxu0 %v2976
        %v3082 = vpop.f32.mrb[0].mxu0
        %v3083 = vadd.f32 0.0, %v3082
        %v3084 = vpop.f32.mrb[0].mxu0
        %v3085 = vpop.f32.mrb[0].mxu0
        %v3086 = vadd.f32 0.0, %v3085
        %v3087 = vpop.f32.mrb[0].mxu0
        %3088 = vmatprep.mubr.bf16.mxu0 0
        %3089 = vmatmul.mubr.bf16.gmra.mrb[0].mxu0 %v2979
        %v3090 = vpop.f32.mrb[0].mxu0
        %v3091 = vadd.f32 0.0, %v3090
        %v3092 = vpop.f32.mrb[0].mxu0
        %v3093 = vpop.f32.mrb[0].mxu0
        %v3094 = vadd.f32 0.0, %v3093
        %v3095 = vpop.f32.mrb[0].mxu0
        %3096 = vmatprep.mubr.bf16.mxu0 0
        %3097 = vmatmul.mubr.bf16.gmra.mrb[0].mxu0 %v2982
        %v3098 = vpop.f32.mrb[0].mxu0
        %v3099 = vadd.f32 0.0, %v3098
        %v3100 = vpop.f32.mrb[0].mxu0
        %v3101 = vpop.f32.mrb[0].mxu0
        %v3102 = vadd.f32 0.0, %v3101
        %v3103 = vpop.f32.mrb[0].mxu0
        %3104 = vmatprep.mubr.bf16.mxu0 0
        %3105 = vmatmul.mubr.bf16.gmra.mrb[0].mxu0 %v2985
        %v3106 = vpop.f32.mrb[0].mxu0
        %v3107 = vadd.f32 0.0, %v3106
        %v3108 = vpop.f32.mrb[0].mxu0
        %v3109 = vpop.f32.mrb[0].mxu0
        %v3110 = vadd.f32 0.0, %v3109
        %v3111 = vpop.f32.mrb[0].mxu0
        %3112 = vmatprep.mubr.bf16.mxu0 0
        %3113 = vmatmul.mubr.bf16.gmra.mrb[0].mxu0 %v2988
        %v3114 = vpop.f32.mrb[0].mxu0
        %v3115 = vadd.f32 0.0, %v3114
        %v3116 = vpop.f32.mrb[0].mxu0
        %v3117 = vpop.f32.mrb[0].mxu0
        %v3118 = vadd.f32 0.0, %v3117
        %v3119 = vpop.f32.mrb[0].mxu0
        %3120 = vmatprep.mubr.bf16.mxu0 0
        %3121 = vmatmul.mubr.bf16.gmra.mrb[0].mxu0 %v2991
        %v3122 = vpop.f32.mrb[0].mxu0
        %v3123 = vadd.f32 0.0, %v3122
        %v3124 = vpop.f32.mrb[0].mxu0
        %v3125 = vpop.f32.mrb[0].mxu0
        %v3126 = vadd.f32 0.0, %v3125
        %v3127 = vpop.f32.mrb[0].mxu0
        %3128 = vmatprep.mubr.bf16.mxu0 0
        %3129 = vmatmul.mubr.bf16.gmra.mrb[0].mxu0 %v2994
        %v3130 = vpop.f32.mrb[0].mxu0
        %v3131 = vadd.f32 0.0, %v3130
        %v3132 = vpop.f32.mrb[0].mxu0
        %v3133 = vpop.f32.mrb[0].mxu0
        %v3134 = vadd.f32 0.0, %v3133
        %v3135 = vpop.f32.mrb[0].mxu0
        %3136 = vmatprep.mubr.bf16.mxu0 0
        %3137 = vmatmul.mubr.bf16.gmra.mrb[0].mxu0 %v2997
        %v3138 = vpop.f32.mrb[0].mxu0
        %v3139 = vadd.f32 0.0, %v3138
        %v3140 = vpop.f32.mrb[0].mxu0
        %v3141 = vpop.f32.mrb[0].mxu0
        %v3142 = vadd.f32 0.0, %v3141
        %v3143 = vpop.f32.mrb[0].mxu0
        %3144 = vmatprep.mubr.bf16.mxu0 0
        %3145 = vmatmul.mubr.bf16.gmra.mrb[0].mxu0 %v3000
        %v3146 = vpop.f32.mrb[0].mxu0
        %v3147 = vadd.f32 0.0, %v3146
        %v3148 = vpop.f32.mrb[0].mxu0
        %v3149 = vpop.f32.mrb[0].mxu0
        %v3150 = vadd.f32 0.0, %v3149
        %v3151 = vpop.f32.mrb[0].mxu0
        %3152 = vmatprep.mubr.bf16.mxu0 0
        %3153 = vmatmul.mubr.bf16.gmra.mrb[0].mxu0 %v3003
        %v3154 = vpop.f32.mrb[0].mxu0
        %v3155 = vadd.f32 0.0, %v3154
        %v3156 = vpop.f32.mrb[0].mxu0
        %v3157 = vpop.f32.mrb[0].mxu0
        %v3158 = vadd.f32 0.0, %v3157
        %v3159 = vpop.f32.mrb[0].mxu0
        %3160 = vmatprep.mubr.bf16.mxu0 0
        %3161 = vmatmul.mubr.bf16.gmra.mrb[0].mxu0 %v3006
        %v3162 = vpop.f32.mrb[0].mxu0
        %v3163 = vadd.f32 0.0, %v3162
        %v3164 = vpop.f32.mrb[0].mxu0
        %v3165 = vpop.f32.mrb[0].mxu0
        %v3166 = vadd.f32 0.0, %v3165
        %v3167 = vpop.f32.mrb[0].mxu0
        %3168 = vdwg.mxu0
        %v3173 = vcombine.high %v2898, %v2898
        %v3175 = vunpack.c.l.s4 1966171168
        %v3176 = vunpack.c.0.s8 %v3175
        %v3177 = vlaneseq
        %v3178 = vshrl.u32 %v3177, 7
        %v3179 = vsub.s32 %v3176, %v3178
        %v3180 = vrot.slane %v2898, %v3179
        %v3182 = vunpack.c.l.s4 1966171168
        %v3183 = vunpack.c.0.s8 %v3182
        %v3184 = vlaneseq
        %v3185 = vshrl.u32 %v3184, 7
        %v3186 = vsub.s32 %v3183, %v3185
        %v3187 = vrot.slane %v3173, %v3186
        %v3188 = vcombine.high %v3180, %v3180
        %v3189 = vcombine.high %v3187, %v3187
        %v3191 = vunpack.c.l.s4 1966171168
        %v3192 = vunpack.c.0.s8 %v3191
        %v3193 = vlaneseq
        %v3194 = vshrl.u32 %v3193, 7
        %v3195 = vsub.s32 %v3192, %v3194
        %v3196 = vrot.slane %v3180, %v3195
        %v3198 = vunpack.c.l.s4 1966171168
        %v3199 = vunpack.c.0.s8 %v3198
        %v3200 = vlaneseq
        %v3201 = vshrl.u32 %v3200, 7
        %v3202 = vsub.s32 %v3199, %v3201
        %v3203 = vrot.slane %v3187, %v3202
        %v3205 = vunpack.c.l.s4 1966171168
        %v3206 = vunpack.c.0.s8 %v3205
        %v3207 = vlaneseq
        %v3208 = vshrl.u32 %v3207, 7
        %v3209 = vsub.s32 %v3206, %v3208
        %v3210 = vrot.slane %v3188, %v3209
        %v3212 = vunpack.c.l.s4 1966171168
        %v3213 = vunpack.c.0.s8 %v3212
        %v3214 = vlaneseq
        %v3215 = vshrl.u32 %v3214, 7
        %v3216 = vsub.s32 %v3213, %v3215
        %v3217 = vrot.slane %v3189, %v3216
        %v3218 = vcombine.high %v3196, %v3196
        %v3219 = vcombine.high %v3203, %v3203
        %v3220 = vcombine.high %v3210, %v3210
        %v3221 = vcombine.high %v3217, %v3217
        %v3222 = vcombine.high %v2901, %v2901
        %v3224 = vunpack.c.l.s4 1966171168
        %v3225 = vunpack.c.0.s8 %v3224
        %v3226 = vlaneseq
        %v3227 = vshrl.u32 %v3226, 7
        %v3228 = vsub.s32 %v3225, %v3227
        %v3229 = vrot.slane %v2901, %v3228
        %v3231 = vunpack.c.l.s4 1966171168
        %v3232 = vunpack.c.0.s8 %v3231
        %v3233 = vlaneseq
        %v3234 = vshrl.u32 %v3233, 7
        %v3235 = vsub.s32 %v3232, %v3234
        %v3236 = vrot.slane %v3222, %v3235
        %v3237 = vcombine.high %v3229, %v3229
        %v3238 = vcombine.high %v3236, %v3236
        %v3240 = vunpack.c.l.s4 1966171168
        %v3241 = vunpack.c.0.s8 %v3240
        %v3242 = vlaneseq
        %v3243 = vshrl.u32 %v3242, 7
        %v3244 = vsub.s32 %v3241, %v3243
        %v3245 = vrot.slane %v3229, %v3244
        %v3247 = vunpack.c.l.s4 1966171168
        %v3248 = vunpack.c.0.s8 %v3247
        %v3249 = vlaneseq
        %v3250 = vshrl.u32 %v3249, 7
        %v3251 = vsub.s32 %v3248, %v3250
        %v3252 = vrot.slane %v3236, %v3251
        %v3254 = vunpack.c.l.s4 1966171168
        %v3255 = vunpack.c.0.s8 %v3254
        %v3256 = vlaneseq
        %v3257 = vshrl.u32 %v3256, 7
        %v3258 = vsub.s32 %v3255, %v3257
        %v3259 = vrot.slane %v3237, %v3258
        %v3261 = vunpack.c.l.s4 1966171168
        %v3262 = vunpack.c.0.s8 %v3261
        %v3263 = vlaneseq
        %v3264 = vshrl.u32 %v3263, 7
        %v3265 = vsub.s32 %v3262, %v3264
        %v3266 = vrot.slane %v3238, %v3265
        %v3267 = vcombine.high %v3245, %v3245
        %v3268 = vcombine.high %v3252, %v3252
        %v3269 = vcombine.high %v3259, %v3259
        %v3270 = vcombine.high %v3266, %v3266
        %v3271 = vcombine.high %v2906, %v2906
        %v3273 = vunpack.c.l.s4 1966171168
        %v3274 = vunpack.c.0.s8 %v3273
        %v3275 = vlaneseq
        %v3276 = vshrl.u32 %v3275, 7
        %v3277 = vsub.s32 %v3274, %v3276
        %v3278 = vrot.slane %v2906, %v3277
        %v3280 = vunpack.c.l.s4 1966171168
        %v3281 = vunpack.c.0.s8 %v3280
        %v3282 = vlaneseq
        %v3283 = vshrl.u32 %v3282, 7
        %v3284 = vsub.s32 %v3281, %v3283
        %v3285 = vrot.slane %v3271, %v3284
        %v3286 = vcombine.high %v3278, %v3278
        %v3287 = vcombine.high %v3285, %v3285
        %v3289 = vunpack.c.l.s4 1966171168
        %v3290 = vunpack.c.0.s8 %v3289
        %v3291 = vlaneseq
        %v3292 = vshrl.u32 %v3291, 7
        %v3293 = vsub.s32 %v3290, %v3292
        %v3294 = vrot.slane %v3278, %v3293
        %v3296 = vunpack.c.l.s4 1966171168
        %v3297 = vunpack.c.0.s8 %v3296
        %v3298 = vlaneseq
        %v3299 = vshrl.u32 %v3298, 7
        %v3300 = vsub.s32 %v3297, %v3299
        %v3301 = vrot.slane %v3285, %v3300
        %v3303 = vunpack.c.l.s4 1966171168
        %v3304 = vunpack.c.0.s8 %v3303
        %v3305 = vlaneseq
        %v3306 = vshrl.u32 %v3305, 7
        %v3307 = vsub.s32 %v3304, %v3306
        %v3308 = vrot.slane %v3286, %v3307
        %v3310 = vunpack.c.l.s4 1966171168
        %v3311 = vunpack.c.0.s8 %v3310
        %v3312 = vlaneseq
        %v3313 = vshrl.u32 %v3312, 7
        %v3314 = vsub.s32 %v3311, %v3313
        %v3315 = vrot.slane %v3287, %v3314
        %v3316 = vcombine.high %v3294, %v3294
        %v3317 = vcombine.high %v3301, %v3301
        %v3318 = vcombine.high %v3308, %v3308
        %v3319 = vcombine.high %v3315, %v3315
        %v3320 = vcombine.high %v2909, %v2909
        %v3322 = vunpack.c.l.s4 1966171168
        %v3323 = vunpack.c.0.s8 %v3322
        %v3324 = vlaneseq
        %v3325 = vshrl.u32 %v3324, 7
        %v3326 = vsub.s32 %v3323, %v3325
        %v3327 = vrot.slane %v2909, %v3326
        %v3329 = vunpack.c.l.s4 1966171168
        %v3330 = vunpack.c.0.s8 %v3329
        %v3331 = vlaneseq
        %v3332 = vshrl.u32 %v3331, 7
        %v3333 = vsub.s32 %v3330, %v3332
        %v3334 = vrot.slane %v3320, %v3333
        %v3335 = vcombine.high %v3327, %v3327
        %v3336 = vcombine.high %v3334, %v3334
        %v3338 = vunpack.c.l.s4 1966171168
        %v3339 = vunpack.c.0.s8 %v3338
        %v3340 = vlaneseq
        %v3341 = vshrl.u32 %v3340, 7
        %v3342 = vsub.s32 %v3339, %v3341
        %v3343 = vrot.slane %v3327, %v3342
        %v3345 = vunpack.c.l.s4 1966171168
        %v3346 = vunpack.c.0.s8 %v3345
        %v3347 = vlaneseq
        %v3348 = vshrl.u32 %v3347, 7
        %v3349 = vsub.s32 %v3346, %v3348
        %v3350 = vrot.slane %v3334, %v3349
        %v3352 = vunpack.c.l.s4 1966171168
        %v3353 = vunpack.c.0.s8 %v3352
        %v3354 = vlaneseq
        %v3355 = vshrl.u32 %v3354, 7
        %v3356 = vsub.s32 %v3353, %v3355
        %v3357 = vrot.slane %v3335, %v3356
        %v3359 = vunpack.c.l.s4 1966171168
        %v3360 = vunpack.c.0.s8 %v3359
        %v3361 = vlaneseq
        %v3362 = vshrl.u32 %v3361, 7
        %v3363 = vsub.s32 %v3360, %v3362
        %v3364 = vrot.slane %v3336, %v3363
        %v3365 = vcombine.high %v3343, %v3343
        %v3366 = vcombine.high %v3350, %v3350
        %v3367 = vcombine.high %v3357, %v3357
        %v3368 = vcombine.high %v3364, %v3364
        %v3369 = vlaneseq
        %v3370 = vshrl.u32 %v3369, 7
        %v3371 = vsub.s32 0, %v3370
        %v3372 = vrot.slane %v3196, %v3371
        %v3373 = vlaneseq
        %v3374 = vshrl.u32 %v3373, 7
        %v3375 = vsub.s32 0, %v3374
        %v3376 = vrot.slane %v3210, %v3375
        %v3377 = vlaneseq
        %v3378 = vshrl.u32 %v3377, 7
        %v3379 = vsub.s32 0, %v3378
        %v3380 = vrot.slane %v3218, %v3379
        %v3381 = vlaneseq
        %v3382 = vshrl.u32 %v3381, 7
        %v3383 = vsub.s32 0, %v3382
        %v3384 = vrot.slane %v3220, %v3383
        %v3385 = vlaneseq
        %v3386 = vshrl.u32 %v3385, 7
        %v3387 = vsub.s32 0, %v3386
        %v3388 = vrot.slane %v3203, %v3387
        %v3389 = vlaneseq
        %v3390 = vshrl.u32 %v3389, 7
        %v3391 = vsub.s32 0, %v3390
        %v3392 = vrot.slane %v3217, %v3391
        %v3393 = vlaneseq
        %v3394 = vshrl.u32 %v3393, 7
        %v3395 = vsub.s32 0, %v3394
        %v3396 = vrot.slane %v3219, %v3395
        %v3397 = vlaneseq
        %v3398 = vshrl.u32 %v3397, 7
        %v3399 = vsub.s32 0, %v3398
        %v3400 = vrot.slane %v3221, %v3399
        %v3401 = vlaneseq
        %v3402 = vshrl.u32 %v3401, 7
        %v3403 = vsub.s32 0, %v3402
        %v3404 = vrot.slane %v3245, %v3403
        %v3405 = vlaneseq
        %v3406 = vshrl.u32 %v3405, 7
        %v3407 = vsub.s32 0, %v3406
        %v3408 = vrot.slane %v3259, %v3407
        %v3409 = vlaneseq
        %v3410 = vshrl.u32 %v3409, 7
        %v3411 = vsub.s32 0, %v3410
        %v3412 = vrot.slane %v3267, %v3411
        %v3413 = vlaneseq
        %v3414 = vshrl.u32 %v3413, 7
        %v3415 = vsub.s32 0, %v3414
        %v3416 = vrot.slane %v3269, %v3415
        %v3417 = vlaneseq
        %v3418 = vshrl.u32 %v3417, 7
        %v3419 = vsub.s32 0, %v3418
        %v3420 = vrot.slane %v3252, %v3419
        %v3421 = vlaneseq
        %v3422 = vshrl.u32 %v3421, 7
        %v3423 = vsub.s32 0, %v3422
        %v3424 = vrot.slane %v3266, %v3423
        %v3425 = vlaneseq
        %v3426 = vshrl.u32 %v3425, 7
        %v3427 = vsub.s32 0, %v3426
        %v3428 = vrot.slane %v3268, %v3427
        %v3429 = vlaneseq
        %v3430 = vshrl.u32 %v3429, 7
        %v3431 = vsub.s32 0, %v3430
        %v3432 = vrot.slane %v3270, %v3431
        %v3433 = vlaneseq
        %v3434 = vshrl.u32 %v3433, 7
        %v3435 = vsub.s32 0, %v3434
        %v3436 = vrot.slane %v3294, %v3435
        %v3437 = vlaneseq
        %v3438 = vshrl.u32 %v3437, 7
        %v3439 = vsub.s32 0, %v3438
        %v3440 = vrot.slane %v3308, %v3439
        %v3441 = vlaneseq
        %v3442 = vshrl.u32 %v3441, 7
        %v3443 = vsub.s32 0, %v3442
        %v3444 = vrot.slane %v3316, %v3443
        %v3445 = vlaneseq
        %v3446 = vshrl.u32 %v3445, 7
        %v3447 = vsub.s32 0, %v3446
        %v3448 = vrot.slane %v3318, %v3447
        %v3449 = vlaneseq
        %v3450 = vshrl.u32 %v3449, 7
        %v3451 = vsub.s32 0, %v3450
        %v3452 = vrot.slane %v3301, %v3451
        %v3453 = vlaneseq
        %v3454 = vshrl.u32 %v3453, 7
        %v3455 = vsub.s32 0, %v3454
        %v3456 = vrot.slane %v3315, %v3455
        %v3457 = vlaneseq
        %v3458 = vshrl.u32 %v3457, 7
        %v3459 = vsub.s32 0, %v3458
        %v3460 = vrot.slane %v3317, %v3459
        %v3461 = vlaneseq
        %v3462 = vshrl.u32 %v3461, 7
        %v3463 = vsub.s32 0, %v3462
        %v3464 = vrot.slane %v3319, %v3463
        %v3465 = vlaneseq
        %v3466 = vshrl.u32 %v3465, 7
        %v3467 = vsub.s32 0, %v3466
        %v3468 = vrot.slane %v3343, %v3467
        %v3469 = vlaneseq
        %v3470 = vshrl.u32 %v3469, 7
        %v3471 = vsub.s32 0, %v3470
        %v3472 = vrot.slane %v3357, %v3471
        %v3473 = vlaneseq
        %v3474 = vshrl.u32 %v3473, 7
        %v3475 = vsub.s32 0, %v3474
        %v3476 = vrot.slane %v3365, %v3475
        %v3477 = vlaneseq
        %v3478 = vshrl.u32 %v3477, 7
        %v3479 = vsub.s32 0, %v3478
        %v3480 = vrot.slane %v3367, %v3479
        %v3481 = vlaneseq
        %v3482 = vshrl.u32 %v3481, 7
        %v3483 = vsub.s32 0, %v3482
        %v3484 = vrot.slane %v3350, %v3483
        %v3485 = vlaneseq
        %v3486 = vshrl.u32 %v3485, 7
        %v3487 = vsub.s32 0, %v3486
        %v3488 = vrot.slane %v3364, %v3487
        %v3489 = vlaneseq
        %v3490 = vshrl.u32 %v3489, 7
        %v3491 = vsub.s32 0, %v3490
        %v3492 = vrot.slane %v3366, %v3491
        %v3493 = vlaneseq
        %v3494 = vshrl.u32 %v3493, 7
        %v3495 = vsub.s32 0, %v3494
        %v3496 = vrot.slane %v3368, %v3495
        %v3529 = vadd.f32 %v3043, %v3372
        %v3530 = vadd.f32 %v3046, %v3376
        %v3531 = vadd.f32 %v3051, %v3380
        %v3532 = vadd.f32 %v3054, %v3384
        %v3533 = vadd.f32 %v3059, %v3388
        %v3534 = vadd.f32 %v3062, %v3392
        %v3535 = vadd.f32 %v3067, %v3396
        %v3536 = vadd.f32 %v3070, %v3400
        %v3537 = vadd.f32 %v3075, %v3404
        %v3538 = vadd.f32 %v3078, %v3408
        %v3539 = vadd.f32 %v3083, %v3412
        %v3540 = vadd.f32 %v3086, %v3416
        %v3541 = vadd.f32 %v3091, %v3420
        %v3542 = vadd.f32 %v3094, %v3424
        %v3543 = vadd.f32 %v3099, %v3428
        %v3544 = vadd.f32 %v3102, %v3432
        %v3545 = vadd.f32 %v3107, %v3436
        %v3546 = vadd.f32 %v3110, %v3440
        %v3547 = vadd.f32 %v3115, %v3444
        %v3548 = vadd.f32 %v3118, %v3448
        %v3549 = vadd.f32 %v3123, %v3452
        %v3550 = vadd.f32 %v3126, %v3456
        %v3551 = vadd.f32 %v3131, %v3460
        %v3552 = vadd.f32 %v3134, %v3464
        %v3553 = vadd.f32 %v3139, %v3468
        %v3554 = vadd.f32 %v3142, %v3472
        %v3555 = vadd.f32 %v3147, %v3476
        %v3556 = vadd.f32 %v3150, %v3480
        %v3557 = vadd.f32 %v3155, %v3484
        %v3558 = vadd.f32 %v3158, %v3488
        %v3559 = vadd.f32 %v3163, %v3492
        %v3560 = vadd.f32 %v3166, %v3496
        %v3561 = vmax.f32 %v3529, 0.0
        %v3562 = vmax.f32 %v3530, 0.0
        %v3563 = vmax.f32 %v3531, 0.0
        %v3564 = vmax.f32 %v3532, 0.0
        %v3565 = vmax.f32 %v3533, 0.0
        %v3566 = vmax.f32 %v3534, 0.0
        %v3567 = vmax.f32 %v3535, 0.0
        %v3568 = vmax.f32 %v3536, 0.0
        %v3569 = vmax.f32 %v3537, 0.0
        %v3570 = vmax.f32 %v3538, 0.0
        %v3571 = vmax.f32 %v3539, 0.0
        %v3572 = vmax.f32 %v3540, 0.0
        %v3573 = vmax.f32 %v3541, 0.0
        %v3574 = vmax.f32 %v3542, 0.0
        %v3575 = vmax.f32 %v3543, 0.0
        %v3576 = vmax.f32 %v3544, 0.0
        %v3577 = vmax.f32 %v3545, 0.0
        %v3578 = vmax.f32 %v3546, 0.0
        %v3579 = vmax.f32 %v3547, 0.0
        %v3580 = vmax.f32 %v3548, 0.0
        %v3581 = vmax.f32 %v3549, 0.0
        %v3582 = vmax.f32 %v3550, 0.0
        %v3583 = vmax.f32 %v3551, 0.0
        %v3584 = vmax.f32 %v3552, 0.0
        %v3585 = vmax.f32 %v3553, 0.0
        %v3586 = vmax.f32 %v3554, 0.0
        %v3587 = vmax.f32 %v3555, 0.0
        %v3588 = vmax.f32 %v3556, 0.0
        %v3589 = vmax.f32 %v3557, 0.0
        %v3590 = vmax.f32 %v3558, 0.0
        %v3591 = vmax.f32 %v3559, 0.0
        %v3592 = vmax.f32 %v3560, 0.0
        %v3593 = vpack.c.bf16 %v3562, %v3561
        %v3594 = vpack.c.bf16 %v3564, %v3563
        %v3595 = vpack.c.bf16 %v3566, %v3565
        %v3596 = vpack.c.bf16 %v3568, %v3567
        %v3597 = vpack.c.bf16 %v3570, %v3569
        %v3598 = vpack.c.bf16 %v3572, %v3571
        %v3599 = vpack.c.bf16 %v3574, %v3573
        %v3600 = vpack.c.bf16 %v3576, %v3575
        %v3601 = vpack.c.bf16 %v3578, %v3577
        %v3602 = vpack.c.bf16 %v3580, %v3579
        %v3603 = vpack.c.bf16 %v3582, %v3581
        %v3604 = vpack.c.bf16 %v3584, %v3583
        %v3605 = vpack.c.bf16 %v3586, %v3585
        %v3606 = vpack.c.bf16 %v3588, %v3587
        %v3607 = vpack.c.bf16 %v3590, %v3589
        %v3608 = vpack.c.bf16 %v3592, %v3591
        %v3609 = vld [vmem:[%s10] sm:$0xf]
        %v3610 = vld [vmem:[%s10 + $0x4] sm:$0xf]
        %v3611 = vld [vmem:[%s10 + $0x8] sm:$0xf]
        %v3612 = vld [vmem:[%s10 + $0xc] sm:$0xf]
        %v3613 = vld [vmem:[%s10 + $0x10] sm:$0xf]
        %v3614 = vld [vmem:[%s10 + $0x14] sm:$0xf]
        %v3615 = vld [vmem:[%s10 + $0x18] sm:$0xf]
        %v3616 = vld [vmem:[%s10 + $0x1c] sm:$0xf]
        %v3617 = vld [vmem:[%s11] sm:$0x1]
        %v3619 = vlaneseq
        %v3620 = vshrl.u32 %v3619, 7
        %v3621 = vsub.s32 0, %v3620
        %v3622 = vrot.slane %v3617, %v3621
        %v3632 = vunpack.c.l.b16 %v3609
        %v3633 = vunpack.c.l.b16 %v3610
        %v3634 = vunpack.c.l.b16 %v3611
        %v3635 = vunpack.c.l.b16 %v3612
        %v3636 = vunpack.c.l.b16 %v3613
        %v3637 = vunpack.c.l.b16 %v3614
        %v3638 = vunpack.c.l.b16 %v3615
        %v3639 = vunpack.c.l.b16 %v3616
        %v3640 = vpack.c.b16 %v3633, %v3632
        %v3641 = vpack.c.b16 %v3635, %v3634
        %v3642 = vpack.c.b16 %v3637, %v3636
        %v3643 = vpack.c.b16 %v3639, %v3638
        %v3649 = vsel %vm1731, %v3593, 0
        %v3652 = vsel %vm1731, %v3594, 0
        %v3655 = vsel %vm1731, %v3595, 0
        %v3658 = vsel %vm1731, %v3596, 0
        %v3661 = vsel %vm1731, %v3597, 0
        %v3664 = vsel %vm1731, %v3598, 0
        %v3667 = vsel %vm1731, %v3599, 0
        %v3670 = vsel %vm1731, %v3600, 0
        %v3673 = vsel %vm1731, %v3601, 0
        %v3676 = vsel %vm1731, %v3602, 0
        %v3679 = vsel %vm1731, %v3603, 0
        %v3682 = vsel %vm1731, %v3604, 0
        %v3685 = vsel %vm1731, %v3605, 0
        %v3688 = vsel %vm1731, %v3606, 0
        %v3691 = vsel %vm1731, %v3607, 0
        %v3694 = vsel %vm1731, %v3608, 0
        %3696 = vmatprep.subr.bf16.mxu0 0
        %3697 = vmatpush1.bf16.msra.mxu0 %v3640
        %3698 = vmatprep.subr.bf16.mxu0 0
        %3699 = vmatpush1.bf16.msra.mxu0 %v3641
        %3700 = vmatprep.subr.bf16.mxu0 0
        %3701 = vmatpush1.bf16.msra.mxu0 %v3642
        %3702 = vmatprep.subr.bf16.mxu0 0
        %3703 = vmatpush1.bf16.msra.mxu0 %v3643
        %3704 = vmatprep.subr.bf16.mxu0 0
        %3705 = vmatpush1.bf16.msra.mxu0 0
        %3706 = vmatprep.subr.bf16.mxu0 0
        %3707 = vmatpush1.bf16.msra.mxu0 0
        %3708 = vmatprep.subr.bf16.mxu0 0
        %3709 = vmatpush1.bf16.msra.mxu0 0
        %3710 = vmatprep.subr.bf16.mxu0 0
        %3711 = vmatpush1.bf16.msra.mxu0 0
        %3712 = vmatprep.subr.bf16.mxu0 0
        %3713 = vmatpush1.bf16.msra.mxu0 0
        %3714 = vmatprep.subr.bf16.mxu0 0
        %3715 = vmatpush1.bf16.msra.mxu0 0
        %3716 = vmatprep.subr.bf16.mxu0 0
        %3717 = vmatpush1.bf16.msra.mxu0 0
        %3718 = vmatprep.subr.bf16.mxu0 0
        %3719 = vmatpush1.bf16.msra.mxu0 0
        %3720 = vmatprep.subr.bf16.mxu0 0
        %3721 = vmatpush1.bf16.msra.mxu0 0
        %3722 = vmatprep.subr.bf16.mxu0 0
        %3723 = vmatpush1.bf16.msra.mxu0 0
        %3724 = vmatprep.subr.bf16.mxu0 0
        %3725 = vmatpush1.bf16.msra.mxu0 0
        %3726 = vmatprep.subr.bf16.mxu0 0
        %3727 = vmatpush1.bf16.msra.mxu0 0
        %3728 = vmatprep.mubr.bf16.mxu0 0
        %3729 = vmatmul.mubr.bf16.gmra.mrb[0].mxu0 %v3649
        %v3730 = vpop.f32.mrb[0].mxu0
        %v3731 = vadd.f32 %v3622, %v3730
        %v3732 = vpop.f32.mrb[0].mxu0
        %v3733 = vpop.f32.mrb[0].mxu0
        %v3734 = vadd.f32 %v3622, %v3733
        %v3735 = vpop.f32.mrb[0].mxu0
        %3736 = vmatprep.mubr.bf16.mxu0 0
        %3737 = vmatmul.mubr.bf16.gmra.mrb[0].mxu0 %v3652
        %v3738 = vpop.f32.mrb[0].mxu0
        %v3739 = vadd.f32 %v3622, %v3738
        %v3740 = vpop.f32.mrb[0].mxu0
        %v3741 = vpop.f32.mrb[0].mxu0
        %v3742 = vadd.f32 %v3622, %v3741
        %v3743 = vpop.f32.mrb[0].mxu0
        %3744 = vmatprep.mubr.bf16.mxu0 0
        %3745 = vmatmul.mubr.bf16.gmra.mrb[0].mxu0 %v3655
        %v3746 = vpop.f32.mrb[0].mxu0
        %v3747 = vadd.f32 %v3622, %v3746
        %v3748 = vpop.f32.mrb[0].mxu0
        %v3749 = vpop.f32.mrb[0].mxu0
        %v3750 = vadd.f32 %v3622, %v3749
        %v3751 = vpop.f32.mrb[0].mxu0
        %3752 = vmatprep.mubr.bf16.mxu0 0
        %3753 = vmatmul.mubr.bf16.gmra.mrb[0].mxu0 %v3658
        %v3754 = vpop.f32.mrb[0].mxu0
        %v3755 = vadd.f32 %v3622, %v3754
        %v3756 = vpop.f32.mrb[0].mxu0
        %v3757 = vpop.f32.mrb[0].mxu0
        %v3758 = vadd.f32 %v3622, %v3757
        %v3759 = vpop.f32.mrb[0].mxu0
        %3760 = vmatprep.mubr.bf16.mxu0 0
        %3761 = vmatmul.mubr.bf16.gmra.mrb[0].mxu0 %v3661
        %v3762 = vpop.f32.mrb[0].mxu0
        %v3763 = vadd.f32 %v3622, %v3762
        %v3764 = vpop.f32.mrb[0].mxu0
        %v3765 = vpop.f32.mrb[0].mxu0
        %v3766 = vadd.f32 %v3622, %v3765
        %v3767 = vpop.f32.mrb[0].mxu0
        %3768 = vmatprep.mubr.bf16.mxu0 0
        %3769 = vmatmul.mubr.bf16.gmra.mrb[0].mxu0 %v3664
        %v3770 = vpop.f32.mrb[0].mxu0
        %v3771 = vadd.f32 %v3622, %v3770
        %v3772 = vpop.f32.mrb[0].mxu0
        %v3773 = vpop.f32.mrb[0].mxu0
        %v3774 = vadd.f32 %v3622, %v3773
        %v3775 = vpop.f32.mrb[0].mxu0
        %3776 = vmatprep.mubr.bf16.mxu0 0
        %3777 = vmatmul.mubr.bf16.gmra.mrb[0].mxu0 %v3667
        %v3778 = vpop.f32.mrb[0].mxu0
        %v3779 = vadd.f32 %v3622, %v3778
        %v3780 = vpop.f32.mrb[0].mxu0
        %v3781 = vpop.f32.mrb[0].mxu0
        %v3782 = vadd.f32 %v3622, %v3781
        %v3783 = vpop.f32.mrb[0].mxu0
        %3784 = vmatprep.mubr.bf16.mxu0 0
        %3785 = vmatmul.mubr.bf16.gmra.mrb[0].mxu0 %v3670
        %v3786 = vpop.f32.mrb[0].mxu0
        %v3787 = vadd.f32 %v3622, %v3786
        %v3788 = vpop.f32.mrb[0].mxu0
        %v3789 = vpop.f32.mrb[0].mxu0
        %v3790 = vadd.f32 %v3622, %v3789
        %v3791 = vpop.f32.mrb[0].mxu0
        %3792 = vmatprep.mubr.bf16.mxu0 0
        %3793 = vmatmul.mubr.bf16.gmra.mrb[0].mxu0 %v3673
        %v3794 = vpop.f32.mrb[0].mxu0
        %v3795 = vadd.f32 %v3622, %v3794
        %v3796 = vpop.f32.mrb[0].mxu0
        %v3797 = vpop.f32.mrb[0].mxu0
        %v3798 = vadd.f32 %v3622, %v3797
        %v3799 = vpop.f32.mrb[0].mxu0
        %3800 = vmatprep.mubr.bf16.mxu0 0
        %3801 = vmatmul.mubr.bf16.gmra.mrb[0].mxu0 %v3676
        %v3802 = vpop.f32.mrb[0].mxu0
        %v3803 = vadd.f32 %v3622, %v3802
        %v3804 = vpop.f32.mrb[0].mxu0
        %v3805 = vpop.f32.mrb[0].mxu0
        %v3806 = vadd.f32 %v3622, %v3805
        %v3807 = vpop.f32.mrb[0].mxu0
        %3808 = vmatprep.mubr.bf16.mxu0 0
        %3809 = vmatmul.mubr.bf16.gmra.mrb[0].mxu0 %v3679
        %v3810 = vpop.f32.mrb[0].mxu0
        %v3811 = vadd.f32 %v3622, %v3810
        %v3812 = vpop.f32.mrb[0].mxu0
        %v3813 = vpop.f32.mrb[0].mxu0
        %v3814 = vadd.f32 %v3622, %v3813
        %v3815 = vpop.f32.mrb[0].mxu0
        %3816 = vmatprep.mubr.bf16.mxu0 0
        %3817 = vmatmul.mubr.bf16.gmra.mrb[0].mxu0 %v3682
        %v3818 = vpop.f32.mrb[0].mxu0
        %v3819 = vadd.f32 %v3622, %v3818
        %v3820 = vpop.f32.mrb[0].mxu0
        %v3821 = vpop.f32.mrb[0].mxu0
        %v3822 = vadd.f32 %v3622, %v3821
        %v3823 = vpop.f32.mrb[0].mxu0
        %3824 = vmatprep.mubr.bf16.mxu0 0
        %3825 = vmatmul.mubr.bf16.gmra.mrb[0].mxu0 %v3685
        %v3826 = vpop.f32.mrb[0].mxu0
        %v3827 = vadd.f32 %v3622, %v3826
        %v3828 = vpop.f32.mrb[0].mxu0
        %v3829 = vpop.f32.mrb[0].mxu0
        %v3830 = vadd.f32 %v3622, %v3829
        %v3831 = vpop.f32.mrb[0].mxu0
        %3832 = vmatprep.mubr.bf16.mxu0 0
        %3833 = vmatmul.mubr.bf16.gmra.mrb[0].mxu0 %v3688
        %v3834 = vpop.f32.mrb[0].mxu0
        %v3835 = vadd.f32 %v3622, %v3834
        %v3836 = vpop.f32.mrb[0].mxu0
        %v3837 = vpop.f32.mrb[0].mxu0
        %v3838 = vadd.f32 %v3622, %v3837
        %v3839 = vpop.f32.mrb[0].mxu0
        %3840 = vmatprep.mubr.bf16.mxu0 0
        %3841 = vmatmul.mubr.bf16.gmra.mrb[0].mxu0 %v3691
        %v3842 = vpop.f32.mrb[0].mxu0
        %v3843 = vadd.f32 %v3622, %v3842
        %v3844 = vpop.f32.mrb[0].mxu0
        %v3845 = vpop.f32.mrb[0].mxu0
        %v3846 = vadd.f32 %v3622, %v3845
        %v3847 = vpop.f32.mrb[0].mxu0
        %3848 = vmatprep.mubr.bf16.mxu0 0
        %3849 = vmatmul.mubr.bf16.gmra.mrb[0].mxu0 %v3694
        %v3850 = vpop.f32.mrb[0].mxu0
        %v3851 = vadd.f32 %v3622, %v3850
        %v3852 = vpop.f32.mrb[0].mxu0
        %v3853 = vpop.f32.mrb[0].mxu0
        %v3854 = vadd.f32 %v3622, %v3853
        %v3855 = vpop.f32.mrb[0].mxu0
        %3856 = vdwg.mxu0
        %v3857 = vmax.f32 %v3731, 0.0
        %v3858 = vmax.f32 %v3734, 0.0
        %v3859 = vmax.f32 %v3739, 0.0
        %v3860 = vmax.f32 %v3742, 0.0
        %v3861 = vmax.f32 %v3747, 0.0
        %v3862 = vmax.f32 %v3750, 0.0
        %v3863 = vmax.f32 %v3755, 0.0
        %v3864 = vmax.f32 %v3758, 0.0
        %v3865 = vmax.f32 %v3763, 0.0
        %v3866 = vmax.f32 %v3766, 0.0
        %v3867 = vmax.f32 %v3771, 0.0
        %v3868 = vmax.f32 %v3774, 0.0
        %v3869 = vmax.f32 %v3779, 0.0
        %v3870 = vmax.f32 %v3782, 0.0
        %v3871 = vmax.f32 %v3787, 0.0
        %v3872 = vmax.f32 %v3790, 0.0
        %v3873 = vmax.f32 %v3795, 0.0
        %v3874 = vmax.f32 %v3798, 0.0
        %v3875 = vmax.f32 %v3803, 0.0
        %v3876 = vmax.f32 %v3806, 0.0
        %v3877 = vmax.f32 %v3811, 0.0
        %v3878 = vmax.f32 %v3814, 0.0
        %v3879 = vmax.f32 %v3819, 0.0
        %v3880 = vmax.f32 %v3822, 0.0
        %v3881 = vmax.f32 %v3827, 0.0
        %v3882 = vmax.f32 %v3830, 0.0
        %v3883 = vmax.f32 %v3835, 0.0
        %v3884 = vmax.f32 %v3838, 0.0
        %v3885 = vmax.f32 %v3843, 0.0
        %v3886 = vmax.f32 %v3846, 0.0
        %v3887 = vmax.f32 %v3851, 0.0
        %v3888 = vmax.f32 %v3854, 0.0
        %v3889 = vmul.f32 %v3857, %v2272
        %v3890 = vmul.f32 %v3858, %v2277
        %v3891 = vmul.f32 %v3859, %v2282
        %v3892 = vmul.f32 %v3860, %v2287
        %v3893 = vmul.f32 %v3861, %v2292
        %v3894 = vmul.f32 %v3862, %v2297
        %v3895 = vmul.f32 %v3863, %v2302
        %v3896 = vmul.f32 %v3864, %v2307
        %v3897 = vmul.f32 %v3865, %v2312
        %v3898 = vmul.f32 %v3866, %v2317
        %v3899 = vmul.f32 %v3867, %v2322
        %v3900 = vmul.f32 %v3868, %v2327
        %v3901 = vmul.f32 %v3869, %v2332
        %v3902 = vmul.f32 %v3870, %v2337
        %v3903 = vmul.f32 %v3871, %v2342
        %v3904 = vmul.f32 %v3872, %v2347
        %v3905 = vmul.f32 %v3873, %v2352
        %v3906 = vmul.f32 %v3874, %v2357
        %v3907 = vmul.f32 %v3875, %v2362
        %v3908 = vmul.f32 %v3876, %v2367
        %v3909 = vmul.f32 %v3877, %v2372
        %v3910 = vmul.f32 %v3878, %v2377
        %v3911 = vmul.f32 %v3879, %v2382
        %v3912 = vmul.f32 %v3880, %v2387
        %v3913 = vmul.f32 %v3881, %v2392
        %v3914 = vmul.f32 %v3882, %v2397
        %v3915 = vmul.f32 %v3883, %v2402
        %v3916 = vmul.f32 %v3884, %v2407
        %v3917 = vmul.f32 %v3885, %v2412
        %v3918 = vmul.f32 %v3886, %v2417
        %v3919 = vmul.f32 %v3887, %v2422
        %v3920 = vmul.f32 %v3888, %v2427
        %v3921 = vsel %vm1731, %v3889, -inf
        %v3922 = vrot.slane %v3921, 4
        %v3923 = vmax.f32 %v3921, %v3922
        %v3924 = vrot.slane %v3923, 2
        %v3925 = vmax.f32 %v3923, %v3924
        %v3926 = vrot.slane %v3925, 1
        %v3927 = vmax.f32 %v3925, %v3926
        %v3928 = vsel %vm1731, %v3890, -inf
        %v3929 = vrot.slane %v3928, 4
        %v3930 = vmax.f32 %v3928, %v3929
        %v3931 = vrot.slane %v3930, 2
        %v3932 = vmax.f32 %v3930, %v3931
        %v3933 = vrot.slane %v3932, 1
        %v3934 = vmax.f32 %v3932, %v3933
        %v3935 = vsel %vm1731, %v3891, -inf
        %v3936 = vrot.slane %v3935, 4
        %v3937 = vmax.f32 %v3935, %v3936
        %v3938 = vrot.slane %v3937, 2
        %v3939 = vmax.f32 %v3937, %v3938
        %v3940 = vrot.slane %v3939, 1
        %v3941 = vmax.f32 %v3939, %v3940
        %v3942 = vsel %vm1731, %v3892, -inf
        %v3943 = vrot.slane %v3942, 4
        %v3944 = vmax.f32 %v3942, %v3943
        %v3945 = vrot.slane %v3944, 2
        %v3946 = vmax.f32 %v3944, %v3945
        %v3947 = vrot.slane %v3946, 1
        %v3948 = vmax.f32 %v3946, %v3947
        %v3949 = vsel %vm1731, %v3893, -inf
        %v3950 = vrot.slane %v3949, 4
        %v3951 = vmax.f32 %v3949, %v3950
        %v3952 = vrot.slane %v3951, 2
        %v3953 = vmax.f32 %v3951, %v3952
        %v3954 = vrot.slane %v3953, 1
        %v3955 = vmax.f32 %v3953, %v3954
        %v3956 = vsel %vm1731, %v3894, -inf
        %v3957 = vrot.slane %v3956, 4
        %v3958 = vmax.f32 %v3956, %v3957
        %v3959 = vrot.slane %v3958, 2
        %v3960 = vmax.f32 %v3958, %v3959
        %v3961 = vrot.slane %v3960, 1
        %v3962 = vmax.f32 %v3960, %v3961
        %v3963 = vsel %vm1731, %v3895, -inf
        %v3964 = vrot.slane %v3963, 4
        %v3965 = vmax.f32 %v3963, %v3964
        %v3966 = vrot.slane %v3965, 2
        %v3967 = vmax.f32 %v3965, %v3966
        %v3968 = vrot.slane %v3967, 1
        %v3969 = vmax.f32 %v3967, %v3968
        %v3970 = vsel %vm1731, %v3896, -inf
        %v3971 = vrot.slane %v3970, 4
        %v3972 = vmax.f32 %v3970, %v3971
        %v3973 = vrot.slane %v3972, 2
        %v3974 = vmax.f32 %v3972, %v3973
        %v3975 = vrot.slane %v3974, 1
        %v3976 = vmax.f32 %v3974, %v3975
        %v3977 = vsel %vm1731, %v3897, -inf
        %v3978 = vrot.slane %v3977, 4
        %v3979 = vmax.f32 %v3977, %v3978
        %v3980 = vrot.slane %v3979, 2
        %v3981 = vmax.f32 %v3979, %v3980
        %v3982 = vrot.slane %v3981, 1
        %v3983 = vmax.f32 %v3981, %v3982
        %v3984 = vsel %vm1731, %v3898, -inf
        %v3985 = vrot.slane %v3984, 4
        %v3986 = vmax.f32 %v3984, %v3985
        %v3987 = vrot.slane %v3986, 2
        %v3988 = vmax.f32 %v3986, %v3987
        %v3989 = vrot.slane %v3988, 1
        %v3990 = vmax.f32 %v3988, %v3989
        %v3991 = vsel %vm1731, %v3899, -inf
        %v3992 = vrot.slane %v3991, 4
        %v3993 = vmax.f32 %v3991, %v3992
        %v3994 = vrot.slane %v3993, 2
        %v3995 = vmax.f32 %v3993, %v3994
        %v3996 = vrot.slane %v3995, 1
        %v3997 = vmax.f32 %v3995, %v3996
        %v3998 = vsel %vm1731, %v3900, -inf
        %v3999 = vrot.slane %v3998, 4
        %v4000 = vmax.f32 %v3998, %v3999
        %v4001 = vrot.slane %v4000, 2
        %v4002 = vmax.f32 %v4000, %v4001
        %v4003 = vrot.slane %v4002, 1
        %v4004 = vmax.f32 %v4002, %v4003
        %v4005 = vsel %vm1731, %v3901, -inf
        %v4006 = vrot.slane %v4005, 4
        %v4007 = vmax.f32 %v4005, %v4006
        %v4008 = vrot.slane %v4007, 2
        %v4009 = vmax.f32 %v4007, %v4008
        %v4010 = vrot.slane %v4009, 1
        %v4011 = vmax.f32 %v4009, %v4010
        %v4012 = vsel %vm1731, %v3902, -inf
        %v4013 = vrot.slane %v4012, 4
        %v4014 = vmax.f32 %v4012, %v4013
        %v4015 = vrot.slane %v4014, 2
        %v4016 = vmax.f32 %v4014, %v4015
        %v4017 = vrot.slane %v4016, 1
        %v4018 = vmax.f32 %v4016, %v4017
        %v4019 = vsel %vm1731, %v3903, -inf
        %v4020 = vrot.slane %v4019, 4
        %v4021 = vmax.f32 %v4019, %v4020
        %v4022 = vrot.slane %v4021, 2
        %v4023 = vmax.f32 %v4021, %v4022
        %v4024 = vrot.slane %v4023, 1
        %v4025 = vmax.f32 %v4023, %v4024
        %v4026 = vsel %vm1731, %v3904, -inf
        %v4027 = vrot.slane %v4026, 4
        %v4028 = vmax.f32 %v4026, %v4027
        %v4029 = vrot.slane %v4028, 2
        %v4030 = vmax.f32 %v4028, %v4029
        %v4031 = vrot.slane %v4030, 1
        %v4032 = vmax.f32 %v4030, %v4031
        %v4033 = vsel %vm1731, %v3905, -inf
        %v4034 = vrot.slane %v4033, 4
        %v4035 = vmax.f32 %v4033, %v4034
        %v4036 = vrot.slane %v4035, 2
        %v4037 = vmax.f32 %v4035, %v4036
        %v4038 = vrot.slane %v4037, 1
        %v4039 = vmax.f32 %v4037, %v4038
        %v4040 = vsel %vm1731, %v3906, -inf
        %v4041 = vrot.slane %v4040, 4
        %v4042 = vmax.f32 %v4040, %v4041
        %v4043 = vrot.slane %v4042, 2
        %v4044 = vmax.f32 %v4042, %v4043
        %v4045 = vrot.slane %v4044, 1
        %v4046 = vmax.f32 %v4044, %v4045
        %v4047 = vsel %vm1731, %v3907, -inf
        %v4048 = vrot.slane %v4047, 4
        %v4049 = vmax.f32 %v4047, %v4048
        %v4050 = vrot.slane %v4049, 2
        %v4051 = vmax.f32 %v4049, %v4050
        %v4052 = vrot.slane %v4051, 1
        %v4053 = vmax.f32 %v4051, %v4052
        %v4054 = vsel %vm1731, %v3908, -inf
        %v4055 = vrot.slane %v4054, 4
        %v4056 = vmax.f32 %v4054, %v4055
        %v4057 = vrot.slane %v4056, 2
        %v4058 = vmax.f32 %v4056, %v4057
        %v4059 = vrot.slane %v4058, 1
        %v4060 = vmax.f32 %v4058, %v4059
        %v4061 = vsel %vm1731, %v3909, -inf
        %v4062 = vrot.slane %v4061, 4
        %v4063 = vmax.f32 %v4061, %v4062
        %v4064 = vrot.slane %v4063, 2
        %v4065 = vmax.f32 %v4063, %v4064
        %v4066 = vrot.slane %v4065, 1
        %v4067 = vmax.f32 %v4065, %v4066
        %v4068 = vsel %vm1731, %v3910, -inf
        %v4069 = vrot.slane %v4068, 4
        %v4070 = vmax.f32 %v4068, %v4069
        %v4071 = vrot.slane %v4070, 2
        %v4072 = vmax.f32 %v4070, %v4071
        %v4073 = vrot.slane %v4072, 1
        %v4074 = vmax.f32 %v4072, %v4073
        %v4075 = vsel %vm1731, %v3911, -inf
        %v4076 = vrot.slane %v4075, 4
        %v4077 = vmax.f32 %v4075, %v4076
        %v4078 = vrot.slane %v4077, 2
        %v4079 = vmax.f32 %v4077, %v4078
        %v4080 = vrot.slane %v4079, 1
        %v4081 = vmax.f32 %v4079, %v4080
        %v4082 = vsel %vm1731, %v3912, -inf
        %v4083 = vrot.slane %v4082, 4
        %v4084 = vmax.f32 %v4082, %v4083
        %v4085 = vrot.slane %v4084, 2
        %v4086 = vmax.f32 %v4084, %v4085
        %v4087 = vrot.slane %v4086, 1
        %v4088 = vmax.f32 %v4086, %v4087
        %v4089 = vsel %vm1731, %v3913, -inf
        %v4090 = vrot.slane %v4089, 4
        %v4091 = vmax.f32 %v4089, %v4090
        %v4092 = vrot.slane %v4091, 2
        %v4093 = vmax.f32 %v4091, %v4092
        %v4094 = vrot.slane %v4093, 1
        %v4095 = vmax.f32 %v4093, %v4094
        %v4096 = vsel %vm1731, %v3914, -inf
        %v4097 = vrot.slane %v4096, 4
        %v4098 = vmax.f32 %v4096, %v4097
        %v4099 = vrot.slane %v4098, 2
        %v4100 = vmax.f32 %v4098, %v4099
        %v4101 = vrot.slane %v4100, 1
        %v4102 = vmax.f32 %v4100, %v4101
        %v4103 = vsel %vm1731, %v3915, -inf
        %v4104 = vrot.slane %v4103, 4
        %v4105 = vmax.f32 %v4103, %v4104
        %v4106 = vrot.slane %v4105, 2
        %v4107 = vmax.f32 %v4105, %v4106
        %v4108 = vrot.slane %v4107, 1
        %v4109 = vmax.f32 %v4107, %v4108
        %v4110 = vsel %vm1731, %v3916, -inf
        %v4111 = vrot.slane %v4110, 4
        %v4112 = vmax.f32 %v4110, %v4111
        %v4113 = vrot.slane %v4112, 2
        %v4114 = vmax.f32 %v4112, %v4113
        %v4115 = vrot.slane %v4114, 1
        %v4116 = vmax.f32 %v4114, %v4115
        %v4117 = vsel %vm1731, %v3917, -inf
        %v4118 = vrot.slane %v4117, 4
        %v4119 = vmax.f32 %v4117, %v4118
        %v4120 = vrot.slane %v4119, 2
        %v4121 = vmax.f32 %v4119, %v4120
        %v4122 = vrot.slane %v4121, 1
        %v4123 = vmax.f32 %v4121, %v4122
        %v4124 = vsel %vm1731, %v3918, -inf
        %v4125 = vrot.slane %v4124, 4
        %v4126 = vmax.f32 %v4124, %v4125
        %v4127 = vrot.slane %v4126, 2
        %v4128 = vmax.f32 %v4126, %v4127
        %v4129 = vrot.slane %v4128, 1
        %v4130 = vmax.f32 %v4128, %v4129
        %v4131 = vsel %vm1731, %v3919, -inf
        %v4132 = vrot.slane %v4131, 4
        %v4133 = vmax.f32 %v4131, %v4132
        %v4134 = vrot.slane %v4133, 2
        %v4135 = vmax.f32 %v4133, %v4134
        %v4136 = vrot.slane %v4135, 1
        %v4137 = vmax.f32 %v4135, %v4136
        %v4138 = vsel %vm1731, %v3920, -inf
        %v4139 = vrot.slane %v4138, 4
        %v4140 = vmax.f32 %v4138, %v4139
        %v4141 = vrot.slane %v4140, 2
        %v4142 = vmax.f32 %v4140, %v4141
        %v4143 = vrot.slane %v4142, 1
        %v4144 = vmax.f32 %v4142, %v4143
        %v4145 = vpack.c.bf16 %v3927, %v3927
        %v4146 = vpack.c.bf16 %v3934, %v3934
        %v4147 = vpack.c.bf16 %v3941, %v3941
        %v4148 = vpack.c.bf16 %v3948, %v3948
        %v4149 = vpack.c.bf16 %v3955, %v3955
        %v4150 = vpack.c.bf16 %v3962, %v3962
        %v4151 = vpack.c.bf16 %v3969, %v3969
        %v4152 = vpack.c.bf16 %v3976, %v3976
        %v4153 = vpack.c.bf16 %v3983, %v3983
        %v4154 = vpack.c.bf16 %v3990, %v3990
        %v4155 = vpack.c.bf16 %v3997, %v3997
        %v4156 = vpack.c.bf16 %v4004, %v4004
        %v4157 = vpack.c.bf16 %v4011, %v4011
        %v4158 = vpack.c.bf16 %v4018, %v4018
        %v4159 = vpack.c.bf16 %v4025, %v4025
        %v4160 = vpack.c.bf16 %v4032, %v4032
        %v4161 = vpack.c.bf16 %v4039, %v4039
        %v4162 = vpack.c.bf16 %v4046, %v4046
        %v4163 = vpack.c.bf16 %v4053, %v4053
        %v4164 = vpack.c.bf16 %v4060, %v4060
        %v4165 = vpack.c.bf16 %v4067, %v4067
        %v4166 = vpack.c.bf16 %v4074, %v4074
        %v4167 = vpack.c.bf16 %v4081, %v4081
        %v4168 = vpack.c.bf16 %v4088, %v4088
        %v4169 = vpack.c.bf16 %v4095, %v4095
        %v4170 = vpack.c.bf16 %v4102, %v4102
        %v4171 = vpack.c.bf16 %v4109, %v4109
        %v4172 = vpack.c.bf16 %v4116, %v4116
        %v4173 = vpack.c.bf16 %v4123, %v4123
        %v4174 = vpack.c.bf16 %v4130, %v4130
        %v4175 = vpack.c.bf16 %v4137, %v4137
        %v4176 = vpack.c.bf16 %v4144, %v4144
        %v4177 = vld [vmem:[#allocation6] sm:$0xf]
        %v4178 = vld [vmem:[#allocation6 + $0x4] sm:$0xf]
        %v4179 = vld [vmem:[#allocation6 + $0x8] sm:$0xf]
        %v4180 = vld [vmem:[#allocation6 + $0xc] sm:$0xf]
        %v4181 = vld [vmem:[#allocation6 + $0x10] sm:$0xf]
        %v4182 = vld [vmem:[#allocation6 + $0x14] sm:$0xf]
        %v4183 = vld [vmem:[#allocation6 + $0x18] sm:$0xf]
        %v4184 = vld [vmem:[#allocation6 + $0x1c] sm:$0xf]
        %v4185 = vld [vmem:[%s13] sm:$0x1]
        %v4187 = vlaneseq
        %v4188 = vshrl.u32 %v4187, 7
        %v4189 = vsub.s32 0, %v4188
        %v4190 = vrot.slane %v4185, %v4189
        %v4224 = vunpack.c.l.b16 %v4145
        %v4225 = vunpack.c.l.b16 %v4146
        %v4226 = vunpack.c.l.b16 %v4147
        %v4227 = vunpack.c.l.b16 %v4148
        %v4228 = vunpack.c.l.b16 %v4149
        %v4229 = vunpack.c.l.b16 %v4150
        %v4230 = vunpack.c.l.b16 %v4151
        %v4231 = vunpack.c.l.b16 %v4152
        %v4232 = vunpack.c.l.b16 %v4153
        %v4233 = vunpack.c.l.b16 %v4154
        %v4234 = vunpack.c.l.b16 %v4155
        %v4235 = vunpack.c.l.b16 %v4156
        %v4236 = vunpack.c.l.b16 %v4157
        %v4237 = vunpack.c.l.b16 %v4158
        %v4238 = vunpack.c.l.b16 %v4159
        %v4239 = vunpack.c.l.b16 %v4160
        %v4240 = vunpack.c.l.b16 %v4161
        %v4241 = vunpack.c.l.b16 %v4162
        %v4242 = vunpack.c.l.b16 %v4163
        %v4243 = vunpack.c.l.b16 %v4164
        %v4244 = vunpack.c.l.b16 %v4165
        %v4245 = vunpack.c.l.b16 %v4166
        %v4246 = vunpack.c.l.b16 %v4167
        %v4247 = vunpack.c.l.b16 %v4168
        %v4248 = vunpack.c.l.b16 %v4169
        %v4249 = vunpack.c.l.b16 %v4170
        %v4250 = vunpack.c.l.b16 %v4171
        %v4251 = vunpack.c.l.b16 %v4172
        %v4252 = vunpack.c.l.b16 %v4173
        %v4253 = vunpack.c.l.b16 %v4174
        %v4254 = vunpack.c.l.b16 %v4175
        %v4255 = vunpack.c.l.b16 %v4176
        %v4256 = vsel %vm2796, %v4225, %v4224
        %v4257 = vsel %vm2798, %v4226, %v4256
        %v4258 = vsel %vm2800, %v4227, %v4257
        %v4259 = vsel %vm2802, %v4228, %v4258
        %v4260 = vsel %vm2804, %v4229, %v4259
        %v4261 = vsel %vm2806, %v4230, %v4260
        %v4262 = vsel %vm2808, %v4231, %v4261
        %v4263 = vsel %vm2796, %v4233, %v4232
        %v4264 = vsel %vm2798, %v4234, %v4263
        %v4265 = vsel %vm2800, %v4235, %v4264
        %v4266 = vsel %vm2802, %v4236, %v4265
        %v4267 = vsel %vm2804, %v4237, %v4266
        %v4268 = vsel %vm2806, %v4238, %v4267
        %v4269 = vsel %vm2808, %v4239, %v4268
        %v4270 = vsel %vm2796, %v4241, %v4240
        %v4271 = vsel %vm2798, %v4242, %v4270
        %v4272 = vsel %vm2800, %v4243, %v4271
        %v4273 = vsel %vm2802, %v4244, %v4272
        %v4274 = vsel %vm2804, %v4245, %v4273
        %v4275 = vsel %vm2806, %v4246, %v4274
        %v4276 = vsel %vm2808, %v4247, %v4275
        %v4277 = vsel %vm2796, %v4249, %v4248
        %v4278 = vsel %vm2798, %v4250, %v4277
        %v4279 = vsel %vm2800, %v4251, %v4278
        %v4280 = vsel %vm2802, %v4252, %v4279
        %v4281 = vsel %vm2804, %v4253, %v4280
        %v4282 = vsel %vm2806, %v4254, %v4281
        %v4283 = vsel %vm2808, %v4255, %v4282
        %v4284 = vpack.c.b16 %v4269, %v4262
        %v4285 = vpack.c.b16 %v4283, %v4276
        %v4294 = vunpack.c.l.b16 %v4177
        %v4295 = vunpack.c.l.b16 %v4178
        %v4296 = vunpack.c.l.b16 %v4179
        %v4297 = vunpack.c.l.b16 %v4180
        %v4298 = vunpack.c.l.b16 %v4181
        %v4299 = vunpack.c.l.b16 %v4182
        %v4300 = vunpack.c.l.b16 %v4183
        %v4301 = vunpack.c.l.b16 %v4184
        %v4302 = vpack.c.b16 %v4295, %v4294
        %v4303 = vpack.c.b16 %v4297, %v4296
        %v4304 = vpack.c.b16 %v4299, %v4298
        %v4305 = vpack.c.b16 %v4301, %v4300
        %v4311 = vsel %vm1731, %v4284, 0
        %v4314 = vsel %vm1731, %v4285, 0
        %4316 = vmatprep.subr.bf16.mxu0 0
        %4317 = vmatpush1.bf16.msra.mxu0 %v4302
        %4318 = vmatprep.subr.bf16.mxu0 0
        %4319 = vmatpush1.bf16.msra.mxu0 %v4303
        %4320 = vmatprep.subr.bf16.mxu0 0
        %4321 = vmatpush1.bf16.msra.mxu0 %v4304
        %4322 = vmatprep.subr.bf16.mxu0 0
        %4323 = vmatpush1.bf16.msra.mxu0 %v4305
        %4324 = vmatprep.subr.bf16.mxu0 0
        %4325 = vmatpush1.bf16.msra.mxu0 0
        %4326 = vmatprep.subr.bf16.mxu0 0
        %4327 = vmatpush1.bf16.msra.mxu0 0
        %4328 = vmatprep.subr.bf16.mxu0 0
        %4329 = vmatpush1.bf16.msra.mxu0 0
        %4330 = vmatprep.subr.bf16.mxu0 0
        %4331 = vmatpush1.bf16.msra.mxu0 0
        %4332 = vmatprep.subr.bf16.mxu0 0
        %4333 = vmatpush1.bf16.msra.mxu0 0
        %4334 = vmatprep.subr.bf16.mxu0 0
        %4335 = vmatpush1.bf16.msra.mxu0 0
        %4336 = vmatprep.subr.bf16.mxu0 0
        %4337 = vmatpush1.bf16.msra.mxu0 0
        %4338 = vmatprep.subr.bf16.mxu0 0
        %4339 = vmatpush1.bf16.msra.mxu0 0
        %4340 = vmatprep.subr.bf16.mxu0 0
        %4341 = vmatpush1.bf16.msra.mxu0 0
        %4342 = vmatprep.subr.bf16.mxu0 0
        %4343 = vmatpush1.bf16.msra.mxu0 0
        %4344 = vmatprep.subr.bf16.mxu0 0
        %4345 = vmatpush1.bf16.msra.mxu0 0
        %4346 = vmatprep.subr.bf16.mxu0 0
        %4347 = vmatpush1.bf16.msra.mxu0 0
        %4348 = vmatprep.mubr.bf16.mxu0 0
        %4349 = vmatmul.mubr.bf16.gmra.mrb[0].mxu0 %v4311
        %v4350 = vpop.f32.mrb[0].mxu0
        %v4351 = vadd.f32 %v4190, %v4350
        %v4352 = vpop.f32.mrb[0].mxu0
        %v4353 = vpop.f32.mrb[0].mxu0
        %v4354 = vadd.f32 %v4190, %v4353
        %v4355 = vpop.f32.mrb[0].mxu0
        %4356 = vmatprep.mubr.bf16.mxu0 0
        %4357 = vmatmul.mubr.bf16.gmra.mrb[0].mxu0 %v4314
        %v4358 = vpop.f32.mrb[0].mxu0
        %v4359 = vadd.f32 %v4190, %v4358
        %v4360 = vpop.f32.mrb[0].mxu0
        %v4361 = vpop.f32.mrb[0].mxu0
        %v4362 = vadd.f32 %v4190, %v4361
        %v4363 = vpop.f32.mrb[0].mxu0
        %4364 = vdwg.mxu0
        %v4365 = vmax.f32 %v4351, 0.0
        %v4366 = vmax.f32 %v4354, 0.0
        %v4367 = vmax.f32 %v4359, 0.0
        %v4368 = vmax.f32 %v4362, 0.0
        %v4369 = vpack.c.bf16 %v4366, %v4365
        %v4370 = vpack.c.bf16 %v4368, %v4367
        %v4371 = vld [vmem:[%s14] sm:$0xff]
        %v4372 = vld [vmem:[%s14 + $0x8] sm:$0xff]
        %v4373 = vld [vmem:[%s14 + $0x10] sm:$0xff]
        %v4374 = vld [vmem:[%s14 + $0x18] sm:$0xff]
        %v4375 = vld [vmem:[%s14 + $0x20] sm:$0xff]
        %v4376 = vld [vmem:[%s14 + $0x28] sm:$0xff]
        %v4377 = vld [vmem:[%s14 + $0x30] sm:$0xff]
        %v4378 = vld [vmem:[%s14 + $0x38] sm:$0xff]
        %v4379 = vld [vmem:[%s14 + $0x40] sm:$0xff]
        %v4380 = vld [vmem:[%s14 + $0x48] sm:$0xff]
        %v4381 = vld [vmem:[%s14 + $0x50] sm:$0xff]
        %v4382 = vld [vmem:[%s14 + $0x58] sm:$0xff]
        %v4383 = vld [vmem:[%s14 + $0x60] sm:$0xff]
        %v4384 = vld [vmem:[%s14 + $0x68] sm:$0xff]
        %v4385 = vld [vmem:[%s14 + $0x70] sm:$0xff]
        %v4386 = vld [vmem:[%s14 + $0x78] sm:$0xff]
        %v4387 = vld [vmem:[%s15] sm:$0xf]
        %v4389 = vlaneseq
        %v4390 = vshrl.u32 %v4389, 7
        %v4391 = vsub.s32 0, %v4390
        %v4392 = vrot.slane %v4387, %v4391
        %v4393 = vlaneseq
        %v4394 = vshrl.u32 %v4393, 7
        %v4395 = vsub.s32 1, %v4394
        %v4396 = vrot.slane %v4387, %v4395
        %v4397 = vlaneseq
        %v4398 = vshrl.u32 %v4397, 7
        %v4399 = vsub.s32 2, %v4398
        %v4400 = vrot.slane %v4387, %v4399
        %v4401 = vlaneseq
        %v4402 = vshrl.u32 %v4401, 7
        %v4403 = vsub.s32 3, %v4402
        %v4404 = vrot.slane %v4387, %v4403
        %v4425 = vunpack.c.l.b16 %v4371
        %v4426 = vunpack.c.h.b16 %v4371
        %v4427 = vunpack.c.l.b16 %v4372
        %v4428 = vunpack.c.h.b16 %v4372
        %v4429 = vunpack.c.l.b16 %v4373
        %v4430 = vunpack.c.h.b16 %v4373
        %v4431 = vunpack.c.l.b16 %v4374
        %v4432 = vunpack.c.h.b16 %v4374
        %v4433 = vunpack.c.l.b16 %v4375
        %v4434 = vunpack.c.h.b16 %v4375
        %v4435 = vunpack.c.l.b16 %v4376
        %v4436 = vunpack.c.h.b16 %v4376
        %v4437 = vunpack.c.l.b16 %v4377
        %v4438 = vunpack.c.h.b16 %v4377
        %v4439 = vunpack.c.l.b16 %v4378
        %v4440 = vunpack.c.h.b16 %v4378
        %v4441 = vunpack.c.l.b16 %v4379
        %v4442 = vunpack.c.h.b16 %v4379
        %v4443 = vunpack.c.l.b16 %v4380
        %v4444 = vunpack.c.h.b16 %v4380
        %v4445 = vunpack.c.l.b16 %v4381
        %v4446 = vunpack.c.h.b16 %v4381
        %v4447 = vunpack.c.l.b16 %v4382
        %v4448 = vunpack.c.h.b16 %v4382
        %v4449 = vunpack.c.l.b16 %v4383
        %v4450 = vunpack.c.h.b16 %v4383
        %v4451 = vunpack.c.l.b16 %v4384
        %v4452 = vunpack.c.h.b16 %v4384
        %v4453 = vunpack.c.l.b16 %v4385
        %v4454 = vunpack.c.h.b16 %v4385
        %v4455 = vunpack.c.l.b16 %v4386
        %v4456 = vunpack.c.h.b16 %v4386
        %v4457 = vpack.c.b16 %v4429, %v4425
        %v4458 = vpack.c.b16 %v4430, %v4426
        %v4459 = vpack.c.b16 %v4431, %v4427
        %v4460 = vpack.c.b16 %v4432, %v4428
        %v4461 = vpack.c.b16 %v4437, %v4433
        %v4462 = vpack.c.b16 %v4438, %v4434
        %v4463 = vpack.c.b16 %v4439, %v4435
        %v4464 = vpack.c.b16 %v4440, %v4436
        %v4465 = vpack.c.b16 %v4445, %v4441
        %v4466 = vpack.c.b16 %v4446, %v4442
        %v4467 = vpack.c.b16 %v4447, %v4443
        %v4468 = vpack.c.b16 %v4448, %v4444
        %v4469 = vpack.c.b16 %v4453, %v4449
        %v4470 = vpack.c.b16 %v4454, %v4450
        %v4471 = vpack.c.b16 %v4455, %v4451
        %v4472 = vpack.c.b16 %v4456, %v4452
        %v4490 = vsel %vm1731, %v4369, 0
        %v4493 = vsel %vm1731, %v4370, 0
        %4495 = vmatprep.subr.bf16.mxu0 %v4458
        %4496 = vmatpush1.bf16.msra.mxu0 %v4457
        %4497 = vmatprep.subr.bf16.mxu0 %v4462
        %4498 = vmatpush1.bf16.msra.mxu0 %v4461
        %4499 = vmatprep.subr.bf16.mxu0 %v4466
        %4500 = vmatpush1.bf16.msra.mxu0 %v4465
        %4501 = vmatprep.subr.bf16.mxu0 %v4470
        %4502 = vmatpush1.bf16.msra.mxu0 %v4469
        %4503 = vmatprep.subr.bf16.mxu0 0
        %4504 = vmatpush1.bf16.msra.mxu0 0
        %4505 = vmatprep.subr.bf16.mxu0 0
        %4506 = vmatpush1.bf16.msra.mxu0 0
        %4507 = vmatprep.subr.bf16.mxu0 0
        %4508 = vmatpush1.bf16.msra.mxu0 0
        %4509 = vmatprep.subr.bf16.mxu0 0
        %4510 = vmatpush1.bf16.msra.mxu0 0
        %4511 = vmatprep.subr.bf16.mxu0 0
        %4512 = vmatpush1.bf16.msra.mxu0 0
        %4513 = vmatprep.subr.bf16.mxu0 0
        %4514 = vmatpush1.bf16.msra.mxu0 0
        %4515 = vmatprep.subr.bf16.mxu0 0
        %4516 = vmatpush1.bf16.msra.mxu0 0
        %4517 = vmatprep.subr.bf16.mxu0 0
        %4518 = vmatpush1.bf16.msra.mxu0 0
        %4519 = vmatprep.subr.bf16.mxu0 0
        %4520 = vmatpush1.bf16.msra.mxu0 0
        %4521 = vmatprep.subr.bf16.mxu0 0
        %4522 = vmatpush1.bf16.msra.mxu0 0
        %4523 = vmatprep.subr.bf16.mxu0 0
        %4524 = vmatpush1.bf16.msra.mxu0 0
        %4525 = vmatprep.subr.bf16.mxu0 0
        %4526 = vmatpush1.bf16.msra.mxu0 0
        %4527 = vmatprep.mubr.bf16.mxu0 0
        %4528 = vmatmul.mubr.bf16.gmra.mrb[0].mxu0 %v4490
        %v4529 = vpop.f32.mrb[0].mxu0
        %v4530 = vadd.f32 %v4392, %v4529
        %v4531 = vpop.f32.mrb[0].mxu0
        %v4532 = vadd.f32 %v4396, %v4531
        %v4533 = vpop.f32.mrb[0].mxu0
        %v4534 = vadd.f32 %v4392, %v4533
        %v4535 = vpop.f32.mrb[0].mxu0
        %v4536 = vadd.f32 %v4396, %v4535
        %4537 = vmatprep.mubr.bf16.mxu0 0
        %4538 = vmatmul.mubr.bf16.gmra.mrb[0].mxu0 %v4493
        %v4539 = vpop.f32.mrb[0].mxu0
        %v4540 = vadd.f32 %v4392, %v4539
        %v4541 = vpop.f32.mrb[0].mxu0
        %v4542 = vadd.f32 %v4396, %v4541
        %v4543 = vpop.f32.mrb[0].mxu0
        %v4544 = vadd.f32 %v4392, %v4543
        %v4545 = vpop.f32.mrb[0].mxu0
        %v4546 = vadd.f32 %v4396, %v4545
        %4547 = vdwg.mxu0
        %4548 = vmatprep.subr.bf16.mxu0 %v4460
        %4549 = vmatpush1.bf16.msra.mxu0 %v4459
        %4550 = vmatprep.subr.bf16.mxu0 %v4464
        %4551 = vmatpush1.bf16.msra.mxu0 %v4463
        %4552 = vmatprep.subr.bf16.mxu0 %v4468
        %4553 = vmatpush1.bf16.msra.mxu0 %v4467
        %4554 = vmatprep.subr.bf16.mxu0 %v4472
        %4555 = vmatpush1.bf16.msra.mxu0 %v4471
        %4556 = vmatprep.subr.bf16.mxu0 0
        %4557 = vmatpush1.bf16.msra.mxu0 0
        %4558 = vmatprep.subr.bf16.mxu0 0
        %4559 = vmatpush1.bf16.msra.mxu0 0
        %4560 = vmatprep.subr.bf16.mxu0 0
        %4561 = vmatpush1.bf16.msra.mxu0 0
        %4562 = vmatprep.subr.bf16.mxu0 0
        %4563 = vmatpush1.bf16.msra.mxu0 0
        %4564 = vmatprep.subr.bf16.mxu0 0
        %4565 = vmatpush1.bf16.msra.mxu0 0
        %4566 = vmatprep.subr.bf16.mxu0 0
        %4567 = vmatpush1.bf16.msra.mxu0 0
        %4568 = vmatprep.subr.bf16.mxu0 0
        %4569 = vmatpush1.bf16.msra.mxu0 0
        %4570 = vmatprep.subr.bf16.mxu0 0
        %4571 = vmatpush1.bf16.msra.mxu0 0
        %4572 = vmatprep.subr.bf16.mxu0 0
        %4573 = vmatpush1.bf16.msra.mxu0 0
        %4574 = vmatprep.subr.bf16.mxu0 0
        %4575 = vmatpush1.bf16.msra.mxu0 0
        %4576 = vmatprep.subr.bf16.mxu0 0
        %4577 = vmatpush1.bf16.msra.mxu0 0
        %4578 = vmatprep.subr.bf16.mxu0 0
        %4579 = vmatpush1.bf16.msra.mxu0 0
        %4580 = vmatprep.mubr.bf16.mxu0 0
        %4581 = vmatmul.mubr.bf16.gmra.mrb[0].mxu0 %v4490
        %v4582 = vpop.f32.mrb[0].mxu0
        %v4583 = vadd.f32 %v4400, %v4582
        %v4584 = vpop.f32.mrb[0].mxu0
        %v4585 = vadd.f32 %v4404, %v4584
        %v4586 = vpop.f32.mrb[0].mxu0
        %v4587 = vadd.f32 %v4400, %v4586
        %v4588 = vpop.f32.mrb[0].mxu0
        %v4589 = vadd.f32 %v4404, %v4588
        %4590 = vmatprep.mubr.bf16.mxu0 0
        %4591 = vmatmul.mubr.bf16.gmra.mrb[0].mxu0 %v4493
        %v4592 = vpop.f32.mrb[0].mxu0
        %v4593 = vadd.f32 %v4400, %v4592
        %v4594 = vpop.f32.mrb[0].mxu0
        %v4595 = vadd.f32 %v4404, %v4594
        %v4596 = vpop.f32.mrb[0].mxu0
        %v4597 = vadd.f32 %v4400, %v4596
        %v4598 = vpop.f32.mrb[0].mxu0
        %v4599 = vadd.f32 %v4404, %v4598
        %4600 = vdwg.mxu0
        %vm4601 = vcmask 7168
        %v4602 = vsel %vm4601, %v1644, -inf
        %v4603 = vrot.slane %v4602, 4
        %v4604 = vmax.f32 %v4602, %v4603
        %v4605 = vrot.slane %v4604, 2
        %v4606 = vmax.f32 %v4604, %v4605
        %v4607 = vrot.slane %v4606, 1
        %v4608 = vmax.f32 %v4606, %v4607
        %v4609 = vsel %vm4601, %v1645, -inf
        %v4610 = vrot.slane %v4609, 4
        %v4611 = vmax.f32 %v4609, %v4610
        %v4612 = vrot.slane %v4611, 2
        %v4613 = vmax.f32 %v4611, %v4612
        %v4614 = vrot.slane %v4613, 1
        %v4615 = vmax.f32 %v4613, %v4614
        %v4616 = vsel %vm4601, %v1646, -inf
        %v4617 = vrot.slane %v4616, 4
        %v4618 = vmax.f32 %v4616, %v4617
        %v4619 = vrot.slane %v4618, 2
        %v4620 = vmax.f32 %v4618, %v4619
        %v4621 = vrot.slane %v4620, 1
        %v4622 = vmax.f32 %v4620, %v4621
        %v4623 = vsel %vm4601, %v1647, -inf
        %v4624 = vrot.slane %v4623, 4
        %v4625 = vmax.f32 %v4623, %v4624
        %v4626 = vrot.slane %v4625, 2
        %v4627 = vmax.f32 %v4625, %v4626
        %v4628 = vrot.slane %v4627, 1
        %v4629 = vmax.f32 %v4627, %v4628
        %v4630 = vsel %vm4601, %v1648, -inf
        %v4631 = vrot.slane %v4630, 4
        %v4632 = vmax.f32 %v4630, %v4631
        %v4633 = vrot.slane %v4632, 2
        %v4634 = vmax.f32 %v4632, %v4633
        %v4635 = vrot.slane %v4634, 1
        %v4636 = vmax.f32 %v4634, %v4635
        %v4637 = vsel %vm4601, %v1649, -inf
        %v4638 = vrot.slane %v4637, 4
        %v4639 = vmax.f32 %v4637, %v4638
        %v4640 = vrot.slane %v4639, 2
        %v4641 = vmax.f32 %v4639, %v4640
        %v4642 = vrot.slane %v4641, 1
        %v4643 = vmax.f32 %v4641, %v4642
        %v4644 = vsel %vm4601, %v1650, -inf
        %v4645 = vrot.slane %v4644, 4
        %v4646 = vmax.f32 %v4644, %v4645
        %v4647 = vrot.slane %v4646, 2
        %v4648 = vmax.f32 %v4646, %v4647
        %v4649 = vrot.slane %v4648, 1
        %v4650 = vmax.f32 %v4648, %v4649
        %v4651 = vsel %vm4601, %v1651, -inf
        %v4652 = vrot.slane %v4651, 4
        %v4653 = vmax.f32 %v4651, %v4652
        %v4654 = vrot.slane %v4653, 2
        %v4655 = vmax.f32 %v4653, %v4654
        %v4656 = vrot.slane %v4655, 1
        %v4657 = vmax.f32 %v4655, %v4656
        %v4658 = vsel %vm4601, %v1652, -inf
        %v4659 = vrot.slane %v4658, 4
        %v4660 = vmax.f32 %v4658, %v4659
        %v4661 = vrot.slane %v4660, 2
        %v4662 = vmax.f32 %v4660, %v4661
        %v4663 = vrot.slane %v4662, 1
        %v4664 = vmax.f32 %v4662, %v4663
        %v4665 = vsel %vm4601, %v1653, -inf
        %v4666 = vrot.slane %v4665, 4
        %v4667 = vmax.f32 %v4665, %v4666
        %v4668 = vrot.slane %v4667, 2
        %v4669 = vmax.f32 %v4667, %v4668
        %v4670 = vrot.slane %v4669, 1
        %v4671 = vmax.f32 %v4669, %v4670
        %v4672 = vsel %vm4601, %v1654, -inf
        %v4673 = vrot.slane %v4672, 4
        %v4674 = vmax.f32 %v4672, %v4673
        %v4675 = vrot.slane %v4674, 2
        %v4676 = vmax.f32 %v4674, %v4675
        %v4677 = vrot.slane %v4676, 1
        %v4678 = vmax.f32 %v4676, %v4677
        %v4679 = vsel %vm4601, %v1655, -inf
        %v4680 = vrot.slane %v4679, 4
        %v4681 = vmax.f32 %v4679, %v4680
        %v4682 = vrot.slane %v4681, 2
        %v4683 = vmax.f32 %v4681, %v4682
        %v4684 = vrot.slane %v4683, 1
        %v4685 = vmax.f32 %v4683, %v4684
        %v4686 = vsel %vm4601, %v1656, -inf
        %v4687 = vrot.slane %v4686, 4
        %v4688 = vmax.f32 %v4686, %v4687
        %v4689 = vrot.slane %v4688, 2
        %v4690 = vmax.f32 %v4688, %v4689
        %v4691 = vrot.slane %v4690, 1
        %v4692 = vmax.f32 %v4690, %v4691
        %v4693 = vsel %vm4601, %v1657, -inf
        %v4694 = vrot.slane %v4693, 4
        %v4695 = vmax.f32 %v4693, %v4694
        %v4696 = vrot.slane %v4695, 2
        %v4697 = vmax.f32 %v4695, %v4696
        %v4698 = vrot.slane %v4697, 1
        %v4699 = vmax.f32 %v4697, %v4698
        %v4700 = vsel %vm4601, %v1658, -inf
        %v4701 = vrot.slane %v4700, 4
        %v4702 = vmax.f32 %v4700, %v4701
        %v4703 = vrot.slane %v4702, 2
        %v4704 = vmax.f32 %v4702, %v4703
        %v4705 = vrot.slane %v4704, 1
        %v4706 = vmax.f32 %v4704, %v4705
        %v4707 = vsel %vm4601, %v1659, -inf
        %v4708 = vrot.slane %v4707, 4
        %v4709 = vmax.f32 %v4707, %v4708
        %v4710 = vrot.slane %v4709, 2
        %v4711 = vmax.f32 %v4709, %v4710
        %v4712 = vrot.slane %v4711, 1
        %v4713 = vmax.f32 %v4711, %v4712
        %v4714 = vsel %vm4601, %v1660, -inf
        %v4715 = vrot.slane %v4714, 4
        %v4716 = vmax.f32 %v4714, %v4715
        %v4717 = vrot.slane %v4716, 2
        %v4718 = vmax.f32 %v4716, %v4717
        %v4719 = vrot.slane %v4718, 1
        %v4720 = vmax.f32 %v4718, %v4719
        %v4721 = vsel %vm4601, %v1661, -inf
        %v4722 = vrot.slane %v4721, 4
        %v4723 = vmax.f32 %v4721, %v4722
        %v4724 = vrot.slane %v4723, 2
        %v4725 = vmax.f32 %v4723, %v4724
        %v4726 = vrot.slane %v4725, 1
        %v4727 = vmax.f32 %v4725, %v4726
        %v4728 = vsel %vm4601, %v1662, -inf
        %v4729 = vrot.slane %v4728, 4
        %v4730 = vmax.f32 %v4728, %v4729
        %v4731 = vrot.slane %v4730, 2
        %v4732 = vmax.f32 %v4730, %v4731
        %v4733 = vrot.slane %v4732, 1
        %v4734 = vmax.f32 %v4732, %v4733
        %v4735 = vsel %vm4601, %v1663, -inf
        %v4736 = vrot.slane %v4735, 4
        %v4737 = vmax.f32 %v4735, %v4736
        %v4738 = vrot.slane %v4737, 2
        %v4739 = vmax.f32 %v4737, %v4738
        %v4740 = vrot.slane %v4739, 1
        %v4741 = vmax.f32 %v4739, %v4740
        %v4742 = vsel %vm4601, %v1664, -inf
        %v4743 = vrot.slane %v4742, 4
        %v4744 = vmax.f32 %v4742, %v4743
        %v4745 = vrot.slane %v4744, 2
        %v4746 = vmax.f32 %v4744, %v4745
        %v4747 = vrot.slane %v4746, 1
        %v4748 = vmax.f32 %v4746, %v4747
        %v4749 = vsel %vm4601, %v1665, -inf
        %v4750 = vrot.slane %v4749, 4
        %v4751 = vmax.f32 %v4749, %v4750
        %v4752 = vrot.slane %v4751, 2
        %v4753 = vmax.f32 %v4751, %v4752
        %v4754 = vrot.slane %v4753, 1
        %v4755 = vmax.f32 %v4753, %v4754
        %v4756 = vsel %vm4601, %v1666, -inf
        %v4757 = vrot.slane %v4756, 4
        %v4758 = vmax.f32 %v4756, %v4757
        %v4759 = vrot.slane %v4758, 2
        %v4760 = vmax.f32 %v4758, %v4759
        %v4761 = vrot.slane %v4760, 1
        %v4762 = vmax.f32 %v4760, %v4761
        %v4763 = vsel %vm4601, %v1667, -inf
        %v4764 = vrot.slane %v4763, 4
        %v4765 = vmax.f32 %v4763, %v4764
        %v4766 = vrot.slane %v4765, 2
        %v4767 = vmax.f32 %v4765, %v4766
        %v4768 = vrot.slane %v4767, 1
        %v4769 = vmax.f32 %v4767, %v4768
        %v4770 = vsel %vm4601, %v1668, -inf
        %v4771 = vrot.slane %v4770, 4
        %v4772 = vmax.f32 %v4770, %v4771
        %v4773 = vrot.slane %v4772, 2
        %v4774 = vmax.f32 %v4772, %v4773
        %v4775 = vrot.slane %v4774, 1
        %v4776 = vmax.f32 %v4774, %v4775
        %v4777 = vsel %vm4601, %v1669, -inf
        %v4778 = vrot.slane %v4777, 4
        %v4779 = vmax.f32 %v4777, %v4778
        %v4780 = vrot.slane %v4779, 2
        %v4781 = vmax.f32 %v4779, %v4780
        %v4782 = vrot.slane %v4781, 1
        %v4783 = vmax.f32 %v4781, %v4782
        %v4784 = vsel %vm4601, %v1670, -inf
        %v4785 = vrot.slane %v4784, 4
        %v4786 = vmax.f32 %v4784, %v4785
        %v4787 = vrot.slane %v4786, 2
        %v4788 = vmax.f32 %v4786, %v4787
        %v4789 = vrot.slane %v4788, 1
        %v4790 = vmax.f32 %v4788, %v4789
        %v4791 = vsel %vm4601, %v1671, -inf
        %v4792 = vrot.slane %v4791, 4
        %v4793 = vmax.f32 %v4791, %v4792
        %v4794 = vrot.slane %v4793, 2
        %v4795 = vmax.f32 %v4793, %v4794
        %v4796 = vrot.slane %v4795, 1
        %v4797 = vmax.f32 %v4795, %v4796
        %v4798 = vsel %vm4601, %v1672, -inf
        %v4799 = vrot.slane %v4798, 4
        %v4800 = vmax.f32 %v4798, %v4799
        %v4801 = vrot.slane %v4800, 2
        %v4802 = vmax.f32 %v4800, %v4801
        %v4803 = vrot.slane %v4802, 1
        %v4804 = vmax.f32 %v4802, %v4803
        %v4805 = vsel %vm4601, %v1673, -inf
        %v4806 = vrot.slane %v4805, 4
        %v4807 = vmax.f32 %v4805, %v4806
        %v4808 = vrot.slane %v4807, 2
        %v4809 = vmax.f32 %v4807, %v4808
        %v4810 = vrot.slane %v4809, 1
        %v4811 = vmax.f32 %v4809, %v4810
        %v4812 = vsel %vm4601, %v1674, -inf
        %v4813 = vrot.slane %v4812, 4
        %v4814 = vmax.f32 %v4812, %v4813
        %v4815 = vrot.slane %v4814, 2
        %v4816 = vmax.f32 %v4814, %v4815
        %v4817 = vrot.slane %v4816, 1
        %v4818 = vmax.f32 %v4816, %v4817
        %v4819 = vsel %vm4601, %v1675, -inf
        %v4820 = vrot.slane %v4819, 4
        %v4821 = vmax.f32 %v4819, %v4820
        %v4822 = vrot.slane %v4821, 2
        %v4823 = vmax.f32 %v4821, %v4822
        %v4824 = vrot.slane %v4823, 1
        %v4825 = vmax.f32 %v4823, %v4824
        %4827 = vset.pattern.permute.xlu0 0
        %4828 = vperm.xlu0 %4827, %v4608
        %v4829 = vpop.permute.xlu0 %4828
        %4831 = vset.pattern.permute.xlu0 0
        %4832 = vperm.xlu0 %4831, %v4615
        %v4833 = vpop.permute.xlu0 %4832
        %4835 = vset.pattern.permute.xlu0 0
        %4836 = vperm.xlu0 %4835, %v4622
        %v4837 = vpop.permute.xlu0 %4836
        %4839 = vset.pattern.permute.xlu0 0
        %4840 = vperm.xlu0 %4839, %v4629
        %v4841 = vpop.permute.xlu0 %4840
        %4843 = vset.pattern.permute.xlu0 0
        %4844 = vperm.xlu0 %4843, %v4636
        %v4845 = vpop.permute.xlu0 %4844
        %4847 = vset.pattern.permute.xlu0 0
        %4848 = vperm.xlu0 %4847, %v4643
        %v4849 = vpop.permute.xlu0 %4848
        %4851 = vset.pattern.permute.xlu0 0
        %4852 = vperm.xlu0 %4851, %v4650
        %v4853 = vpop.permute.xlu0 %4852
        %4855 = vset.pattern.permute.xlu0 0
        %4856 = vperm.xlu0 %4855, %v4657
        %v4857 = vpop.permute.xlu0 %4856
        %4859 = vset.pattern.permute.xlu0 0
        %4860 = vperm.xlu0 %4859, %v4664
        %v4861 = vpop.permute.xlu0 %4860
        %4863 = vset.pattern.permute.xlu0 0
        %4864 = vperm.xlu0 %4863, %v4671
        %v4865 = vpop.permute.xlu0 %4864
        %4867 = vset.pattern.permute.xlu0 0
        %4868 = vperm.xlu0 %4867, %v4678
        %v4869 = vpop.permute.xlu0 %4868
        %4871 = vset.pattern.permute.xlu0 0
        %4872 = vperm.xlu0 %4871, %v4685
        %v4873 = vpop.permute.xlu0 %4872
        %4875 = vset.pattern.permute.xlu0 0
        %4876 = vperm.xlu0 %4875, %v4692
        %v4877 = vpop.permute.xlu0 %4876
        %4879 = vset.pattern.permute.xlu0 0
        %4880 = vperm.xlu0 %4879, %v4699
        %v4881 = vpop.permute.xlu0 %4880
        %4883 = vset.pattern.permute.xlu0 0
        %4884 = vperm.xlu0 %4883, %v4706
        %v4885 = vpop.permute.xlu0 %4884
        %4887 = vset.pattern.permute.xlu0 0
        %4888 = vperm.xlu0 %4887, %v4713
        %v4889 = vpop.permute.xlu0 %4888
        %4891 = vset.pattern.permute.xlu0 0
        %4892 = vperm.xlu0 %4891, %v4720
        %v4893 = vpop.permute.xlu0 %4892
        %4895 = vset.pattern.permute.xlu0 0
        %4896 = vperm.xlu0 %4895, %v4727
        %v4897 = vpop.permute.xlu0 %4896
        %4899 = vset.pattern.permute.xlu0 0
        %4900 = vperm.xlu0 %4899, %v4734
        %v4901 = vpop.permute.xlu0 %4900
        %4903 = vset.pattern.permute.xlu0 0
        %4904 = vperm.xlu0 %4903, %v4741
        %v4905 = vpop.permute.xlu0 %4904
        %4907 = vset.pattern.permute.xlu0 0
        %4908 = vperm.xlu0 %4907, %v4748
        %v4909 = vpop.permute.xlu0 %4908
        %4911 = vset.pattern.permute.xlu0 0
        %4912 = vperm.xlu0 %4911, %v4755
        %v4913 = vpop.permute.xlu0 %4912
        %4915 = vset.pattern.permute.xlu0 0
        %4916 = vperm.xlu0 %4915, %v4762
        %v4917 = vpop.permute.xlu0 %4916
        %4919 = vset.pattern.permute.xlu0 0
        %4920 = vperm.xlu0 %4919, %v4769
        %v4921 = vpop.permute.xlu0 %4920
        %4923 = vset.pattern.permute.xlu0 0
        %4924 = vperm.xlu0 %4923, %v4776
        %v4925 = vpop.permute.xlu0 %4924
        %4927 = vset.pattern.permute.xlu0 0
        %4928 = vperm.xlu0 %4927, %v4783
        %v4929 = vpop.permute.xlu0 %4928
        %4931 = vset.pattern.permute.xlu0 0
        %4932 = vperm.xlu0 %4931, %v4790
        %v4933 = vpop.permute.xlu0 %4932
        %4935 = vset.pattern.permute.xlu0 0
        %4936 = vperm.xlu0 %4935, %v4797
        %v4937 = vpop.permute.xlu0 %4936
        %4939 = vset.pattern.permute.xlu0 0
        %4940 = vperm.xlu0 %4939, %v4804
        %v4941 = vpop.permute.xlu0 %4940
        %4943 = vset.pattern.permute.xlu0 0
        %4944 = vperm.xlu0 %4943, %v4811
        %v4945 = vpop.permute.xlu0 %4944
        %4947 = vset.pattern.permute.xlu0 0
        %4948 = vperm.xlu0 %4947, %v4818
        %v4949 = vpop.permute.xlu0 %4948
        %4951 = vset.pattern.permute.xlu0 0
        %4952 = vperm.xlu0 %4951, %v4825
        %v4953 = vpop.permute.xlu0 %4952
        %v4954 = vsel %vm2796, %v4833, %v4829
        %v4955 = vsel %vm2798, %v4837, %v4954
        %v4956 = vsel %vm2800, %v4841, %v4955
        %v4957 = vsel %vm2802, %v4845, %v4956
        %v4958 = vsel %vm2804, %v4849, %v4957
        %v4959 = vsel %vm2806, %v4853, %v4958
        %v4960 = vsel %vm2808, %v4857, %v4959
        %v4961 = vsel %vm2796, %v4865, %v4861
        %v4962 = vsel %vm2798, %v4869, %v4961
        %v4963 = vsel %vm2800, %v4873, %v4962
        %v4964 = vsel %vm2802, %v4877, %v4963
        %v4965 = vsel %vm2804, %v4881, %v4964
        %v4966 = vsel %vm2806, %v4885, %v4965
        %v4967 = vsel %vm2808, %v4889, %v4966
        %v4968 = vsel %vm2796, %v4897, %v4893
        %v4969 = vsel %vm2798, %v4901, %v4968
        %v4970 = vsel %vm2800, %v4905, %v4969
        %v4971 = vsel %vm2802, %v4909, %v4970
        %v4972 = vsel %vm2804, %v4913, %v4971
        %v4973 = vsel %vm2806, %v4917, %v4972
        %v4974 = vsel %vm2808, %v4921, %v4973
        %v4975 = vsel %vm2796, %v4929, %v4925
        %v4976 = vsel %vm2798, %v4933, %v4975
        %v4977 = vsel %vm2800, %v4937, %v4976
        %v4978 = vsel %vm2802, %v4941, %v4977
        %v4979 = vsel %vm2804, %v4945, %v4978
        %v4980 = vsel %vm2806, %v4949, %v4979
        %v4981 = vsel %vm2808, %v4953, %v4980
        %v4986 = vmul.f32 %v4530, %v4960
        %v4987 = vmul.f32 %v4532, %v4960
        %v4988 = vmul.f32 %v4583, %v4960
        %v4989 = vmul.f32 %v4585, %v4960
        %v4990 = vmul.f32 %v4534, %v4967
        %v4991 = vmul.f32 %v4536, %v4967
        %v4992 = vmul.f32 %v4587, %v4967
        %v4993 = vmul.f32 %v4589, %v4967
        %v4994 = vmul.f32 %v4540, %v4974
        %v4995 = vmul.f32 %v4542, %v4974
        %v4996 = vmul.f32 %v4593, %v4974
        %v4997 = vmul.f32 %v4595, %v4974
        %v4998 = vmul.f32 %v4544, %v4981
        %v4999 = vmul.f32 %v4546, %v4981
        %v5000 = vmul.f32 %v4597, %v4981
        %v5001 = vmul.f32 %v4599, %v4981
        %v5018 = vcombine.low %v4986, %v4987
        %v5019 = vcombine.high %v4986, %v4987
        %v5020 = vcombine.low %v4988, %v4989
        %v5021 = vcombine.high %v4988, %v4989
        %v5023 = vunpack.c.l.s4 1966171168
        %v5024 = vunpack.c.0.s8 %v5023
        %v5025 = vlaneseq
        %v5026 = vshrl.u32 %v5025, 7
        %v5027 = vsub.s32 %v5024, %v5026
        %v5028 = vrot.slane %v5018, %v5027
        %v5030 = vunpack.c.l.s4 1966171168
        %v5031 = vunpack.c.0.s8 %v5030
        %v5032 = vlaneseq
        %v5033 = vshrl.u32 %v5032, 7
        %v5034 = vsub.s32 %v5031, %v5033
        %v5035 = vrot.slane %v5019, %v5034
        %v5037 = vunpack.c.l.s4 1966171168
        %v5038 = vunpack.c.0.s8 %v5037
        %v5039 = vlaneseq
        %v5040 = vshrl.u32 %v5039, 7
        %v5041 = vsub.s32 %v5038, %v5040
        %v5042 = vrot.slane %v5020, %v5041
        %v5044 = vunpack.c.l.s4 1966171168
        %v5045 = vunpack.c.0.s8 %v5044
        %v5046 = vlaneseq
        %v5047 = vshrl.u32 %v5046, 7
        %v5048 = vsub.s32 %v5045, %v5047
        %v5049 = vrot.slane %v5021, %v5048
        %v5050 = vcombine.low %v5028, %v5042
        %v5051 = vcombine.high %v5028, %v5042
        %v5052 = vcombine.low %v5035, %v5049
        %v5053 = vcombine.high %v5035, %v5049
        %v5055 = vunpack.c.l.s4 1966171168
        %v5056 = vunpack.c.0.s8 %v5055
        %v5057 = vlaneseq
        %v5058 = vshrl.u32 %v5057, 7
        %v5059 = vsub.s32 %v5056, %v5058
        %v5060 = vrot.slane %v5050, %v5059
        %v5062 = vunpack.c.l.s4 1966171168
        %v5063 = vunpack.c.0.s8 %v5062
        %v5064 = vlaneseq
        %v5065 = vshrl.u32 %v5064, 7
        %v5066 = vsub.s32 %v5063, %v5065
        %v5067 = vrot.slane %v5052, %v5066
        %v5069 = vunpack.c.l.s4 1966171168
        %v5070 = vunpack.c.0.s8 %v5069
        %v5071 = vlaneseq
        %v5072 = vshrl.u32 %v5071, 7
        %v5073 = vsub.s32 %v5070, %v5072
        %v5074 = vrot.slane %v5051, %v5073
        %v5076 = vunpack.c.l.s4 1966171168
        %v5077 = vunpack.c.0.s8 %v5076
        %v5078 = vlaneseq
        %v5079 = vshrl.u32 %v5078, 7
        %v5080 = vsub.s32 %v5077, %v5079
        %v5081 = vrot.slane %v5053, %v5080
        %v5082 = vcombine.high %v5060, %v5060
        %v5083 = vcombine.high %v5067, %v5067
        %v5084 = vcombine.high %v5074, %v5074
        %v5085 = vcombine.high %v5081, %v5081
        %v5086 = vcombine.low %v4990, %v4991
        %v5087 = vcombine.high %v4990, %v4991
        %v5088 = vcombine.low %v4992, %v4993
        %v5089 = vcombine.high %v4992, %v4993
        %v5091 = vunpack.c.l.s4 1966171168
        %v5092 = vunpack.c.0.s8 %v5091
        %v5093 = vlaneseq
        %v5094 = vshrl.u32 %v5093, 7
        %v5095 = vsub.s32 %v5092, %v5094
        %v5096 = vrot.slane %v5086, %v5095
        %v5098 = vunpack.c.l.s4 1966171168
        %v5099 = vunpack.c.0.s8 %v5098
        %v5100 = vlaneseq
        %v5101 = vshrl.u32 %v5100, 7
        %v5102 = vsub.s32 %v5099, %v5101
        %v5103 = vrot.slane %v5087, %v5102
        %v5105 = vunpack.c.l.s4 1966171168
        %v5106 = vunpack.c.0.s8 %v5105
        %v5107 = vlaneseq
        %v5108 = vshrl.u32 %v5107, 7
        %v5109 = vsub.s32 %v5106, %v5108
        %v5110 = vrot.slane %v5088, %v5109
        %v5112 = vunpack.c.l.s4 1966171168
        %v5113 = vunpack.c.0.s8 %v5112
        %v5114 = vlaneseq
        %v5115 = vshrl.u32 %v5114, 7
        %v5116 = vsub.s32 %v5113, %v5115
        %v5117 = vrot.slane %v5089, %v5116
        %v5118 = vcombine.low %v5096, %v5110
        %v5119 = vcombine.high %v5096, %v5110
        %v5120 = vcombine.low %v5103, %v5117
        %v5121 = vcombine.high %v5103, %v5117
        %v5123 = vunpack.c.l.s4 1966171168
        %v5124 = vunpack.c.0.s8 %v5123
        %v5125 = vlaneseq
        %v5126 = vshrl.u32 %v5125, 7
        %v5127 = vsub.s32 %v5124, %v5126
        %v5128 = vrot.slane %v5118, %v5127
        %v5130 = vunpack.c.l.s4 1966171168
        %v5131 = vunpack.c.0.s8 %v5130
        %v5132 = vlaneseq
        %v5133 = vshrl.u32 %v5132, 7
        %v5134 = vsub.s32 %v5131, %v5133
        %v5135 = vrot.slane %v5120, %v5134
        %v5137 = vunpack.c.l.s4 1966171168
        %v5138 = vunpack.c.0.s8 %v5137
        %v5139 = vlaneseq
        %v5140 = vshrl.u32 %v5139, 7
        %v5141 = vsub.s32 %v5138, %v5140
        %v5142 = vrot.slane %v5119, %v5141
        %v5144 = vunpack.c.l.s4 1966171168
        %v5145 = vunpack.c.0.s8 %v5144
        %v5146 = vlaneseq
        %v5147 = vshrl.u32 %v5146, 7
        %v5148 = vsub.s32 %v5145, %v5147
        %v5149 = vrot.slane %v5121, %v5148
        %v5150 = vcombine.high %v5128, %v5128
        %v5151 = vcombine.high %v5135, %v5135
        %v5152 = vcombine.high %v5142, %v5142
        %v5153 = vcombine.high %v5149, %v5149
        %v5154 = vcombine.low %v4994, %v4995
        %v5155 = vcombine.high %v4994, %v4995
        %v5156 = vcombine.low %v4996, %v4997
        %v5157 = vcombine.high %v4996, %v4997
        %v5159 = vunpack.c.l.s4 1966171168
        %v5160 = vunpack.c.0.s8 %v5159
        %v5161 = vlaneseq
        %v5162 = vshrl.u32 %v5161, 7
        %v5163 = vsub.s32 %v5160, %v5162
        %v5164 = vrot.slane %v5154, %v5163
        %v5166 = vunpack.c.l.s4 1966171168
        %v5167 = vunpack.c.0.s8 %v5166
        %v5168 = vlaneseq
        %v5169 = vshrl.u32 %v5168, 7
        %v5170 = vsub.s32 %v5167, %v5169
        %v5171 = vrot.slane %v5155, %v5170
        %v5173 = vunpack.c.l.s4 1966171168
        %v5174 = vunpack.c.0.s8 %v5173
        %v5175 = vlaneseq
        %v5176 = vshrl.u32 %v5175, 7
        %v5177 = vsub.s32 %v5174, %v5176
        %v5178 = vrot.slane %v5156, %v5177
        %v5180 = vunpack.c.l.s4 1966171168
        %v5181 = vunpack.c.0.s8 %v5180
        %v5182 = vlaneseq
        %v5183 = vshrl.u32 %v5182, 7
        %v5184 = vsub.s32 %v5181, %v5183
        %v5185 = vrot.slane %v5157, %v5184
        %v5186 = vcombine.low %v5164, %v5178
        %v5187 = vcombine.high %v5164, %v5178
        %v5188 = vcombine.low %v5171, %v5185
        %v5189 = vcombine.high %v5171, %v5185
        %v5191 = vunpack.c.l.s4 1966171168
        %v5192 = vunpack.c.0.s8 %v5191
        %v5193 = vlaneseq
        %v5194 = vshrl.u32 %v5193, 7
        %v5195 = vsub.s32 %v5192, %v5194
        %v5196 = vrot.slane %v5186, %v5195
        %v5198 = vunpack.c.l.s4 1966171168
        %v5199 = vunpack.c.0.s8 %v5198
        %v5200 = vlaneseq
        %v5201 = vshrl.u32 %v5200, 7
        %v5202 = vsub.s32 %v5199, %v5201
        %v5203 = vrot.slane %v5188, %v5202
        %v5205 = vunpack.c.l.s4 1966171168
        %v5206 = vunpack.c.0.s8 %v5205
        %v5207 = vlaneseq
        %v5208 = vshrl.u32 %v5207, 7
        %v5209 = vsub.s32 %v5206, %v5208
        %v5210 = vrot.slane %v5187, %v5209
        %v5212 = vunpack.c.l.s4 1966171168
        %v5213 = vunpack.c.0.s8 %v5212
        %v5214 = vlaneseq
        %v5215 = vshrl.u32 %v5214, 7
        %v5216 = vsub.s32 %v5213, %v5215
        %v5217 = vrot.slane %v5189, %v5216
        %v5218 = vcombine.high %v5196, %v5196
        %v5219 = vcombine.high %v5203, %v5203
        %v5220 = vcombine.high %v5210, %v5210
        %v5221 = vcombine.high %v5217, %v5217
        %v5222 = vcombine.low %v4998, %v4999
        %v5223 = vcombine.high %v4998, %v4999
        %v5224 = vcombine.low %v5000, %v5001
        %v5225 = vcombine.high %v5000, %v5001
        %v5227 = vunpack.c.l.s4 1966171168
        %v5228 = vunpack.c.0.s8 %v5227
        %v5229 = vlaneseq
        %v5230 = vshrl.u32 %v5229, 7
        %v5231 = vsub.s32 %v5228, %v5230
        %v5232 = vrot.slane %v5222, %v5231
        %v5234 = vunpack.c.l.s4 1966171168
        %v5235 = vunpack.c.0.s8 %v5234
        %v5236 = vlaneseq
        %v5237 = vshrl.u32 %v5236, 7
        %v5238 = vsub.s32 %v5235, %v5237
        %v5239 = vrot.slane %v5223, %v5238
        %v5241 = vunpack.c.l.s4 1966171168
        %v5242 = vunpack.c.0.s8 %v5241
        %v5243 = vlaneseq
        %v5244 = vshrl.u32 %v5243, 7
        %v5245 = vsub.s32 %v5242, %v5244
        %v5246 = vrot.slane %v5224, %v5245
        %v5248 = vunpack.c.l.s4 1966171168
        %v5249 = vunpack.c.0.s8 %v5248
        %v5250 = vlaneseq
        %v5251 = vshrl.u32 %v5250, 7
        %v5252 = vsub.s32 %v5249, %v5251
        %v5253 = vrot.slane %v5225, %v5252
        %v5254 = vcombine.low %v5232, %v5246
        %v5255 = vcombine.high %v5232, %v5246
        %v5256 = vcombine.low %v5239, %v5253
        %v5257 = vcombine.high %v5239, %v5253
        %v5259 = vunpack.c.l.s4 1966171168
        %v5260 = vunpack.c.0.s8 %v5259
        %v5261 = vlaneseq
        %v5262 = vshrl.u32 %v5261, 7
        %v5263 = vsub.s32 %v5260, %v5262
        %v5264 = vrot.slane %v5254, %v5263
        %v5266 = vunpack.c.l.s4 1966171168
        %v5267 = vunpack.c.0.s8 %v5266
        %v5268 = vlaneseq
        %v5269 = vshrl.u32 %v5268, 7
        %v5270 = vsub.s32 %v5267, %v5269
        %v5271 = vrot.slane %v5256, %v5270
        %v5273 = vunpack.c.l.s4 1966171168
        %v5274 = vunpack.c.0.s8 %v5273
        %v5275 = vlaneseq
        %v5276 = vshrl.u32 %v5275, 7
        %v5277 = vsub.s32 %v5274, %v5276
        %v5278 = vrot.slane %v5255, %v5277
        %v5280 = vunpack.c.l.s4 1966171168
        %v5281 = vunpack.c.0.s8 %v5280
        %v5282 = vlaneseq
        %v5283 = vshrl.u32 %v5282, 7
        %v5284 = vsub.s32 %v5281, %v5283
        %v5285 = vrot.slane %v5257, %v5284
        %v5286 = vcombine.high %v5264, %v5264
        %v5287 = vcombine.high %v5271, %v5271
        %v5288 = vcombine.high %v5278, %v5278
        %v5289 = vcombine.high %v5285, %v5285
        %v5290 = vlaneseq
        %v5291 = vshrl.u32 %v5290, 7
        %v5292 = vsub.s32 0, %v5291
        %v5293 = vrot.slane %v5060, %v5292
        %v5294 = vlaneseq
        %v5295 = vshrl.u32 %v5294, 7
        %v5296 = vsub.s32 1, %v5295
        %v5297 = vrot.slane %v5060, %v5296
        %v5298 = vlaneseq
        %v5299 = vshrl.u32 %v5298, 7
        %v5300 = vsub.s32 2, %v5299
        %v5301 = vrot.slane %v5060, %v5300
        %v5302 = vlaneseq
        %v5303 = vshrl.u32 %v5302, 7
        %v5304 = vsub.s32 3, %v5303
        %v5305 = vrot.slane %v5060, %v5304
        %v5306 = vlaneseq
        %v5307 = vshrl.u32 %v5306, 7
        %v5308 = vsub.s32 0, %v5307
        %v5309 = vrot.slane %v5074, %v5308
        %v5310 = vlaneseq
        %v5311 = vshrl.u32 %v5310, 7
        %v5312 = vsub.s32 1, %v5311
        %v5313 = vrot.slane %v5074, %v5312
        %v5314 = vlaneseq
        %v5315 = vshrl.u32 %v5314, 7
        %v5316 = vsub.s32 2, %v5315
        %v5317 = vrot.slane %v5074, %v5316
        %v5318 = vlaneseq
        %v5319 = vshrl.u32 %v5318, 7
        %v5320 = vsub.s32 3, %v5319
        %v5321 = vrot.slane %v5074, %v5320
        %v5322 = vlaneseq
        %v5323 = vshrl.u32 %v5322, 7
        %v5324 = vsub.s32 0, %v5323
        %v5325 = vrot.slane %v5082, %v5324
        %v5326 = vlaneseq
        %v5327 = vshrl.u32 %v5326, 7
        %v5328 = vsub.s32 1, %v5327
        %v5329 = vrot.slane %v5082, %v5328
        %v5330 = vlaneseq
        %v5331 = vshrl.u32 %v5330, 7
        %v5332 = vsub.s32 2, %v5331
        %v5333 = vrot.slane %v5082, %v5332
        %v5334 = vlaneseq
        %v5335 = vshrl.u32 %v5334, 7
        %v5336 = vsub.s32 3, %v5335
        %v5337 = vrot.slane %v5082, %v5336
        %v5338 = vlaneseq
        %v5339 = vshrl.u32 %v5338, 7
        %v5340 = vsub.s32 0, %v5339
        %v5341 = vrot.slane %v5084, %v5340
        %v5342 = vlaneseq
        %v5343 = vshrl.u32 %v5342, 7
        %v5344 = vsub.s32 1, %v5343
        %v5345 = vrot.slane %v5084, %v5344
        %v5346 = vlaneseq
        %v5347 = vshrl.u32 %v5346, 7
        %v5348 = vsub.s32 2, %v5347
        %v5349 = vrot.slane %v5084, %v5348
        %v5350 = vlaneseq
        %v5351 = vshrl.u32 %v5350, 7
        %v5352 = vsub.s32 3, %v5351
        %v5353 = vrot.slane %v5084, %v5352
        %v5354 = vlaneseq
        %v5355 = vshrl.u32 %v5354, 7
        %v5356 = vsub.s32 0, %v5355
        %v5357 = vrot.slane %v5067, %v5356
        %v5358 = vlaneseq
        %v5359 = vshrl.u32 %v5358, 7
        %v5360 = vsub.s32 1, %v5359
        %v5361 = vrot.slane %v5067, %v5360
        %v5362 = vlaneseq
        %v5363 = vshrl.u32 %v5362, 7
        %v5364 = vsub.s32 2, %v5363
        %v5365 = vrot.slane %v5067, %v5364
        %v5366 = vlaneseq
        %v5367 = vshrl.u32 %v5366, 7
        %v5368 = vsub.s32 3, %v5367
        %v5369 = vrot.slane %v5067, %v5368
        %v5370 = vlaneseq
        %v5371 = vshrl.u32 %v5370, 7
        %v5372 = vsub.s32 0, %v5371
        %v5373 = vrot.slane %v5081, %v5372
        %v5374 = vlaneseq
        %v5375 = vshrl.u32 %v5374, 7
        %v5376 = vsub.s32 1, %v5375
        %v5377 = vrot.slane %v5081, %v5376
        %v5378 = vlaneseq
        %v5379 = vshrl.u32 %v5378, 7
        %v5380 = vsub.s32 2, %v5379
        %v5381 = vrot.slane %v5081, %v5380
        %v5382 = vlaneseq
        %v5383 = vshrl.u32 %v5382, 7
        %v5384 = vsub.s32 3, %v5383
        %v5385 = vrot.slane %v5081, %v5384
        %v5386 = vlaneseq
        %v5387 = vshrl.u32 %v5386, 7
        %v5388 = vsub.s32 0, %v5387
        %v5389 = vrot.slane %v5083, %v5388
        %v5390 = vlaneseq
        %v5391 = vshrl.u32 %v5390, 7
        %v5392 = vsub.s32 1, %v5391
        %v5393 = vrot.slane %v5083, %v5392
        %v5394 = vlaneseq
        %v5395 = vshrl.u32 %v5394, 7
        %v5396 = vsub.s32 2, %v5395
        %v5397 = vrot.slane %v5083, %v5396
        %v5398 = vlaneseq
        %v5399 = vshrl.u32 %v5398, 7
        %v5400 = vsub.s32 3, %v5399
        %v5401 = vrot.slane %v5083, %v5400
        %v5402 = vlaneseq
        %v5403 = vshrl.u32 %v5402, 7
        %v5404 = vsub.s32 0, %v5403
        %v5405 = vrot.slane %v5085, %v5404
        %v5406 = vlaneseq
        %v5407 = vshrl.u32 %v5406, 7
        %v5408 = vsub.s32 1, %v5407
        %v5409 = vrot.slane %v5085, %v5408
        %v5410 = vlaneseq
        %v5411 = vshrl.u32 %v5410, 7
        %v5412 = vsub.s32 2, %v5411
        %v5413 = vrot.slane %v5085, %v5412
        %v5414 = vlaneseq
        %v5415 = vshrl.u32 %v5414, 7
        %v5416 = vsub.s32 3, %v5415
        %v5417 = vrot.slane %v5085, %v5416
        %v5418 = vlaneseq
        %v5419 = vshrl.u32 %v5418, 7
        %v5420 = vsub.s32 0, %v5419
        %v5421 = vrot.slane %v5128, %v5420
        %v5422 = vlaneseq
        %v5423 = vshrl.u32 %v5422, 7
        %v5424 = vsub.s32 1, %v5423
        %v5425 = vrot.slane %v5128, %v5424
        %v5426 = vlaneseq
        %v5427 = vshrl.u32 %v5426, 7
        %v5428 = vsub.s32 2, %v5427
        %v5429 = vrot.slane %v5128, %v5428
        %v5430 = vlaneseq
        %v5431 = vshrl.u32 %v5430, 7
        %v5432 = vsub.s32 3, %v5431
        %v5433 = vrot.slane %v5128, %v5432
        %v5434 = vlaneseq
        %v5435 = vshrl.u32 %v5434, 7
        %v5436 = vsub.s32 0, %v5435
        %v5437 = vrot.slane %v5142, %v5436
        %v5438 = vlaneseq
        %v5439 = vshrl.u32 %v5438, 7
        %v5440 = vsub.s32 1, %v5439
        %v5441 = vrot.slane %v5142, %v5440
        %v5442 = vlaneseq
        %v5443 = vshrl.u32 %v5442, 7
        %v5444 = vsub.s32 2, %v5443
        %v5445 = vrot.slane %v5142, %v5444
        %v5446 = vlaneseq
        %v5447 = vshrl.u32 %v5446, 7
        %v5448 = vsub.s32 3, %v5447
        %v5449 = vrot.slane %v5142, %v5448
        %v5450 = vlaneseq
        %v5451 = vshrl.u32 %v5450, 7
        %v5452 = vsub.s32 0, %v5451
        %v5453 = vrot.slane %v5150, %v5452
        %v5454 = vlaneseq
        %v5455 = vshrl.u32 %v5454, 7
        %v5456 = vsub.s32 1, %v5455
        %v5457 = vrot.slane %v5150, %v5456
        %v5458 = vlaneseq
        %v5459 = vshrl.u32 %v5458, 7
        %v5460 = vsub.s32 2, %v5459
        %v5461 = vrot.slane %v5150, %v5460
        %v5462 = vlaneseq
        %v5463 = vshrl.u32 %v5462, 7
        %v5464 = vsub.s32 3, %v5463
        %v5465 = vrot.slane %v5150, %v5464
        %v5466 = vlaneseq
        %v5467 = vshrl.u32 %v5466, 7
        %v5468 = vsub.s32 0, %v5467
        %v5469 = vrot.slane %v5152, %v5468
        %v5470 = vlaneseq
        %v5471 = vshrl.u32 %v5470, 7
        %v5472 = vsub.s32 1, %v5471
        %v5473 = vrot.slane %v5152, %v5472
        %v5474 = vlaneseq
        %v5475 = vshrl.u32 %v5474, 7
        %v5476 = vsub.s32 2, %v5475
        %v5477 = vrot.slane %v5152, %v5476
        %v5478 = vlaneseq
        %v5479 = vshrl.u32 %v5478, 7
        %v5480 = vsub.s32 3, %v5479
        %v5481 = vrot.slane %v5152, %v5480
        %v5482 = vlaneseq
        %v5483 = vshrl.u32 %v5482, 7
        %v5484 = vsub.s32 0, %v5483
        %v5485 = vrot.slane %v5135, %v5484
        %v5486 = vlaneseq
        %v5487 = vshrl.u32 %v5486, 7
        %v5488 = vsub.s32 1, %v5487
        %v5489 = vrot.slane %v5135, %v5488
        %v5490 = vlaneseq
        %v5491 = vshrl.u32 %v5490, 7
        %v5492 = vsub.s32 2, %v5491
        %v5493 = vrot.slane %v5135, %v5492
        %v5494 = vlaneseq
        %v5495 = vshrl.u32 %v5494, 7
        %v5496 = vsub.s32 3, %v5495
        %v5497 = vrot.slane %v5135, %v5496
        %v5498 = vlaneseq
        %v5499 = vshrl.u32 %v5498, 7
        %v5500 = vsub.s32 0, %v5499
        %v5501 = vrot.slane %v5149, %v5500
        %v5502 = vlaneseq
        %v5503 = vshrl.u32 %v5502, 7
        %v5504 = vsub.s32 1, %v5503
        %v5505 = vrot.slane %v5149, %v5504
        %v5506 = vlaneseq
        %v5507 = vshrl.u32 %v5506, 7
        %v5508 = vsub.s32 2, %v5507
        %v5509 = vrot.slane %v5149, %v5508
        %v5510 = vlaneseq
        %v5511 = vshrl.u32 %v5510, 7
        %v5512 = vsub.s32 3, %v5511
        %v5513 = vrot.slane %v5149, %v5512
        %v5514 = vlaneseq
        %v5515 = vshrl.u32 %v5514, 7
        %v5516 = vsub.s32 0, %v5515
        %v5517 = vrot.slane %v5151, %v5516
        %v5518 = vlaneseq
        %v5519 = vshrl.u32 %v5518, 7
        %v5520 = vsub.s32 1, %v5519
        %v5521 = vrot.slane %v5151, %v5520
        %v5522 = vlaneseq
        %v5523 = vshrl.u32 %v5522, 7
        %v5524 = vsub.s32 2, %v5523
        %v5525 = vrot.slane %v5151, %v5524
        %v5526 = vlaneseq
        %v5527 = vshrl.u32 %v5526, 7
        %v5528 = vsub.s32 3, %v5527
        %v5529 = vrot.slane %v5151, %v5528
        %v5530 = vlaneseq
        %v5531 = vshrl.u32 %v5530, 7
        %v5532 = vsub.s32 0, %v5531
        %v5533 = vrot.slane %v5153, %v5532
        %v5534 = vlaneseq
        %v5535 = vshrl.u32 %v5534, 7
        %v5536 = vsub.s32 1, %v5535
        %v5537 = vrot.slane %v5153, %v5536
        %v5538 = vlaneseq
        %v5539 = vshrl.u32 %v5538, 7
        %v5540 = vsub.s32 2, %v5539
        %v5541 = vrot.slane %v5153, %v5540
        %v5542 = vlaneseq
        %v5543 = vshrl.u32 %v5542, 7
        %v5544 = vsub.s32 3, %v5543
        %v5545 = vrot.slane %v5153, %v5544
        %v5546 = vlaneseq
        %v5547 = vshrl.u32 %v5546, 7
        %v5548 = vsub.s32 0, %v5547
        %v5549 = vrot.slane %v5196, %v5548
        %v5550 = vlaneseq
        %v5551 = vshrl.u32 %v5550, 7
        %v5552 = vsub.s32 1, %v5551
        %v5553 = vrot.slane %v5196, %v5552
        %v5554 = vlaneseq
        %v5555 = vshrl.u32 %v5554, 7
        %v5556 = vsub.s32 2, %v5555
        %v5557 = vrot.slane %v5196, %v5556
        %v5558 = vlaneseq
        %v5559 = vshrl.u32 %v5558, 7
        %v5560 = vsub.s32 3, %v5559
        %v5561 = vrot.slane %v5196, %v5560
        %v5562 = vlaneseq
        %v5563 = vshrl.u32 %v5562, 7
        %v5564 = vsub.s32 0, %v5563
        %v5565 = vrot.slane %v5210, %v5564
        %v5566 = vlaneseq
        %v5567 = vshrl.u32 %v5566, 7
        %v5568 = vsub.s32 1, %v5567
        %v5569 = vrot.slane %v5210, %v5568
        %v5570 = vlaneseq
        %v5571 = vshrl.u32 %v5570, 7
        %v5572 = vsub.s32 2, %v5571
        %v5573 = vrot.slane %v5210, %v5572
        %v5574 = vlaneseq
        %v5575 = vshrl.u32 %v5574, 7
        %v5576 = vsub.s32 3, %v5575
        %v5577 = vrot.slane %v5210, %v5576
        %v5578 = vlaneseq
        %v5579 = vshrl.u32 %v5578, 7
        %v5580 = vsub.s32 0, %v5579
        %v5581 = vrot.slane %v5218, %v5580
        %v5582 = vlaneseq
        %v5583 = vshrl.u32 %v5582, 7
        %v5584 = vsub.s32 1, %v5583
        %v5585 = vrot.slane %v5218, %v5584
        %v5586 = vlaneseq
        %v5587 = vshrl.u32 %v5586, 7
        %v5588 = vsub.s32 2, %v5587
        %v5589 = vrot.slane %v5218, %v5588
        %v5590 = vlaneseq
        %v5591 = vshrl.u32 %v5590, 7
        %v5592 = vsub.s32 3, %v5591
        %v5593 = vrot.slane %v5218, %v5592
        %v5594 = vlaneseq
        %v5595 = vshrl.u32 %v5594, 7
        %v5596 = vsub.s32 0, %v5595
        %v5597 = vrot.slane %v5220, %v5596
        %v5598 = vlaneseq
        %v5599 = vshrl.u32 %v5598, 7
        %v5600 = vsub.s32 1, %v5599
        %v5601 = vrot.slane %v5220, %v5600
        %v5602 = vlaneseq
        %v5603 = vshrl.u32 %v5602, 7
        %v5604 = vsub.s32 2, %v5603
        %v5605 = vrot.slane %v5220, %v5604
        %v5606 = vlaneseq
        %v5607 = vshrl.u32 %v5606, 7
        %v5608 = vsub.s32 3, %v5607
        %v5609 = vrot.slane %v5220, %v5608
        %v5610 = vlaneseq
        %v5611 = vshrl.u32 %v5610, 7
        %v5612 = vsub.s32 0, %v5611
        %v5613 = vrot.slane %v5203, %v5612
        %v5614 = vlaneseq
        %v5615 = vshrl.u32 %v5614, 7
        %v5616 = vsub.s32 1, %v5615
        %v5617 = vrot.slane %v5203, %v5616
        %v5618 = vlaneseq
        %v5619 = vshrl.u32 %v5618, 7
        %v5620 = vsub.s32 2, %v5619
        %v5621 = vrot.slane %v5203, %v5620
        %v5622 = vlaneseq
        %v5623 = vshrl.u32 %v5622, 7
        %v5624 = vsub.s32 3, %v5623
        %v5625 = vrot.slane %v5203, %v5624
        %v5626 = vlaneseq
        %v5627 = vshrl.u32 %v5626, 7
        %v5628 = vsub.s32 0, %v5627
        %v5629 = vrot.slane %v5217, %v5628
        %v5630 = vlaneseq
        %v5631 = vshrl.u32 %v5630, 7
        %v5632 = vsub.s32 1, %v5631
        %v5633 = vrot.slane %v5217, %v5632
        %v5634 = vlaneseq
        %v5635 = vshrl.u32 %v5634, 7
        %v5636 = vsub.s32 2, %v5635
        %v5637 = vrot.slane %v5217, %v5636
        %v5638 = vlaneseq
        %v5639 = vshrl.u32 %v5638, 7
        %v5640 = vsub.s32 3, %v5639
        %v5641 = vrot.slane %v5217, %v5640
        %v5642 = vlaneseq
        %v5643 = vshrl.u32 %v5642, 7
        %v5644 = vsub.s32 0, %v5643
        %v5645 = vrot.slane %v5219, %v5644
        %v5646 = vlaneseq
        %v5647 = vshrl.u32 %v5646, 7
        %v5648 = vsub.s32 1, %v5647
        %v5649 = vrot.slane %v5219, %v5648
        %v5650 = vlaneseq
        %v5651 = vshrl.u32 %v5650, 7
        %v5652 = vsub.s32 2, %v5651
        %v5653 = vrot.slane %v5219, %v5652
        %v5654 = vlaneseq
        %v5655 = vshrl.u32 %v5654, 7
        %v5656 = vsub.s32 3, %v5655
        %v5657 = vrot.slane %v5219, %v5656
        %v5658 = vlaneseq
        %v5659 = vshrl.u32 %v5658, 7
        %v5660 = vsub.s32 0, %v5659
        %v5661 = vrot.slane %v5221, %v5660
        %v5662 = vlaneseq
        %v5663 = vshrl.u32 %v5662, 7
        %v5664 = vsub.s32 1, %v5663
        %v5665 = vrot.slane %v5221, %v5664
        %v5666 = vlaneseq
        %v5667 = vshrl.u32 %v5666, 7
        %v5668 = vsub.s32 2, %v5667
        %v5669 = vrot.slane %v5221, %v5668
        %v5670 = vlaneseq
        %v5671 = vshrl.u32 %v5670, 7
        %v5672 = vsub.s32 3, %v5671
        %v5673 = vrot.slane %v5221, %v5672
        %v5674 = vlaneseq
        %v5675 = vshrl.u32 %v5674, 7
        %v5676 = vsub.s32 0, %v5675
        %v5677 = vrot.slane %v5264, %v5676
        %v5678 = vlaneseq
        %v5679 = vshrl.u32 %v5678, 7
        %v5680 = vsub.s32 1, %v5679
        %v5681 = vrot.slane %v5264, %v5680
        %v5682 = vlaneseq
        %v5683 = vshrl.u32 %v5682, 7
        %v5684 = vsub.s32 2, %v5683
        %v5685 = vrot.slane %v5264, %v5684
        %v5686 = vlaneseq
        %v5687 = vshrl.u32 %v5686, 7
        %v5688 = vsub.s32 3, %v5687
        %v5689 = vrot.slane %v5264, %v5688
        %v5690 = vlaneseq
        %v5691 = vshrl.u32 %v5690, 7
        %v5692 = vsub.s32 0, %v5691
        %v5693 = vrot.slane %v5278, %v5692
        %v5694 = vlaneseq
        %v5695 = vshrl.u32 %v5694, 7
        %v5696 = vsub.s32 1, %v5695
        %v5697 = vrot.slane %v5278, %v5696
        %v5698 = vlaneseq
        %v5699 = vshrl.u32 %v5698, 7
        %v5700 = vsub.s32 2, %v5699
        %v5701 = vrot.slane %v5278, %v5700
        %v5702 = vlaneseq
        %v5703 = vshrl.u32 %v5702, 7
        %v5704 = vsub.s32 3, %v5703
        %v5705 = vrot.slane %v5278, %v5704
        %v5706 = vlaneseq
        %v5707 = vshrl.u32 %v5706, 7
        %v5708 = vsub.s32 0, %v5707
        %v5709 = vrot.slane %v5286, %v5708
        %v5710 = vlaneseq
        %v5711 = vshrl.u32 %v5710, 7
        %v5712 = vsub.s32 1, %v5711
        %v5713 = vrot.slane %v5286, %v5712
        %v5714 = vlaneseq
        %v5715 = vshrl.u32 %v5714, 7
        %v5716 = vsub.s32 2, %v5715
        %v5717 = vrot.slane %v5286, %v5716
        %v5718 = vlaneseq
        %v5719 = vshrl.u32 %v5718, 7
        %v5720 = vsub.s32 3, %v5719
        %v5721 = vrot.slane %v5286, %v5720
        %v5722 = vlaneseq
        %v5723 = vshrl.u32 %v5722, 7
        %v5724 = vsub.s32 0, %v5723
        %v5725 = vrot.slane %v5288, %v5724
        %v5726 = vlaneseq
        %v5727 = vshrl.u32 %v5726, 7
        %v5728 = vsub.s32 1, %v5727
        %v5729 = vrot.slane %v5288, %v5728
        %v5730 = vlaneseq
        %v5731 = vshrl.u32 %v5730, 7
        %v5732 = vsub.s32 2, %v5731
        %v5733 = vrot.slane %v5288, %v5732
        %v5734 = vlaneseq
        %v5735 = vshrl.u32 %v5734, 7
        %v5736 = vsub.s32 3, %v5735
        %v5737 = vrot.slane %v5288, %v5736
        %v5738 = vlaneseq
        %v5739 = vshrl.u32 %v5738, 7
        %v5740 = vsub.s32 0, %v5739
        %v5741 = vrot.slane %v5271, %v5740
        %v5742 = vlaneseq
        %v5743 = vshrl.u32 %v5742, 7
        %v5744 = vsub.s32 1, %v5743
        %v5745 = vrot.slane %v5271, %v5744
        %v5746 = vlaneseq
        %v5747 = vshrl.u32 %v5746, 7
        %v5748 = vsub.s32 2, %v5747
        %v5749 = vrot.slane %v5271, %v5748
        %v5750 = vlaneseq
        %v5751 = vshrl.u32 %v5750, 7
        %v5752 = vsub.s32 3, %v5751
        %v5753 = vrot.slane %v5271, %v5752
        %v5754 = vlaneseq
        %v5755 = vshrl.u32 %v5754, 7
        %v5756 = vsub.s32 0, %v5755
        %v5757 = vrot.slane %v5285, %v5756
        %v5758 = vlaneseq
        %v5759 = vshrl.u32 %v5758, 7
        %v5760 = vsub.s32 1, %v5759
        %v5761 = vrot.slane %v5285, %v5760
        %v5762 = vlaneseq
        %v5763 = vshrl.u32 %v5762, 7
        %v5764 = vsub.s32 2, %v5763
        %v5765 = vrot.slane %v5285, %v5764
        %v5766 = vlaneseq
        %v5767 = vshrl.u32 %v5766, 7
        %v5768 = vsub.s32 3, %v5767
        %v5769 = vrot.slane %v5285, %v5768
        %v5770 = vlaneseq
        %v5771 = vshrl.u32 %v5770, 7
        %v5772 = vsub.s32 0, %v5771
        %v5773 = vrot.slane %v5287, %v5772
        %v5774 = vlaneseq
        %v5775 = vshrl.u32 %v5774, 7
        %v5776 = vsub.s32 1, %v5775
        %v5777 = vrot.slane %v5287, %v5776
        %v5778 = vlaneseq
        %v5779 = vshrl.u32 %v5778, 7
        %v5780 = vsub.s32 2, %v5779
        %v5781 = vrot.slane %v5287, %v5780
        %v5782 = vlaneseq
        %v5783 = vshrl.u32 %v5782, 7
        %v5784 = vsub.s32 3, %v5783
        %v5785 = vrot.slane %v5287, %v5784
        %v5786 = vlaneseq
        %v5787 = vshrl.u32 %v5786, 7
        %v5788 = vsub.s32 0, %v5787
        %v5789 = vrot.slane %v5289, %v5788
        %v5790 = vlaneseq
        %v5791 = vshrl.u32 %v5790, 7
        %v5792 = vsub.s32 1, %v5791
        %v5793 = vrot.slane %v5289, %v5792
        %v5794 = vlaneseq
        %v5795 = vshrl.u32 %v5794, 7
        %v5796 = vsub.s32 2, %v5795
        %v5797 = vrot.slane %v5289, %v5796
        %v5798 = vlaneseq
        %v5799 = vshrl.u32 %v5798, 7
        %v5800 = vsub.s32 3, %v5799
        %v5801 = vrot.slane %v5289, %v5800
        %v5930 = vpack.c.bf16 %v5293, %v5293
        %v5931 = vpack.c.bf16 %v5297, %v5297
        %v5932 = vpack.c.bf16 %v5301, %v5301
        %v5933 = vpack.c.bf16 %v5305, %v5305
        %v5934 = vpack.c.bf16 %v5309, %v5309
        %v5935 = vpack.c.bf16 %v5313, %v5313
        %v5936 = vpack.c.bf16 %v5317, %v5317
        %v5937 = vpack.c.bf16 %v5321, %v5321
        %v5938 = vpack.c.bf16 %v5325, %v5325
        %v5939 = vpack.c.bf16 %v5329, %v5329
        %v5940 = vpack.c.bf16 %v5333, %v5333
        %v5941 = vpack.c.bf16 %v5337, %v5337
        %v5942 = vpack.c.bf16 %v5341, %v5341
        %v5943 = vpack.c.bf16 %v5345, %v5345
        %v5944 = vpack.c.bf16 %v5349, %v5349
        %v5945 = vpack.c.bf16 %v5353, %v5353
        %v5946 = vpack.c.bf16 %v5357, %v5357
        %v5947 = vpack.c.bf16 %v5361, %v5361
        %v5948 = vpack.c.bf16 %v5365, %v5365
        %v5949 = vpack.c.bf16 %v5369, %v5369
        %v5950 = vpack.c.bf16 %v5373, %v5373
        %v5951 = vpack.c.bf16 %v5377, %v5377
        %v5952 = vpack.c.bf16 %v5381, %v5381
        %v5953 = vpack.c.bf16 %v5385, %v5385
        %v5954 = vpack.c.bf16 %v5389, %v5389
        %v5955 = vpack.c.bf16 %v5393, %v5393
        %v5956 = vpack.c.bf16 %v5397, %v5397
        %v5957 = vpack.c.bf16 %v5401, %v5401
        %v5958 = vpack.c.bf16 %v5405, %v5405
        %v5959 = vpack.c.bf16 %v5409, %v5409
        %v5960 = vpack.c.bf16 %v5413, %v5413
        %v5961 = vpack.c.bf16 %v5417, %v5417
        %v5962 = vpack.c.bf16 %v5421, %v5421
        %v5963 = vpack.c.bf16 %v5425, %v5425
        %v5964 = vpack.c.bf16 %v5429, %v5429
        %v5965 = vpack.c.bf16 %v5433, %v5433
        %v5966 = vpack.c.bf16 %v5437, %v5437
        %v5967 = vpack.c.bf16 %v5441, %v5441
        %v5968 = vpack.c.bf16 %v5445, %v5445
        %v5969 = vpack.c.bf16 %v5449, %v5449
        %v5970 = vpack.c.bf16 %v5453, %v5453
        %v5971 = vpack.c.bf16 %v5457, %v5457
        %v5972 = vpack.c.bf16 %v5461, %v5461
        %v5973 = vpack.c.bf16 %v5465, %v5465
        %v5974 = vpack.c.bf16 %v5469, %v5469
        %v5975 = vpack.c.bf16 %v5473, %v5473
        %v5976 = vpack.c.bf16 %v5477, %v5477
        %v5977 = vpack.c.bf16 %v5481, %v5481
        %v5978 = vpack.c.bf16 %v5485, %v5485
        %v5979 = vpack.c.bf16 %v5489, %v5489
        %v5980 = vpack.c.bf16 %v5493, %v5493
        %v5981 = vpack.c.bf16 %v5497, %v5497
        %v5982 = vpack.c.bf16 %v5501, %v5501
        %v5983 = vpack.c.bf16 %v5505, %v5505
        %v5984 = vpack.c.bf16 %v5509, %v5509
        %v5985 = vpack.c.bf16 %v5513, %v5513
        %v5986 = vpack.c.bf16 %v5517, %v5517
        %v5987 = vpack.c.bf16 %v5521, %v5521
        %v5988 = vpack.c.bf16 %v5525, %v5525
        %v5989 = vpack.c.bf16 %v5529, %v5529
        %v5990 = vpack.c.bf16 %v5533, %v5533
        %v5991 = vpack.c.bf16 %v5537, %v5537
        %v5992 = vpack.c.bf16 %v5541, %v5541
        %v5993 = vpack.c.bf16 %v5545, %v5545
        %v5994 = vpack.c.bf16 %v5549, %v5549
        %v5995 = vpack.c.bf16 %v5553, %v5553
        %v5996 = vpack.c.bf16 %v5557, %v5557
        %v5997 = vpack.c.bf16 %v5561, %v5561
        %v5998 = vpack.c.bf16 %v5565, %v5565
        %v5999 = vpack.c.bf16 %v5569, %v5569
        %v6000 = vpack.c.bf16 %v5573, %v5573
        %v6001 = vpack.c.bf16 %v5577, %v5577
        %v6002 = vpack.c.bf16 %v5581, %v5581
        %v6003 = vpack.c.bf16 %v5585, %v5585
        %v6004 = vpack.c.bf16 %v5589, %v5589
        %v6005 = vpack.c.bf16 %v5593, %v5593
        %v6006 = vpack.c.bf16 %v5597, %v5597
        %v6007 = vpack.c.bf16 %v5601, %v5601
        %v6008 = vpack.c.bf16 %v5605, %v5605
        %v6009 = vpack.c.bf16 %v5609, %v5609
        %v6010 = vpack.c.bf16 %v5613, %v5613
        %v6011 = vpack.c.bf16 %v5617, %v5617
        %v6012 = vpack.c.bf16 %v5621, %v5621
        %v6013 = vpack.c.bf16 %v5625, %v5625
        %v6014 = vpack.c.bf16 %v5629, %v5629
        %v6015 = vpack.c.bf16 %v5633, %v5633
        %v6016 = vpack.c.bf16 %v5637, %v5637
        %v6017 = vpack.c.bf16 %v5641, %v5641
        %v6018 = vpack.c.bf16 %v5645, %v5645
        %v6019 = vpack.c.bf16 %v5649, %v5649
        %v6020 = vpack.c.bf16 %v5653, %v5653
        %v6021 = vpack.c.bf16 %v5657, %v5657
        %v6022 = vpack.c.bf16 %v5661, %v5661
        %v6023 = vpack.c.bf16 %v5665, %v5665
        %v6024 = vpack.c.bf16 %v5669, %v5669
        %v6025 = vpack.c.bf16 %v5673, %v5673
        %v6026 = vpack.c.bf16 %v5677, %v5677
        %v6027 = vpack.c.bf16 %v5681, %v5681
        %v6028 = vpack.c.bf16 %v5685, %v5685
        %v6029 = vpack.c.bf16 %v5689, %v5689
        %v6030 = vpack.c.bf16 %v5693, %v5693
        %v6031 = vpack.c.bf16 %v5697, %v5697
        %v6032 = vpack.c.bf16 %v5701, %v5701
        %v6033 = vpack.c.bf16 %v5705, %v5705
        %v6034 = vpack.c.bf16 %v5709, %v5709
        %v6035 = vpack.c.bf16 %v5713, %v5713
        %v6036 = vpack.c.bf16 %v5717, %v5717
        %v6037 = vpack.c.bf16 %v5721, %v5721
        %v6038 = vpack.c.bf16 %v5725, %v5725
        %v6039 = vpack.c.bf16 %v5729, %v5729
        %v6040 = vpack.c.bf16 %v5733, %v5733
        %v6041 = vpack.c.bf16 %v5737, %v5737
        %v6042 = vpack.c.bf16 %v5741, %v5741
        %v6043 = vpack.c.bf16 %v5745, %v5745
        %v6044 = vpack.c.bf16 %v5749, %v5749
        %v6045 = vpack.c.bf16 %v5753, %v5753
        %v6046 = vpack.c.bf16 %v5757, %v5757
        %v6047 = vpack.c.bf16 %v5761, %v5761
        %v6048 = vpack.c.bf16 %v5765, %v5765
        %v6049 = vpack.c.bf16 %v5769, %v5769
        %v6050 = vpack.c.bf16 %v5773, %v5773
        %v6051 = vpack.c.bf16 %v5777, %v5777
        %v6052 = vpack.c.bf16 %v5781, %v5781
        %v6053 = vpack.c.bf16 %v5785, %v5785
        %v6054 = vpack.c.bf16 %v5789, %v5789
        %v6055 = vpack.c.bf16 %v5793, %v5793
        %v6056 = vpack.c.bf16 %v5797, %v5797
        %v6057 = vpack.c.bf16 %v5801, %v5801
        %v6186 = vcombine.low %v5930, %v5931
        %v6187 = vcombine.low %v5932, %v5933
        %v6189 = vunpack.c.l.s4 1966171168
        %v6190 = vunpack.c.0.s8 %v6189
        %v6191 = vlaneseq
        %v6192 = vshrl.u32 %v6191, 7
        %v6193 = vsub.s32 %v6190, %v6192
        %v6194 = vrot.slane %v6186, %v6193
        %v6196 = vunpack.c.l.s4 1966171168
        %v6197 = vunpack.c.0.s8 %v6196
        %v6198 = vlaneseq
        %v6199 = vshrl.u32 %v6198, 7
        %v6200 = vsub.s32 %v6197, %v6199
        %v6201 = vrot.slane %v6187, %v6200
        %v6202 = vcombine.low %v6194, %v6201
        %v6204 = vunpack.c.l.s4 1966171168
        %v6205 = vunpack.c.0.s8 %v6204
        %v6206 = vlaneseq
        %v6207 = vshrl.u32 %v6206, 7
        %v6208 = vsub.s32 %v6205, %v6207
        %v6209 = vrot.slane %v6202, %v6208
        %v6210 = vcombine.low %v5934, %v5935
        %v6211 = vcombine.low %v5936, %v5937
        %v6213 = vunpack.c.l.s4 1966171168
        %v6214 = vunpack.c.0.s8 %v6213
        %v6215 = vlaneseq
        %v6216 = vshrl.u32 %v6215, 7
        %v6217 = vsub.s32 %v6214, %v6216
        %v6218 = vrot.slane %v6210, %v6217
        %v6220 = vunpack.c.l.s4 1966171168
        %v6221 = vunpack.c.0.s8 %v6220
        %v6222 = vlaneseq
        %v6223 = vshrl.u32 %v6222, 7
        %v6224 = vsub.s32 %v6221, %v6223
        %v6225 = vrot.slane %v6211, %v6224
        %v6226 = vcombine.low %v6218, %v6225
        %v6228 = vunpack.c.l.s4 1966171168
        %v6229 = vunpack.c.0.s8 %v6228
        %v6230 = vlaneseq
        %v6231 = vshrl.u32 %v6230, 7
        %v6232 = vsub.s32 %v6229, %v6231
        %v6233 = vrot.slane %v6226, %v6232
        %v6234 = vcombine.low %v5938, %v5939
        %v6235 = vcombine.low %v5940, %v5941
        %v6237 = vunpack.c.l.s4 1966171168
        %v6238 = vunpack.c.0.s8 %v6237
        %v6239 = vlaneseq
        %v6240 = vshrl.u32 %v6239, 7
        %v6241 = vsub.s32 %v6238, %v6240
        %v6242 = vrot.slane %v6234, %v6241
        %v6244 = vunpack.c.l.s4 1966171168
        %v6245 = vunpack.c.0.s8 %v6244
        %v6246 = vlaneseq
        %v6247 = vshrl.u32 %v6246, 7
        %v6248 = vsub.s32 %v6245, %v6247
        %v6249 = vrot.slane %v6235, %v6248
        %v6250 = vcombine.low %v6242, %v6249
        %v6252 = vunpack.c.l.s4 1966171168
        %v6253 = vunpack.c.0.s8 %v6252
        %v6254 = vlaneseq
        %v6255 = vshrl.u32 %v6254, 7
        %v6256 = vsub.s32 %v6253, %v6255
        %v6257 = vrot.slane %v6250, %v6256
        %v6258 = vcombine.low %v5942, %v5943
        %v6259 = vcombine.low %v5944, %v5945
        %v6261 = vunpack.c.l.s4 1966171168
        %v6262 = vunpack.c.0.s8 %v6261
        %v6263 = vlaneseq
        %v6264 = vshrl.u32 %v6263, 7
        %v6265 = vsub.s32 %v6262, %v6264
        %v6266 = vrot.slane %v6258, %v6265
        %v6268 = vunpack.c.l.s4 1966171168
        %v6269 = vunpack.c.0.s8 %v6268
        %v6270 = vlaneseq
        %v6271 = vshrl.u32 %v6270, 7
        %v6272 = vsub.s32 %v6269, %v6271
        %v6273 = vrot.slane %v6259, %v6272
        %v6274 = vcombine.low %v6266, %v6273
        %v6276 = vunpack.c.l.s4 1966171168
        %v6277 = vunpack.c.0.s8 %v6276
        %v6278 = vlaneseq
        %v6279 = vshrl.u32 %v6278, 7
        %v6280 = vsub.s32 %v6277, %v6279
        %v6281 = vrot.slane %v6274, %v6280
        %v6282 = vcombine.low %v5946, %v5947
        %v6283 = vcombine.low %v5948, %v5949
        %v6285 = vunpack.c.l.s4 1966171168
        %v6286 = vunpack.c.0.s8 %v6285
        %v6287 = vlaneseq
        %v6288 = vshrl.u32 %v6287, 7
        %v6289 = vsub.s32 %v6286, %v6288
        %v6290 = vrot.slane %v6282, %v6289
        %v6292 = vunpack.c.l.s4 1966171168
        %v6293 = vunpack.c.0.s8 %v6292
        %v6294 = vlaneseq
        %v6295 = vshrl.u32 %v6294, 7
        %v6296 = vsub.s32 %v6293, %v6295
        %v6297 = vrot.slane %v6283, %v6296
        %v6298 = vcombine.low %v6290, %v6297
        %v6300 = vunpack.c.l.s4 1966171168
        %v6301 = vunpack.c.0.s8 %v6300
        %v6302 = vlaneseq
        %v6303 = vshrl.u32 %v6302, 7
        %v6304 = vsub.s32 %v6301, %v6303
        %v6305 = vrot.slane %v6298, %v6304
        %v6306 = vcombine.low %v5950, %v5951
        %v6307 = vcombine.low %v5952, %v5953
        %v6309 = vunpack.c.l.s4 1966171168
        %v6310 = vunpack.c.0.s8 %v6309
        %v6311 = vlaneseq
        %v6312 = vshrl.u32 %v6311, 7
        %v6313 = vsub.s32 %v6310, %v6312
        %v6314 = vrot.slane %v6306, %v6313
        %v6316 = vunpack.c.l.s4 1966171168
        %v6317 = vunpack.c.0.s8 %v6316
        %v6318 = vlaneseq
        %v6319 = vshrl.u32 %v6318, 7
        %v6320 = vsub.s32 %v6317, %v6319
        %v6321 = vrot.slane %v6307, %v6320
        %v6322 = vcombine.low %v6314, %v6321
        %v6324 = vunpack.c.l.s4 1966171168
        %v6325 = vunpack.c.0.s8 %v6324
        %v6326 = vlaneseq
        %v6327 = vshrl.u32 %v6326, 7
        %v6328 = vsub.s32 %v6325, %v6327
        %v6329 = vrot.slane %v6322, %v6328
        %v6330 = vcombine.low %v5954, %v5955
        %v6331 = vcombine.low %v5956, %v5957
        %v6333 = vunpack.c.l.s4 1966171168
        %v6334 = vunpack.c.0.s8 %v6333
        %v6335 = vlaneseq
        %v6336 = vshrl.u32 %v6335, 7
        %v6337 = vsub.s32 %v6334, %v6336
        %v6338 = vrot.slane %v6330, %v6337
        %v6340 = vunpack.c.l.s4 1966171168
        %v6341 = vunpack.c.0.s8 %v6340
        %v6342 = vlaneseq
        %v6343 = vshrl.u32 %v6342, 7
        %v6344 = vsub.s32 %v6341, %v6343
        %v6345 = vrot.slane %v6331, %v6344
        %v6346 = vcombine.low %v6338, %v6345
        %v6348 = vunpack.c.l.s4 1966171168
        %v6349 = vunpack.c.0.s8 %v6348
        %v6350 = vlaneseq
        %v6351 = vshrl.u32 %v6350, 7
        %v6352 = vsub.s32 %v6349, %v6351
        %v6353 = vrot.slane %v6346, %v6352
        %v6354 = vcombine.low %v5958, %v5959
        %v6355 = vcombine.low %v5960, %v5961
        %v6357 = vunpack.c.l.s4 1966171168
        %v6358 = vunpack.c.0.s8 %v6357
        %v6359 = vlaneseq
        %v6360 = vshrl.u32 %v6359, 7
        %v6361 = vsub.s32 %v6358, %v6360
        %v6362 = vrot.slane %v6354, %v6361
        %v6364 = vunpack.c.l.s4 1966171168
        %v6365 = vunpack.c.0.s8 %v6364
        %v6366 = vlaneseq
        %v6367 = vshrl.u32 %v6366, 7
        %v6368 = vsub.s32 %v6365, %v6367
        %v6369 = vrot.slane %v6355, %v6368
        %v6370 = vcombine.low %v6362, %v6369
        %v6372 = vunpack.c.l.s4 1966171168
        %v6373 = vunpack.c.0.s8 %v6372
        %v6374 = vlaneseq
        %v6375 = vshrl.u32 %v6374, 7
        %v6376 = vsub.s32 %v6373, %v6375
        %v6377 = vrot.slane %v6370, %v6376
        %v6378 = vcombine.low %v5962, %v5963
        %v6379 = vcombine.low %v5964, %v5965
        %v6381 = vunpack.c.l.s4 1966171168
        %v6382 = vunpack.c.0.s8 %v6381
        %v6383 = vlaneseq
        %v6384 = vshrl.u32 %v6383, 7
        %v6385 = vsub.s32 %v6382, %v6384
        %v6386 = vrot.slane %v6378, %v6385
        %v6388 = vunpack.c.l.s4 1966171168
        %v6389 = vunpack.c.0.s8 %v6388
        %v6390 = vlaneseq
        %v6391 = vshrl.u32 %v6390, 7
        %v6392 = vsub.s32 %v6389, %v6391
        %v6393 = vrot.slane %v6379, %v6392
        %v6394 = vcombine.low %v6386, %v6393
        %v6396 = vunpack.c.l.s4 1966171168
        %v6397 = vunpack.c.0.s8 %v6396
        %v6398 = vlaneseq
        %v6399 = vshrl.u32 %v6398, 7
        %v6400 = vsub.s32 %v6397, %v6399
        %v6401 = vrot.slane %v6394, %v6400
        %v6402 = vcombine.low %v5966, %v5967
        %v6403 = vcombine.low %v5968, %v5969
        %v6405 = vunpack.c.l.s4 1966171168
        %v6406 = vunpack.c.0.s8 %v6405
        %v6407 = vlaneseq
        %v6408 = vshrl.u32 %v6407, 7
        %v6409 = vsub.s32 %v6406, %v6408
        %v6410 = vrot.slane %v6402, %v6409
        %v6412 = vunpack.c.l.s4 1966171168
        %v6413 = vunpack.c.0.s8 %v6412
        %v6414 = vlaneseq
        %v6415 = vshrl.u32 %v6414, 7
        %v6416 = vsub.s32 %v6413, %v6415
        %v6417 = vrot.slane %v6403, %v6416
        %v6418 = vcombine.low %v6410, %v6417
        %v6420 = vunpack.c.l.s4 1966171168
        %v6421 = vunpack.c.0.s8 %v6420
        %v6422 = vlaneseq
        %v6423 = vshrl.u32 %v6422, 7
        %v6424 = vsub.s32 %v6421, %v6423
        %v6425 = vrot.slane %v6418, %v6424
        %v6426 = vcombine.low %v5970, %v5971
        %v6427 = vcombine.low %v5972, %v5973
        %v6429 = vunpack.c.l.s4 1966171168
        %v6430 = vunpack.c.0.s8 %v6429
        %v6431 = vlaneseq
        %v6432 = vshrl.u32 %v6431, 7
        %v6433 = vsub.s32 %v6430, %v6432
        %v6434 = vrot.slane %v6426, %v6433
        %v6436 = vunpack.c.l.s4 1966171168
        %v6437 = vunpack.c.0.s8 %v6436
        %v6438 = vlaneseq
        %v6439 = vshrl.u32 %v6438, 7
        %v6440 = vsub.s32 %v6437, %v6439
        %v6441 = vrot.slane %v6427, %v6440
        %v6442 = vcombine.low %v6434, %v6441
        %v6444 = vunpack.c.l.s4 1966171168
        %v6445 = vunpack.c.0.s8 %v6444
        %v6446 = vlaneseq
        %v6447 = vshrl.u32 %v6446, 7
        %v6448 = vsub.s32 %v6445, %v6447
        %v6449 = vrot.slane %v6442, %v6448
        %v6450 = vcombine.low %v5974, %v5975
        %v6451 = vcombine.low %v5976, %v5977
        %v6453 = vunpack.c.l.s4 1966171168
        %v6454 = vunpack.c.0.s8 %v6453
        %v6455 = vlaneseq
        %v6456 = vshrl.u32 %v6455, 7
        %v6457 = vsub.s32 %v6454, %v6456
        %v6458 = vrot.slane %v6450, %v6457
        %v6460 = vunpack.c.l.s4 1966171168
        %v6461 = vunpack.c.0.s8 %v6460
        %v6462 = vlaneseq
        %v6463 = vshrl.u32 %v6462, 7
        %v6464 = vsub.s32 %v6461, %v6463
        %v6465 = vrot.slane %v6451, %v6464
        %v6466 = vcombine.low %v6458, %v6465
        %v6468 = vunpack.c.l.s4 1966171168
        %v6469 = vunpack.c.0.s8 %v6468
        %v6470 = vlaneseq
        %v6471 = vshrl.u32 %v6470, 7
        %v6472 = vsub.s32 %v6469, %v6471
        %v6473 = vrot.slane %v6466, %v6472
        %v6474 = vcombine.low %v5978, %v5979
        %v6475 = vcombine.low %v5980, %v5981
        %v6477 = vunpack.c.l.s4 1966171168
        %v6478 = vunpack.c.0.s8 %v6477
        %v6479 = vlaneseq
        %v6480 = vshrl.u32 %v6479, 7
        %v6481 = vsub.s32 %v6478, %v6480
        %v6482 = vrot.slane %v6474, %v6481
        %v6484 = vunpack.c.l.s4 1966171168
        %v6485 = vunpack.c.0.s8 %v6484
        %v6486 = vlaneseq
        %v6487 = vshrl.u32 %v6486, 7
        %v6488 = vsub.s32 %v6485, %v6487
        %v6489 = vrot.slane %v6475, %v6488
        %v6490 = vcombine.low %v6482, %v6489
        %v6492 = vunpack.c.l.s4 1966171168
        %v6493 = vunpack.c.0.s8 %v6492
        %v6494 = vlaneseq
        %v6495 = vshrl.u32 %v6494, 7
        %v6496 = vsub.s32 %v6493, %v6495
        %v6497 = vrot.slane %v6490, %v6496
        %v6498 = vcombine.low %v5982, %v5983
        %v6499 = vcombine.low %v5984, %v5985
        %v6501 = vunpack.c.l.s4 1966171168
        %v6502 = vunpack.c.0.s8 %v6501
        %v6503 = vlaneseq
        %v6504 = vshrl.u32 %v6503, 7
        %v6505 = vsub.s32 %v6502, %v6504
        %v6506 = vrot.slane %v6498, %v6505
        %v6508 = vunpack.c.l.s4 1966171168
        %v6509 = vunpack.c.0.s8 %v6508
        %v6510 = vlaneseq
        %v6511 = vshrl.u32 %v6510, 7
        %v6512 = vsub.s32 %v6509, %v6511
        %v6513 = vrot.slane %v6499, %v6512
        %v6514 = vcombine.low %v6506, %v6513
        %v6516 = vunpack.c.l.s4 1966171168
        %v6517 = vunpack.c.0.s8 %v6516
        %v6518 = vlaneseq
        %v6519 = vshrl.u32 %v6518, 7
        %v6520 = vsub.s32 %v6517, %v6519
        %v6521 = vrot.slane %v6514, %v6520
        %v6522 = vcombine.low %v5986, %v5987
        %v6523 = vcombine.low %v5988, %v5989
        %v6525 = vunpack.c.l.s4 1966171168
        %v6526 = vunpack.c.0.s8 %v6525
        %v6527 = vlaneseq
        %v6528 = vshrl.u32 %v6527, 7
        %v6529 = vsub.s32 %v6526, %v6528
        %v6530 = vrot.slane %v6522, %v6529
        %v6532 = vunpack.c.l.s4 1966171168
        %v6533 = vunpack.c.0.s8 %v6532
        %v6534 = vlaneseq
        %v6535 = vshrl.u32 %v6534, 7
        %v6536 = vsub.s32 %v6533, %v6535
        %v6537 = vrot.slane %v6523, %v6536
        %v6538 = vcombine.low %v6530, %v6537
        %v6540 = vunpack.c.l.s4 1966171168
        %v6541 = vunpack.c.0.s8 %v6540
        %v6542 = vlaneseq
        %v6543 = vshrl.u32 %v6542, 7
        %v6544 = vsub.s32 %v6541, %v6543
        %v6545 = vrot.slane %v6538, %v6544
        %v6546 = vcombine.low %v5990, %v5991
        %v6547 = vcombine.low %v5992, %v5993
        %v6549 = vunpack.c.l.s4 1966171168
        %v6550 = vunpack.c.0.s8 %v6549
        %v6551 = vlaneseq
        %v6552 = vshrl.u32 %v6551, 7
        %v6553 = vsub.s32 %v6550, %v6552
        %v6554 = vrot.slane %v6546, %v6553
        %v6556 = vunpack.c.l.s4 1966171168
        %v6557 = vunpack.c.0.s8 %v6556
        %v6558 = vlaneseq
        %v6559 = vshrl.u32 %v6558, 7
        %v6560 = vsub.s32 %v6557, %v6559
        %v6561 = vrot.slane %v6547, %v6560
        %v6562 = vcombine.low %v6554, %v6561
        %v6564 = vunpack.c.l.s4 1966171168
        %v6565 = vunpack.c.0.s8 %v6564
        %v6566 = vlaneseq
        %v6567 = vshrl.u32 %v6566, 7
        %v6568 = vsub.s32 %v6565, %v6567
        %v6569 = vrot.slane %v6562, %v6568
        %v6570 = vcombine.low %v5994, %v5995
        %v6571 = vcombine.low %v5996, %v5997
        %v6573 = vunpack.c.l.s4 1966171168
        %v6574 = vunpack.c.0.s8 %v6573
        %v6575 = vlaneseq
        %v6576 = vshrl.u32 %v6575, 7
        %v6577 = vsub.s32 %v6574, %v6576
        %v6578 = vrot.slane %v6570, %v6577
        %v6580 = vunpack.c.l.s4 1966171168
        %v6581 = vunpack.c.0.s8 %v6580
        %v6582 = vlaneseq
        %v6583 = vshrl.u32 %v6582, 7
        %v6584 = vsub.s32 %v6581, %v6583
        %v6585 = vrot.slane %v6571, %v6584
        %v6586 = vcombine.low %v6578, %v6585
        %v6588 = vunpack.c.l.s4 1966171168
        %v6589 = vunpack.c.0.s8 %v6588
        %v6590 = vlaneseq
        %v6591 = vshrl.u32 %v6590, 7
        %v6592 = vsub.s32 %v6589, %v6591
        %v6593 = vrot.slane %v6586, %v6592
        %v6594 = vcombine.low %v5998, %v5999
        %v6595 = vcombine.low %v6000, %v6001
        %v6597 = vunpack.c.l.s4 1966171168
        %v6598 = vunpack.c.0.s8 %v6597
        %v6599 = vlaneseq
        %v6600 = vshrl.u32 %v6599, 7
        %v6601 = vsub.s32 %v6598, %v6600
        %v6602 = vrot.slane %v6594, %v6601
        %v6604 = vunpack.c.l.s4 1966171168
        %v6605 = vunpack.c.0.s8 %v6604
        %v6606 = vlaneseq
        %v6607 = vshrl.u32 %v6606, 7
        %v6608 = vsub.s32 %v6605, %v6607
        %v6609 = vrot.slane %v6595, %v6608
        %v6610 = vcombine.low %v6602, %v6609
        %v6612 = vunpack.c.l.s4 1966171168
        %v6613 = vunpack.c.0.s8 %v6612
        %v6614 = vlaneseq
        %v6615 = vshrl.u32 %v6614, 7
        %v6616 = vsub.s32 %v6613, %v6615
        %v6617 = vrot.slane %v6610, %v6616
        %v6618 = vcombine.low %v6002, %v6003
        %v6619 = vcombine.low %v6004, %v6005
        %v6621 = vunpack.c.l.s4 1966171168
        %v6622 = vunpack.c.0.s8 %v6621
        %v6623 = vlaneseq
        %v6624 = vshrl.u32 %v6623, 7
        %v6625 = vsub.s32 %v6622, %v6624
        %v6626 = vrot.slane %v6618, %v6625
        %v6628 = vunpack.c.l.s4 1966171168
        %v6629 = vunpack.c.0.s8 %v6628
        %v6630 = vlaneseq
        %v6631 = vshrl.u32 %v6630, 7
        %v6632 = vsub.s32 %v6629, %v6631
        %v6633 = vrot.slane %v6619, %v6632
        %v6634 = vcombine.low %v6626, %v6633
        %v6636 = vunpack.c.l.s4 1966171168
        %v6637 = vunpack.c.0.s8 %v6636
        %v6638 = vlaneseq
        %v6639 = vshrl.u32 %v6638, 7
        %v6640 = vsub.s32 %v6637, %v6639
        %v6641 = vrot.slane %v6634, %v6640
        %v6642 = vcombine.low %v6006, %v6007
        %v6643 = vcombine.low %v6008, %v6009
        %v6645 = vunpack.c.l.s4 1966171168
        %v6646 = vunpack.c.0.s8 %v6645
        %v6647 = vlaneseq
        %v6648 = vshrl.u32 %v6647, 7
        %v6649 = vsub.s32 %v6646, %v6648
        %v6650 = vrot.slane %v6642, %v6649
        %v6652 = vunpack.c.l.s4 1966171168
        %v6653 = vunpack.c.0.s8 %v6652
        %v6654 = vlaneseq
        %v6655 = vshrl.u32 %v6654, 7
        %v6656 = vsub.s32 %v6653, %v6655
        %v6657 = vrot.slane %v6643, %v6656
        %v6658 = vcombine.low %v6650, %v6657
        %v6660 = vunpack.c.l.s4 1966171168
        %v6661 = vunpack.c.0.s8 %v6660
        %v6662 = vlaneseq
        %v6663 = vshrl.u32 %v6662, 7
        %v6664 = vsub.s32 %v6661, %v6663
        %v6665 = vrot.slane %v6658, %v6664
        %v6666 = vcombine.low %v6010, %v6011
        %v6667 = vcombine.low %v6012, %v6013
        %v6669 = vunpack.c.l.s4 1966171168
        %v6670 = vunpack.c.0.s8 %v6669
        %v6671 = vlaneseq
        %v6672 = vshrl.u32 %v6671, 7
        %v6673 = vsub.s32 %v6670, %v6672
        %v6674 = vrot.slane %v6666, %v6673
        %v6676 = vunpack.c.l.s4 1966171168
        %v6677 = vunpack.c.0.s8 %v6676
        %v6678 = vlaneseq
        %v6679 = vshrl.u32 %v6678, 7
        %v6680 = vsub.s32 %v6677, %v6679
        %v6681 = vrot.slane %v6667, %v6680
        %v6682 = vcombine.low %v6674, %v6681
        %v6684 = vunpack.c.l.s4 1966171168
        %v6685 = vunpack.c.0.s8 %v6684
        %v6686 = vlaneseq
        %v6687 = vshrl.u32 %v6686, 7
        %v6688 = vsub.s32 %v6685, %v6687
        %v6689 = vrot.slane %v6682, %v6688
        %v6690 = vcombine.low %v6014, %v6015
        %v6691 = vcombine.low %v6016, %v6017
        %v6693 = vunpack.c.l.s4 1966171168
        %v6694 = vunpack.c.0.s8 %v6693
        %v6695 = vlaneseq
        %v6696 = vshrl.u32 %v6695, 7
        %v6697 = vsub.s32 %v6694, %v6696
        %v6698 = vrot.slane %v6690, %v6697
        %v6700 = vunpack.c.l.s4 1966171168
        %v6701 = vunpack.c.0.s8 %v6700
        %v6702 = vlaneseq
        %v6703 = vshrl.u32 %v6702, 7
        %v6704 = vsub.s32 %v6701, %v6703
        %v6705 = vrot.slane %v6691, %v6704
        %v6706 = vcombine.low %v6698, %v6705
        %v6708 = vunpack.c.l.s4 1966171168
        %v6709 = vunpack.c.0.s8 %v6708
        %v6710 = vlaneseq
        %v6711 = vshrl.u32 %v6710, 7
        %v6712 = vsub.s32 %v6709, %v6711
        %v6713 = vrot.slane %v6706, %v6712
        %v6714 = vcombine.low %v6018, %v6019
        %v6715 = vcombine.low %v6020, %v6021
        %v6717 = vunpack.c.l.s4 1966171168
        %v6718 = vunpack.c.0.s8 %v6717
        %v6719 = vlaneseq
        %v6720 = vshrl.u32 %v6719, 7
        %v6721 = vsub.s32 %v6718, %v6720
        %v6722 = vrot.slane %v6714, %v6721
        %v6724 = vunpack.c.l.s4 1966171168
        %v6725 = vunpack.c.0.s8 %v6724
        %v6726 = vlaneseq
        %v6727 = vshrl.u32 %v6726, 7
        %v6728 = vsub.s32 %v6725, %v6727
        %v6729 = vrot.slane %v6715, %v6728
        %v6730 = vcombine.low %v6722, %v6729
        %v6732 = vunpack.c.l.s4 1966171168
        %v6733 = vunpack.c.0.s8 %v6732
        %v6734 = vlaneseq
        %v6735 = vshrl.u32 %v6734, 7
        %v6736 = vsub.s32 %v6733, %v6735
        %v6737 = vrot.slane %v6730, %v6736
        %v6738 = vcombine.low %v6022, %v6023
        %v6739 = vcombine.low %v6024, %v6025
        %v6741 = vunpack.c.l.s4 1966171168
        %v6742 = vunpack.c.0.s8 %v6741
        %v6743 = vlaneseq
        %v6744 = vshrl.u32 %v6743, 7
        %v6745 = vsub.s32 %v6742, %v6744
        %v6746 = vrot.slane %v6738, %v6745
        %v6748 = vunpack.c.l.s4 1966171168
        %v6749 = vunpack.c.0.s8 %v6748
        %v6750 = vlaneseq
        %v6751 = vshrl.u32 %v6750, 7
        %v6752 = vsub.s32 %v6749, %v6751
        %v6753 = vrot.slane %v6739, %v6752
        %v6754 = vcombine.low %v6746, %v6753
        %v6756 = vunpack.c.l.s4 1966171168
        %v6757 = vunpack.c.0.s8 %v6756
        %v6758 = vlaneseq
        %v6759 = vshrl.u32 %v6758, 7
        %v6760 = vsub.s32 %v6757, %v6759
        %v6761 = vrot.slane %v6754, %v6760
        %v6762 = vcombine.low %v6026, %v6027
        %v6763 = vcombine.low %v6028, %v6029
        %v6765 = vunpack.c.l.s4 1966171168
        %v6766 = vunpack.c.0.s8 %v6765
        %v6767 = vlaneseq
        %v6768 = vshrl.u32 %v6767, 7
        %v6769 = vsub.s32 %v6766, %v6768
        %v6770 = vrot.slane %v6762, %v6769
        %v6772 = vunpack.c.l.s4 1966171168
        %v6773 = vunpack.c.0.s8 %v6772
        %v6774 = vlaneseq
        %v6775 = vshrl.u32 %v6774, 7
        %v6776 = vsub.s32 %v6773, %v6775
        %v6777 = vrot.slane %v6763, %v6776
        %v6778 = vcombine.low %v6770, %v6777
        %v6780 = vunpack.c.l.s4 1966171168
        %v6781 = vunpack.c.0.s8 %v6780
        %v6782 = vlaneseq
        %v6783 = vshrl.u32 %v6782, 7
        %v6784 = vsub.s32 %v6781, %v6783
        %v6785 = vrot.slane %v6778, %v6784
        %v6786 = vcombine.low %v6030, %v6031
        %v6787 = vcombine.low %v6032, %v6033
        %v6789 = vunpack.c.l.s4 1966171168
        %v6790 = vunpack.c.0.s8 %v6789
        %v6791 = vlaneseq
        %v6792 = vshrl.u32 %v6791, 7
        %v6793 = vsub.s32 %v6790, %v6792
        %v6794 = vrot.slane %v6786, %v6793
        %v6796 = vunpack.c.l.s4 1966171168
        %v6797 = vunpack.c.0.s8 %v6796
        %v6798 = vlaneseq
        %v6799 = vshrl.u32 %v6798, 7
        %v6800 = vsub.s32 %v6797, %v6799
        %v6801 = vrot.slane %v6787, %v6800
        %v6802 = vcombine.low %v6794, %v6801
        %v6804 = vunpack.c.l.s4 1966171168
        %v6805 = vunpack.c.0.s8 %v6804
        %v6806 = vlaneseq
        %v6807 = vshrl.u32 %v6806, 7
        %v6808 = vsub.s32 %v6805, %v6807
        %v6809 = vrot.slane %v6802, %v6808
        %v6810 = vcombine.low %v6034, %v6035
        %v6811 = vcombine.low %v6036, %v6037
        %v6813 = vunpack.c.l.s4 1966171168
        %v6814 = vunpack.c.0.s8 %v6813
        %v6815 = vlaneseq
        %v6816 = vshrl.u32 %v6815, 7
        %v6817 = vsub.s32 %v6814, %v6816
        %v6818 = vrot.slane %v6810, %v6817
        %v6820 = vunpack.c.l.s4 1966171168
        %v6821 = vunpack.c.0.s8 %v6820
        %v6822 = vlaneseq
        %v6823 = vshrl.u32 %v6822, 7
        %v6824 = vsub.s32 %v6821, %v6823
        %v6825 = vrot.slane %v6811, %v6824
        %v6826 = vcombine.low %v6818, %v6825
        %v6828 = vunpack.c.l.s4 1966171168
        %v6829 = vunpack.c.0.s8 %v6828
        %v6830 = vlaneseq
        %v6831 = vshrl.u32 %v6830, 7
        %v6832 = vsub.s32 %v6829, %v6831
        %v6833 = vrot.slane %v6826, %v6832
        %v6834 = vcombine.low %v6038, %v6039
        %v6835 = vcombine.low %v6040, %v6041
        %v6837 = vunpack.c.l.s4 1966171168
        %v6838 = vunpack.c.0.s8 %v6837
        %v6839 = vlaneseq
        %v6840 = vshrl.u32 %v6839, 7
        %v6841 = vsub.s32 %v6838, %v6840
        %v6842 = vrot.slane %v6834, %v6841
        %v6844 = vunpack.c.l.s4 1966171168
        %v6845 = vunpack.c.0.s8 %v6844
        %v6846 = vlaneseq
        %v6847 = vshrl.u32 %v6846, 7
        %v6848 = vsub.s32 %v6845, %v6847
        %v6849 = vrot.slane %v6835, %v6848
        %v6850 = vcombine.low %v6842, %v6849
        %v6852 = vunpack.c.l.s4 1966171168
        %v6853 = vunpack.c.0.s8 %v6852
        %v6854 = vlaneseq
        %v6855 = vshrl.u32 %v6854, 7
        %v6856 = vsub.s32 %v6853, %v6855
        %v6857 = vrot.slane %v6850, %v6856
        %v6858 = vcombine.low %v6042, %v6043
        %v6859 = vcombine.low %v6044, %v6045
        %v6861 = vunpack.c.l.s4 1966171168
        %v6862 = vunpack.c.0.s8 %v6861
        %v6863 = vlaneseq
        %v6864 = vshrl.u32 %v6863, 7
        %v6865 = vsub.s32 %v6862, %v6864
        %v6866 = vrot.slane %v6858, %v6865
        %v6868 = vunpack.c.l.s4 1966171168
        %v6869 = vunpack.c.0.s8 %v6868
        %v6870 = vlaneseq
        %v6871 = vshrl.u32 %v6870, 7
        %v6872 = vsub.s32 %v6869, %v6871
        %v6873 = vrot.slane %v6859, %v6872
        %v6874 = vcombine.low %v6866, %v6873
        %v6876 = vunpack.c.l.s4 1966171168
        %v6877 = vunpack.c.0.s8 %v6876
        %v6878 = vlaneseq
        %v6879 = vshrl.u32 %v6878, 7
        %v6880 = vsub.s32 %v6877, %v6879
        %v6881 = vrot.slane %v6874, %v6880
        %v6882 = vcombine.low %v6046, %v6047
        %v6883 = vcombine.low %v6048, %v6049
        %v6885 = vunpack.c.l.s4 1966171168
        %v6886 = vunpack.c.0.s8 %v6885
        %v6887 = vlaneseq
        %v6888 = vshrl.u32 %v6887, 7
        %v6889 = vsub.s32 %v6886, %v6888
        %v6890 = vrot.slane %v6882, %v6889
        %v6892 = vunpack.c.l.s4 1966171168
        %v6893 = vunpack.c.0.s8 %v6892
        %v6894 = vlaneseq
        %v6895 = vshrl.u32 %v6894, 7
        %v6896 = vsub.s32 %v6893, %v6895
        %v6897 = vrot.slane %v6883, %v6896
        %v6898 = vcombine.low %v6890, %v6897
        %v6900 = vunpack.c.l.s4 1966171168
        %v6901 = vunpack.c.0.s8 %v6900
        %v6902 = vlaneseq
        %v6903 = vshrl.u32 %v6902, 7
        %v6904 = vsub.s32 %v6901, %v6903
        %v6905 = vrot.slane %v6898, %v6904
        %v6906 = vcombine.low %v6050, %v6051
        %v6907 = vcombine.low %v6052, %v6053
        %v6909 = vunpack.c.l.s4 1966171168
        %v6910 = vunpack.c.0.s8 %v6909
        %v6911 = vlaneseq
        %v6912 = vshrl.u32 %v6911, 7
        %v6913 = vsub.s32 %v6910, %v6912
        %v6914 = vrot.slane %v6906, %v6913
        %v6916 = vunpack.c.l.s4 1966171168
        %v6917 = vunpack.c.0.s8 %v6916
        %v6918 = vlaneseq
        %v6919 = vshrl.u32 %v6918, 7
        %v6920 = vsub.s32 %v6917, %v6919
        %v6921 = vrot.slane %v6907, %v6920
        %v6922 = vcombine.low %v6914, %v6921
        %v6924 = vunpack.c.l.s4 1966171168
        %v6925 = vunpack.c.0.s8 %v6924
        %v6926 = vlaneseq
        %v6927 = vshrl.u32 %v6926, 7
        %v6928 = vsub.s32 %v6925, %v6927
        %v6929 = vrot.slane %v6922, %v6928
        %v6930 = vcombine.low %v6054, %v6055
        %v6931 = vcombine.low %v6056, %v6057
        %v6933 = vunpack.c.l.s4 1966171168
        %v6934 = vunpack.c.0.s8 %v6933
        %v6935 = vlaneseq
        %v6936 = vshrl.u32 %v6935, 7
        %v6937 = vsub.s32 %v6934, %v6936
        %v6938 = vrot.slane %v6930, %v6937
        %v6940 = vunpack.c.l.s4 1966171168
        %v6941 = vunpack.c.0.s8 %v6940
        %v6942 = vlaneseq
        %v6943 = vshrl.u32 %v6942, 7
        %v6944 = vsub.s32 %v6941, %v6943
        %v6945 = vrot.slane %v6931, %v6944
        %v6946 = vcombine.low %v6938, %v6945
        %v6948 = vunpack.c.l.s4 1966171168
        %v6949 = vunpack.c.0.s8 %v6948
        %v6950 = vlaneseq
        %v6951 = vshrl.u32 %v6950, 7
        %v6952 = vsub.s32 %v6949, %v6951
        %v6953 = vrot.slane %v6946, %v6952
        %vm6986 = vcmask 1040384
        %vm6987 = vsmask.f32 256
        %vm6988 = vmand %vm6986, %vm6987
        %vm6989 = vcmask 1041409
        %vm6990 = vsmask.f32 1280
        %vm6991 = vmand %vm6989, %vm6990
        %vm6992 = vmor %vm6991, %vm6988
        %vm6993 = vcmask 1042434
        %vm6994 = vsmask.f32 2304
        %vm6995 = vmand %vm6993, %vm6994
        %vm6996 = vmor %vm6995, %vm6992
        %vm6997 = vcmask 1043459
        %vm6998 = vsmask.f32 3328
        %vm6999 = vmand %vm6997, %vm6998
        %vm7000 = vmor %vm6999, %vm6996
        %v7001 = vld [vmem:[%s563] sm:$0xf]
        %v7002 = vsel %vm7000, %v6209, %v7001
        %7003 = vst [vmem:[%s563] sm:$0xf] %v7002
        %v7004 = vld [vmem:[%s563 + $0x4] sm:$0xf]
        %v7005 = vsel %vm7000, %v6233, %v7004
        %7006 = vst [vmem:[%s563 + $0x4] sm:$0xf] %v7005
        %v7007 = vld [vmem:[%s563 + $0x8] sm:$0xf]
        %v7008 = vsel %vm7000, %v6257, %v7007
        %7009 = vst [vmem:[%s563 + $0x8] sm:$0xf] %v7008
        %v7010 = vld [vmem:[%s563 + $0xc] sm:$0xf]
        %v7011 = vsel %vm7000, %v6281, %v7010
        %7012 = vst [vmem:[%s563 + $0xc] sm:$0xf] %v7011
        %v7013 = vld [vmem:[%s563 + $0x10] sm:$0xf]
        %v7014 = vsel %vm7000, %v6305, %v7013
        %7015 = vst [vmem:[%s563 + $0x10] sm:$0xf] %v7014
        %v7016 = vld [vmem:[%s563 + $0x14] sm:$0xf]
        %v7017 = vsel %vm7000, %v6329, %v7016
        %7018 = vst [vmem:[%s563 + $0x14] sm:$0xf] %v7017
        %v7019 = vld [vmem:[%s563 + $0x18] sm:$0xf]
        %v7020 = vsel %vm7000, %v6353, %v7019
        %7021 = vst [vmem:[%s563 + $0x18] sm:$0xf] %v7020
        %v7022 = vld [vmem:[%s563 + $0x1c] sm:$0xf]
        %v7023 = vsel %vm7000, %v6377, %v7022
        %7024 = vst [vmem:[%s563 + $0x1c] sm:$0xf] %v7023
        %v7025 = vld [vmem:[%s563 + $0x20] sm:$0xf]
        %v7026 = vsel %vm7000, %v6401, %v7025
        %7027 = vst [vmem:[%s563 + $0x20] sm:$0xf] %v7026
        %v7028 = vld [vmem:[%s563 + $0x24] sm:$0xf]
        %v7029 = vsel %vm7000, %v6425, %v7028
        %7030 = vst [vmem:[%s563 + $0x24] sm:$0xf] %v7029
        %v7031 = vld [vmem:[%s563 + $0x28] sm:$0xf]
        %v7032 = vsel %vm7000, %v6449, %v7031
        %7033 = vst [vmem:[%s563 + $0x28] sm:$0xf] %v7032
        %v7034 = vld [vmem:[%s563 + $0x2c] sm:$0xf]
        %v7035 = vsel %vm7000, %v6473, %v7034
        %7036 = vst [vmem:[%s563 + $0x2c] sm:$0xf] %v7035
        %v7037 = vld [vmem:[%s563 + $0x30] sm:$0xf]
        %v7038 = vsel %vm7000, %v6497, %v7037
        %7039 = vst [vmem:[%s563 + $0x30] sm:$0xf] %v7038
        %v7040 = vld [vmem:[%s563 + $0x34] sm:$0xf]
        %v7041 = vsel %vm7000, %v6521, %v7040
        %7042 = vst [vmem:[%s563 + $0x34] sm:$0xf] %v7041
        %v7043 = vld [vmem:[%s563 + $0x38] sm:$0xf]
        %v7044 = vsel %vm7000, %v6545, %v7043
        %7045 = vst [vmem:[%s563 + $0x38] sm:$0xf] %v7044
        %v7046 = vld [vmem:[%s563 + $0x3c] sm:$0xf]
        %v7047 = vsel %vm7000, %v6569, %v7046
        %7048 = vst [vmem:[%s563 + $0x3c] sm:$0xf] %v7047
        %v7049 = vld [vmem:[%s563 + $0x40] sm:$0xf]
        %v7050 = vsel %vm7000, %v6593, %v7049
        %7051 = vst [vmem:[%s563 + $0x40] sm:$0xf] %v7050
        %v7052 = vld [vmem:[%s563 + $0x44] sm:$0xf]
        %v7053 = vsel %vm7000, %v6617, %v7052
        %7054 = vst [vmem:[%s563 + $0x44] sm:$0xf] %v7053
        %v7055 = vld [vmem:[%s563 + $0x48] sm:$0xf]
        %v7056 = vsel %vm7000, %v6641, %v7055
        %7057 = vst [vmem:[%s563 + $0x48] sm:$0xf] %v7056
        %v7058 = vld [vmem:[%s563 + $0x4c] sm:$0xf]
        %v7059 = vsel %vm7000, %v6665, %v7058
        %7060 = vst [vmem:[%s563 + $0x4c] sm:$0xf] %v7059
        %v7061 = vld [vmem:[%s563 + $0x50] sm:$0xf]
        %v7062 = vsel %vm7000, %v6689, %v7061
        %7063 = vst [vmem:[%s563 + $0x50] sm:$0xf] %v7062
        %v7064 = vld [vmem:[%s563 + $0x54] sm:$0xf]
        %v7065 = vsel %vm7000, %v6713, %v7064
        %7066 = vst [vmem:[%s563 + $0x54] sm:$0xf] %v7065
        %v7067 = vld [vmem:[%s563 + $0x58] sm:$0xf]
        %v7068 = vsel %vm7000, %v6737, %v7067
        %7069 = vst [vmem:[%s563 + $0x58] sm:$0xf] %v7068
        %v7070 = vld [vmem:[%s563 + $0x5c] sm:$0xf]
        %v7071 = vsel %vm7000, %v6761, %v7070
        %7072 = vst [vmem:[%s563 + $0x5c] sm:$0xf] %v7071
        %v7073 = vld [vmem:[%s563 + $0x60] sm:$0xf]
        %v7074 = vsel %vm7000, %v6785, %v7073
        %7075 = vst [vmem:[%s563 + $0x60] sm:$0xf] %v7074
        %v7076 = vld [vmem:[%s563 + $0x64] sm:$0xf]
        %v7077 = vsel %vm7000, %v6809, %v7076
        %7078 = vst [vmem:[%s563 + $0x64] sm:$0xf] %v7077
        %v7079 = vld [vmem:[%s563 + $0x68] sm:$0xf]
        %v7080 = vsel %vm7000, %v6833, %v7079
        %7081 = vst [vmem:[%s563 + $0x68] sm:$0xf] %v7080
        %v7082 = vld [vmem:[%s563 + $0x6c] sm:$0xf]
        %v7083 = vsel %vm7000, %v6857, %v7082
        %7084 = vst [vmem:[%s563 + $0x6c] sm:$0xf] %v7083
        %v7085 = vld [vmem:[%s563 + $0x70] sm:$0xf]
        %v7086 = vsel %vm7000, %v6881, %v7085
        %7087 = vst [vmem:[%s563 + $0x70] sm:$0xf] %v7086
        %v7088 = vld [vmem:[%s563 + $0x74] sm:$0xf]
        %v7089 = vsel %vm7000, %v6905, %v7088
        %7090 = vst [vmem:[%s563 + $0x74] sm:$0xf] %v7089
        %v7091 = vld [vmem:[%s563 + $0x78] sm:$0xf]
        %v7092 = vsel %vm7000, %v6929, %v7091
        %7093 = vst [vmem:[%s563 + $0x78] sm:$0xf] %v7092
        %v7094 = vld [vmem:[%s563 + $0x7c] sm:$0xf]
        %v7095 = vsel %vm7000, %v6953, %v7094
        %7096 = vst [vmem:[%s563 + $0x7c] sm:$0xf] %v7095
        %s7097 = smul.u32 32, %s29
        %p7098 = scmp.lt.s32.totalorder %s7097, 63
        %s7099 = scalar_select %p7098, %s7097, 63
        %s7100 = smul.addr %s7099, 4
        %s7101 = scalar_lea.vmem %s16, %s7100
        // Predicated region
        $region97: #{tpu_custom_call.1} parent=83 // pred_check
          %p7102 = pneg %p388
        $region98: #{tpu_custom_call.1} parent=83 // pred_check_branch
          %7104 = sbr.rel (%p7102) target = $region100
        $region99: #{tpu_custom_call.1} parent=83 // pred_region
          %s7105 = smul.u32 32, %s29
        $region100: #{tpu_custom_call.1} parent=83 // pred_fallthru
          _
      $region84: #{tpu_custom_call.1} parent=5 // pred_fallthru
        _
      %p7106 = scmp.le.s32.totalorder 2, %s24
      // Predicated region
      $region101: #{tpu_custom_call.1} parent=5 // pred_check
        %p7107 = pneg %p7106
      $region102: #{tpu_custom_call.1} parent=5 // pred_check_branch
        %7109 = sbr.rel (%p7107) target = $region104
      $region103: #{tpu_custom_call.1} parent=5 // pred_region
        %s7110 = ssub.s32 %s24, 2
        // Predicated region
        $region105: #{tpu_custom_call.1} parent=103 // pred_check
          %p7111 = pneg %p394
        $region106: #{tpu_custom_call.1} parent=103 // pred_check_branch
          %7113 = sbr.rel (%p7111) target = $region108
        $region107: #{tpu_custom_call.1} parent=103 // pred_region
          %s7114 = smul.u32 32, %s30
          %p7115 = scmp.lt.s32.totalorder %s7114, 63
          %s7116 = scalar_select %p7115, %s7114, 63
          %s7117 = smul.addr %s7116, 4
          %s7118 = scalar_lea.vmem %s16, %s7117
        $region108: #{tpu_custom_call.1} parent=103 // pred_fallthru
          _
      $region104: #{tpu_custom_call.1} parent=5 // pred_fallthru
        _
    $region6: #{tpu_custom_call.1} parent=1 // loop_footer
      %s28 = sadd.s32 1, %s24
    $region7: #{tpu_custom_call.1} parent=1 // loop_footer_branch
      %23 = sbr.rel target = $region3
    $region8: #{tpu_custom_call.1} parent=1 // loop_exit
      _
    %7119 = vsyncpa [#allocation3], 1
    %s7120 = scalar_lea.sflag [#allocation3], 1
    %7121 = vsyncpa %s7120, 1
    %7122 = vsyncpa [#allocation5], 1

</llo_original>
